<compile_context>
chip_gen: v6e
topology: v6e:2x2x1
jax: 0.10.0
libtpu: 0.0.40
codegen_flags: <defaults>
</compile_context>

<pallas_src>
import functools

import jax
import jax.numpy as jnp
from jax.experimental import pallas as pl
from jax.experimental.pallas import tpu as pltpu


LANE = 128   # channel padding -> lane-dense vregs / stores / MXU operands
SUB = 8      # output-width padding -> layout-preserving (H*W, C) flattening


def _ceil_to(v, m):
    return ((v + m - 1) // m) * m


def _pick_batch_tile(n, m_img):
    """Images per grid step: fill the MXU (M >= ~256 rows) where possible."""
    cap = max(1, -(-256 // m_img))
    b = 1
    for d in range(1, n + 1):
        if n % d == 0 and d <= cap:
            b = d
    # prefer >= 2 grid steps (megacore sharding) when it does not cost MXU fill
    if n // b < 2:
        for d in range(b - 1, 0, -1):
            if n % d == 0 and d * m_img >= 256:
                b = d
                break
    return b


# ----------------------------------------------------------------------------
# Fused kernel: conv1 + LIF(pos) + dropout mask + conv2 + shortcut + LIF(pos+1)
# ----------------------------------------------------------------------------
def _block_kernel(params_ref, x_ref, w1_ref, w2_ref, *refs,
                  taps1, centre, downsample, mask_edges,
                  B, ho, wo_p, m_img, M1, cin_p, cout_p):
    refs = list(refs)
    wid_ref = refs.pop(0) if downsample else None
    (keep_ref, mem1_ref, spk1_ref, mem2_ref, spk2_ref,
     out_ref, mem1o_ref, spk1o_ref, mem2o_ref, spk2o_ref, sp_ref) = refs

    f32, bf16 = jnp.float32, jnp.bfloat16
    leak1, thr1 = params_ref[0], params_ref[1]
    leak2, thr2 = params_ref[2], params_ref[3]
    t_m1, mscale = params_ref[4], params_ref[5]
    M2 = (ho + 2) * wo_p

    # ---- stage 1: residual[0] 3x3 conv (stride folded into the slab layout).
    # Full-slab MXU matmuls + aligned output-window accumulation into a
    # loop-carried value: no scratch RMW, no relayout copies.
    slab_taps = {}
    for (si, ro, ti) in taps1:
        slab_taps.setdefault(si, []).append((ro, ti))
    acc1 = None
    for si, items in slab_taps.items():
        slab = x_ref[si].reshape(B * M1, cin_p)            # bf16, free reshape
        for (ro, ti) in items:
            part = jnp.dot(slab, w1_ref[ti], preferred_element_type=f32)
            part = part.reshape(B, M1, cout_p)[:, ro * wo_p:ro * wo_p + m_img, :]
            acc1 = part if acc1 is None else acc1 + part

    # ---- LIF update at layer `pos` (all f32)
    mem1 = leak1 * mem1_ref[...] + acc1
    mem_thr1 = mem1 / thr1 - 1.0
    fired1 = mem_thr1 > 0.0
    spk1f = fired1.astype(f32)
    mem1o_ref[...] = mem1 - thr1 * spk1f                   # soft reset
    spk1o_ref[...] = jnp.where(fired1, t_m1,
                               spk1_ref[...].astype(f32)).astype(spk1o_ref.dtype)
    masked = keep_ref[...] * fired1.astype(bf16)           # binary keep, bf16

    # ---- stage 2 input slabs built on-chip (bf16).  sp_ref[kw] holds the
    # zero-padded masked-spike map pre-shifted by column offset kw so that
    # every conv2 tap becomes an aligned row window (no relayout on reads).
    zb = jnp.zeros((3, B, wo_p + 1, cout_p), bf16)
    sp_ref[:, :, 0:wo_p + 1, :] = zb                       # top conv padding
    sp_ref[:, :, M2 - (wo_p + 1):M2, :] = zb               # bottom conv padding
    if mask_edges:      # wo == wo_p: zero the columns that wrap across rows
        col = jax.lax.broadcasted_iota(jnp.int32, (1, m_img, 1), 1) % wo_p
        m_for_s0 = masked * (col != (wo_p - 1)).astype(bf16)
        m_for_s2 = masked * (col != 0).astype(bf16)
    else:               # wrapped columns already hold zeros (width padding)
        m_for_s0 = masked
        m_for_s2 = masked
    sp_ref[1, :, wo_p:wo_p + m_img, :] = masked
    sp_ref[0, :, wo_p + 1:wo_p + 1 + m_img, :] = m_for_s0
    sp_ref[2, :, wo_p - 1:wo_p - 1 + m_img, :] = m_for_s2

    # ---- stage 2: residual[3] 3x3 stride-1 conv (same full-slab scheme)
    acc2 = None
    for kw in range(3):
        slab = sp_ref[kw].reshape(B * M2, cout_p)
        for kh in range(3):
            part = jnp.dot(slab, w2_ref[kh * 3 + kw], preferred_element_type=f32)
            part = part.reshape(B, M2, cout_p)[:, kh * wo_p:kh * wo_p + m_img, :]
            acc2 = part if acc2 is None else acc2 + part

    # ---- shortcut
    sc_si, sc_ro = centre
    if downsample:                                          # 1x1 stride-s conv
        slab = x_ref[sc_si].reshape(B * M1, cin_p)
        short = jnp.dot(slab, wid_ref[...], preferred_element_type=f32)
        short = short.reshape(B, M1, cout_p)[:, sc_ro * wo_p:sc_ro * wo_p + m_img, :]
    else:                                                   # true identity add
        short = x_ref[sc_si][:, sc_ro * wo_p:sc_ro * wo_p + m_img, :].astype(f32)

    # ---- LIF update at layer `pos + 1` (dropout scale folded as f32 scalar)
    mem2 = leak2 * mem2_ref[...] + mscale * acc2 + short
    mem_thr2 = mem2 / thr2 - 1.0
    fired2 = mem_thr2 > 0.0
    spk2f = fired2.astype(f32)
    mem2o_ref[...] = mem2 - thr2 * spk2f
    spk2o_ref[...] = jnp.where(fired2, t_m1,
                               spk2_ref[...].astype(f32)).astype(spk2o_ref.dtype)
    out_ref[...] = fired2.astype(out_ref.dtype)


# ----------------------------------------------------------------------------
# BasicBlock module (parameter setup + forward glue).
# ----------------------------------------------------------------------------
class BasicBlockPallas:
    expansion = 1

    def __init__(self, in_planes, planes, stride, dropout, key):
        assert stride in (1, 2), "ResNet BasicBlock uses stride 1 or 2"
        self.in_planes = in_planes
        self.planes = planes
        self.stride = stride
        self.dropout = float(dropout)
        self.downsample = (stride != 1 or in_planes != self.expansion * planes)
        self.cin_p = _ceil_to(in_planes, LANE)
        self.cout_p = _ceil_to(self.expansion * planes, LANE)
        if not self.downsample:
            assert self.cin_p == self.cout_p

        k1, k2, k3 = jax.random.split(key, 3)
        cout = self.expansion * planes
        # residual[0]: Conv2d(in_planes, planes, 3, stride, pad=1, bias=False)
        std1 = (1.0 / (9 * in_planes)) ** 0.5
        self.w1 = std1 * jax.random.normal(k1, (3, 3, in_planes, planes),
                                           jnp.float32)                 # HWIO
        # residual[3]: Conv2d(planes, planes, 3, 1, pad=1, bias=False)
        std2 = (1.0 / (9 * planes)) ** 0.5
        self.w2 = std2 * jax.random.normal(k2, (3, 3, planes, planes),
                                           jnp.float32)                 # HWIO
        self.wid = None
        if self.downsample:
            std3 = (1.0 / in_planes) ** 0.5
            self.wid = std3 * jax.random.normal(
                k3, (1, 1, in_planes, cout), jnp.float32)

        cin_p, cout_p = self.cin_p, self.cout_p
        # channel-padded, tap-major, bf16 weights for the MXU
        self.w1_k = jnp.pad(self.w1, ((0, 0), (0, 0),
                                      (0, cin_p - in_planes),
                                      (0, cout_p - planes))
                            ).reshape(9, cin_p, cout_p).astype(jnp.bfloat16)
        self.w2_k = jnp.pad(self.w2, ((0, 0), (0, 0),
                                      (0, cout_p - planes),
                                      (0, cout_p - cout))
                            ).reshape(9, cout_p, cout_p).astype(jnp.bfloat16)
        self.wid_k = None
        if self.downsample:
            self.wid_k = jnp.pad(self.wid, ((0, 0), (0, 0),
                                            (0, cin_p - in_planes),
                                            (0, cout_p - cout))
                                 ).reshape(cin_p, cout_p).astype(jnp.bfloat16)

    def forward(self, dic):
        x = dic['out_prev']                    # (N, H, W, Cin)  NHWC spikes
        pos = dic['pos']
        mem, spike, mask = dic['mem'], dic['spike'], dic['mask']
        threshold, leak, t = dic['threshold'], dic['leak'], dic['t']

        N, H, W, Cin = x.shape
        Cout = self.expansion * self.planes
        s = self.stride
        cin_p, cout_p = self.cin_p, self.cout_p
        bf16, f32 = jnp.bfloat16, jnp.float32

        ho = (H + 2 - 3) // s + 1
        wo = (W + 2 - 3) // s + 1
        wo_p = _ceil_to(wo, SUB)
        m_img = ho * wo_p
        B = _pick_batch_tile(N, m_img)

        # ---- stage-1 input slabs (bf16): one flat slab per distinct column /
        # phase offset, so every conv tap is an aligned row window in-kernel.
        # Spikes are 0/1, so the bf16 cast is exact.
        x = x.astype(bf16)
        if s == 1:
            M1 = (ho + 2) * wo_p
            xz = jnp.pad(x, ((0, 0), (1, 1), (1, wo_p + 1 - W), (0, cin_p - Cin)))
            slabs = [xz[:, :, kw:kw + wo_p, :] for kw in range(3)]
            taps1 = tuple((kw, kh, kh * 3 + kw)
                          for kh in range(3) for kw in range(3))
            centre = (1, 1)                                  # x[oh, ow]
            nslab = 3
        else:                                                # stride 2 (phases)
            M1 = (ho + 1) * wo_p
            pad_b = 2 * ho + 2 - (H + 1)
            pad_r = 2 * wo + 2 - (W + 1)
            xz = jnp.pad(x, ((0, 0), (1, pad_b), (1, pad_r), (0, cin_p - Cin)))
            slab_defs = ((0, 0, 0), (0, 1, 0), (0, 0, 1),
                         (1, 0, 0), (1, 1, 0), (1, 0, 1))    # (p, q, co)
            slabs = []
            for (p, q, co) in slab_defs:
                sl = xz[:, p:p + 2 * (ho + 1):2,
                        q + 2 * co:q + 2 * co + 2 * wo:2, :]  # (N, ho+1, wo, C)
                slabs.append(jnp.pad(sl, ((0, 0), (0, 0), (0, wo_p - wo), (0, 0))))
            taps1 = tuple((slab_defs.index((kh % 2, kw % 2, kw // 2)), kh // 2,
                           kh * 3 + kw) for kh in range(3) for kw in range(3))
            centre = (slab_defs.index((1, 1, 0)), 0)         # x[2oh, 2ow]
            nslab = 6
        xk = jnp.stack(slabs, axis=0).reshape(nslab, N, M1, cin_p)

        # ---- padded, lane-dense state / mask tiles
        def pad_state(a, dt):
            a = jnp.asarray(a).astype(dt)
            a = jnp.pad(a, ((0, 0), (0, 0), (0, wo_p - wo), (0, cout_p - Cout)))
            return a.reshape(N, m_img, cout_p)

        mem1 = pad_state(mem[pos], f32)
        spk1 = pad_state(spike[pos], bf16)
        mem2 = pad_state(mem[pos + 1], f32)
        spk2 = pad_state(spike[pos + 1], bf16)
        # binary keep mask (bf16, exact 0/1); 1/(1-p) applied in-kernel as f32.
        scale = 1.0 / (1.0 - self.dropout) if self.dropout < 1.0 else 1.0
        keep = pad_state(jnp.asarray(mask[pos]) * (1.0 - self.dropout), bf16)

        # runtime scalars in SMEM (no recompile when they change)
        params = jnp.array([leak['l%d' % pos], threshold['t%d' % pos],
                            leak['l%d' % (pos + 1)], threshold['t%d' % (pos + 1)],
                            float(t - 1), scale, 0.0, 0.0], dtype=f32)

        kern = functools.partial(
            _block_kernel, taps1=taps1, centre=centre,
            downsample=self.downsample, mask_edges=(wo == wo_p),
            B=B, ho=ho, wo_p=wo_p, m_img=m_img, M1=M1,
            cin_p=cin_p, cout_p=cout_p)

        state_spec = pl.BlockSpec((B, m_img, cout_p), lambda n: (n, 0, 0))
        in_specs = [
            pl.BlockSpec(memory_space=pltpu.MemorySpace.SMEM),            # params
            pl.BlockSpec((nslab, B, M1, cin_p), lambda n: (0, n, 0, 0)),  # slabs
            # grid-invariant weight blocks (fetched once by the pipeline)
            pl.BlockSpec((9, cin_p, cout_p), lambda n: (0, 0, 0)),
            pl.BlockSpec((9, cout_p, cout_p), lambda n: (0, 0, 0)),
        ]
        args = [params, xk, self.w1_k, self.w2_k]
        if self.downsample:
            in_specs.append(pl.BlockSpec((cin_p, cout_p), lambda n: (0, 0)))
            args.append(self.wid_k)
        in_specs += [state_spec] * 5
        args += [keep, mem1, spk1, mem2, spk2]

        base = len(args) - 4                  # index of mem1 among the inputs
        io_alias = {base + 0: 1, base + 1: 2, base + 2: 3, base + 3: 4}

        # explicit per-step VMEM budget (double-buffered pipeline blocks);
        # never request the whole physical VMEM (v7x has 64 MiB per core).
        M2 = (ho + 2) * wo_p
        nst = B * m_img * cout_p
        est = (2 * nslab * B * M1 * cin_p * 2
               + 2 * (9 * cin_p + 9 * cout_p
                      + (cin_p if self.downsample else 0)) * cout_p * 2
               + 4 * nst * (2 * 4 + 3 * 2)            # in+out states, 2 bufs
               + 3 * B * M2 * cout_p * 2)             # stage-2 slab scratch
        vmem_limit = int(min(48 * 2 ** 20, max(16 * 2 ** 20, 2 * est)))

        out_shapes = (
            jax.ShapeDtypeStruct((N, m_img, cout_p), bf16),   # out spikes
            jax.ShapeDtypeStruct((N, m_img, cout_p), f32),    # mem[pos]
            jax.ShapeDtypeStruct((N, m_img, cout_p), bf16),   # spike[pos]
            jax.ShapeDtypeStruct((N, m_img, cout_p), f32),    # mem[pos+1]
            jax.ShapeDtypeStruct((N, m_img, cout_p), bf16),   # spike[pos+1]
        )
        outb, mem1n, spk1n, mem2n, spk2n = pl.pallas_call(
            kern,
            out_shape=out_shapes,
            grid=(N // B,),
            in_specs=in_specs,
            out_specs=(state_spec,) * 5,
            scratch_shapes=[pltpu.VMEM((3, B, M2, cout_p), bf16)],
            input_output_aliases=io_alias,
            compiler_params=pltpu.CompilerParams(
                dimension_semantics=("parallel",),
                vmem_limit_bytes=vmem_limit),
        )(*args)

        def unpad(a):                          # (N, m_img, C) -> (N, ho, wo, Cout)
            return a.reshape(N, ho, wo_p, cout_p)[:, :, :wo, :Cout]

        mem[pos] = unpad(mem1n)
        spike[pos] = unpad(spk1n)
        mem[pos + 1] = unpad(mem2n)
        spike[pos + 1] = unpad(spk2n)
        return unpad(outb)


# ----------------------------------------------------------------------------
if __name__ == "__main__":
    key = jax.random.PRNGKey(0)
    ks = jax.random.split(key, 12)

    N, Cin, H, W = 2, 4, 16, 16
    planes, stride, dropout = 8, 2, 0.2
    t = 5

    # block 1: downsampling (stride 2 -> fused 1x1-conv shortcut)
    block1 = BasicBlockPallas(Cin, planes, stride, dropout, ks[0])
    # block 2: identity shortcut (stride 1, in == out planes) -> plain add
    block2 = BasicBlockPallas(planes, planes, 1, dropout, ks[1])

    x_nchw = jax.random.bernoulli(ks[2], 0.5, (N, Cin, H, W)).astype(jnp.float32)
    x = jnp.transpose(x_nchw, (0, 2, 3, 1))                 # NHWC spike train

    Ho = (H + 2 - 3) // stride + 1
    Wo = (W + 2 - 3) // stride + 1
    st_shape = (N, Ho, Wo, planes)

    mem = {i: 0.1 * jax.random.normal(ks[3 + i], st_shape, jnp.float32)
           for i in range(4)}
    spike = {i: jnp.full(st_shape, -1.0, jnp.float32) for i in range(4)}
    keep0 = jax.random.bernoulli(ks[8], 1.0 - dropout, st_shape)
    keep2 = jax.random.bernoulli(ks[9], 1.0 - dropout, st_shape)
    mask = {0: keep0.astype(jnp.float32) / (1.0 - dropout),
            2: keep2.astype(jnp.float32) / (1.0 - dropout)}
    threshold = {'t0': 0.8, 't1': 1.2, 't2': 0.9, 't3': 1.1}
    leak = {'l0': 0.9, 'l1': 0.95, 'l2': 0.9, 'l3': 0.95}

    dic = {'out_prev': x, 'pos': 0, 'act_func': None,   # heaviside fused in-kernel
           'mem': mem, 'spike': spike, 'mask': mask,
           'threshold': threshold, 't': t, 'leak': leak}
    out1 = block1.forward(dic)

    dic2 = dict(dic)
    dic2['out_prev'] = out1
    dic2['pos'] = 2
    out2 = block2.forward(dic2)

    jax.block_until_ready(out2)
    for i in range(4):
        jax.block_until_ready(mem[i])
        jax.block_until_ready(spike[i])

    assert out1.shape == st_shape and out2.shape == st_shape
    assert out1.dtype == jnp.bfloat16 and out2.dtype == jnp.bfloat16
    o1 = out1.astype(jnp.float32)
    o2 = out2.astype(jnp.float32)
    assert bool(jnp.all((o1 == 0.0) | (o1 == 1.0)))
    assert bool(jnp.all((o2 == 0.0) | (o2 == 1.0)))
    assert all(bool(jnp.all(jnp.isfinite(mem[i]))) for i in range(4))
    print("KERNEL_OK")
</pallas_src>

<mosaic_0001>
module attributes {stable_mosaic.version = 11 : i64} {
  func.func @_block_kernel(%arg0: i32, %arg1: memref<8xf32, #tpu.memory_space<smem>>, %arg2: memref<6x2x72x128xbf16, #tpu.memory_space<vmem>>, %arg3: memref<9x128x128xbf16, #tpu.memory_space<vmem>>, %arg4: memref<9x128x128xbf16, #tpu.memory_space<vmem>>, %arg5: memref<128x128xbf16, #tpu.memory_space<vmem>>, %arg6: memref<2x64x128xbf16, #tpu.memory_space<vmem>>, %arg7: memref<2x64x128xf32, #tpu.memory_space<vmem>>, %arg8: memref<2x64x128xbf16, #tpu.memory_space<vmem>>, %arg9: memref<2x64x128xf32, #tpu.memory_space<vmem>>, %arg10: memref<2x64x128xbf16, #tpu.memory_space<vmem>>, %arg11: memref<2x64x128xbf16, #tpu.memory_space<vmem>>, %arg12: memref<2x64x128xf32, #tpu.memory_space<vmem>>, %arg13: memref<2x64x128xbf16, #tpu.memory_space<vmem>>, %arg14: memref<2x64x128xf32, #tpu.memory_space<vmem>>, %arg15: memref<2x64x128xbf16, #tpu.memory_space<vmem>>, %arg16: memref<3x2x80x128xbf16, #tpu.memory_space<vmem>>) attributes {dimension_semantics = [#tpu.dimension_semantics<parallel>], iteration_bounds = array<i64: 1>, scalar_prefetch = 0 : i64, scratch_operands = 1 : i64, tpu.core_type = #tpu.core_type<tc>, window_params = [{transform_indices = @transform_0, window_bounds = array<i64: 8>}, {transform_indices = @transform_1, window_bounds = array<i64: 6, 2, 72, 128>}, {pipeline_mode = #tpu.pipeline_mode<synchronous>, transform_indices = @transform_2, window_bounds = array<i64: 9, 128, 128>}, {pipeline_mode = #tpu.pipeline_mode<synchronous>, transform_indices = @transform_3, window_bounds = array<i64: 9, 128, 128>}, {pipeline_mode = #tpu.pipeline_mode<synchronous>, transform_indices = @transform_4, window_bounds = array<i64: 128, 128>}, {transform_indices = @transform_5, window_bounds = array<i64: 2, 64, 128>}, {transform_indices = @transform_6, window_bounds = array<i64: 2, 64, 128>}, {transform_indices = @transform_7, window_bounds = array<i64: 2, 64, 128>}, {transform_indices = @transform_8, window_bounds = array<i64: 2, 64, 128>}, {transform_indices = @transform_9, window_bounds = array<i64: 2, 64, 128>}, {transform_indices = @transform_10, window_bounds = array<i64: 2, 64, 128>}, {transform_indices = @transform_11, window_bounds = array<i64: 2, 64, 128>}, {transform_indices = @transform_12, window_bounds = array<i64: 2, 64, 128>}, {transform_indices = @transform_13, window_bounds = array<i64: 2, 64, 128>}, {transform_indices = @transform_14, window_bounds = array<i64: 2, 64, 128>}]} {
    %c0 = arith.constant 0 : index
    %0 = memref.load %arg1[%c0] : memref<8xf32, #tpu.memory_space<smem>>
    %c1 = arith.constant 1 : index
    %1 = memref.load %arg1[%c1] : memref<8xf32, #tpu.memory_space<smem>>
    %c2 = arith.constant 2 : index
    %2 = memref.load %arg1[%c2] : memref<8xf32, #tpu.memory_space<smem>>
    %c3 = arith.constant 3 : index
    %3 = memref.load %arg1[%c3] : memref<8xf32, #tpu.memory_space<smem>>
    %c4 = arith.constant 4 : index
    %4 = memref.load %arg1[%c4] : memref<8xf32, #tpu.memory_space<smem>>
    %c5 = arith.constant 5 : index
    %5 = memref.load %arg1[%c5] : memref<8xf32, #tpu.memory_space<smem>>
    %c0_0 = arith.constant 0 : index
    %c0_1 = arith.constant 0 : index
    %c0_2 = arith.constant 0 : index
    %c0_3 = arith.constant 0 : index
    %6 = vector.load %arg2[%c0_0, %c0_1, %c0_2, %c0_3] : memref<6x2x72x128xbf16, #tpu.memory_space<vmem>>, vector<1x2x72x128xbf16>
    %7 = vector.shape_cast %6 : vector<1x2x72x128xbf16> to vector<2x72x128xbf16>
    %8 = vector.shape_cast %7 : vector<2x72x128xbf16> to vector<144x128xbf16>
    %c0_4 = arith.constant 0 : index
    %c0_5 = arith.constant 0 : index
    %c0_6 = arith.constant 0 : index
    %9 = vector.load %arg3[%c0_4, %c0_5, %c0_6] : memref<9x128x128xbf16, #tpu.memory_space<vmem>>, vector<1x128x128xbf16>
    %10 = vector.shape_cast %9 : vector<1x128x128xbf16> to vector<128x128xbf16>
    %cst = arith.constant dense<0.000000e+00> : vector<144x128xf32>
    %11 = tpu.matmul %8, %10, %cst {dimension_numbers = #tpu.dot_dimension_numbers<[1], [0], [0], [1], [0, 0, 1, 1], [], []>} : vector<144x128xbf16>, vector<128x128xbf16>, vector<144x128xf32> -> vector<144x128xf32>
    %12 = vector.shape_cast %11 : vector<144x128xf32> to vector<2x72x128xf32>
    %13 = vector.extract_strided_slice %12 {offsets = [0, 0, 0], sizes = [2, 64, 128], strides = [1, 1, 1]} : vector<2x72x128xf32> to vector<2x64x128xf32>
    %c6 = arith.constant 6 : index
    %c0_7 = arith.constant 0 : index
    %c0_8 = arith.constant 0 : index
    %14 = vector.load %arg3[%c6, %c0_7, %c0_8] : memref<9x128x128xbf16, #tpu.memory_space<vmem>>, vector<1x128x128xbf16>
    %15 = vector.shape_cast %14 : vector<1x128x128xbf16> to vector<128x128xbf16>
    %cst_9 = arith.constant dense<0.000000e+00> : vector<144x128xf32>
    %16 = tpu.matmul %8, %15, %cst_9 {dimension_numbers = #tpu.dot_dimension_numbers<[1], [0], [0], [1], [0, 0, 1, 1], [], []>} : vector<144x128xbf16>, vector<128x128xbf16>, vector<144x128xf32> -> vector<144x128xf32>
    %17 = vector.shape_cast %16 : vector<144x128xf32> to vector<2x72x128xf32>
    %18 = vector.extract_strided_slice %17 {offsets = [0, 8, 0], sizes = [2, 64, 128], strides = [1, 1, 1]} : vector<2x72x128xf32> to vector<2x64x128xf32>
    %19 = arith.addf %13, %18 : vector<2x64x128xf32>
    %c1_10 = arith.constant 1 : index
    %c0_11 = arith.constant 0 : index
    %c0_12 = arith.constant 0 : index
    %c0_13 = arith.constant 0 : index
    %20 = vector.load %arg2[%c1_10, %c0_11, %c0_12, %c0_13] : memref<6x2x72x128xbf16, #tpu.memory_space<vmem>>, vector<1x2x72x128xbf16>
    %21 = vector.shape_cast %20 : vector<1x2x72x128xbf16> to vector<2x72x128xbf16>
    %22 = vector.shape_cast %21 : vector<2x72x128xbf16> to vector<144x128xbf16>
    %c1_14 = arith.constant 1 : index
    %c0_15 = arith.constant 0 : index
    %c0_16 = arith.constant 0 : index
    %23 = vector.load %arg3[%c1_14, %c0_15, %c0_16] : memref<9x128x128xbf16, #tpu.memory_space<vmem>>, vector<1x128x128xbf16>
    %24 = vector.shape_cast %23 : vector<1x128x128xbf16> to vector<128x128xbf16>
    %cst_17 = arith.constant dense<0.000000e+00> : vector<144x128xf32>
    %25 = tpu.matmul %22, %24, %cst_17 {dimension_numbers = #tpu.dot_dimension_numbers<[1], [0], [0], [1], [0, 0, 1, 1], [], []>} : vector<144x128xbf16>, vector<128x128xbf16>, vector<144x128xf32> -> vector<144x128xf32>
    %26 = vector.shape_cast %25 : vector<144x128xf32> to vector<2x72x128xf32>
    %27 = vector.extract_strided_slice %26 {offsets = [0, 0, 0], sizes = [2, 64, 128], strides = [1, 1, 1]} : vector<2x72x128xf32> to vector<2x64x128xf32>
    %28 = arith.addf %19, %27 : vector<2x64x128xf32>
    %c7 = arith.constant 7 : index
    %c0_18 = arith.constant 0 : index
    %c0_19 = arith.constant 0 : index
    %29 = vector.load %arg3[%c7, %c0_18, %c0_19] : memref<9x128x128xbf16, #tpu.memory_space<vmem>>, vector<1x128x128xbf16>
    %30 = vector.shape_cast %29 : vector<1x128x128xbf16> to vector<128x128xbf16>
    %cst_20 = arith.constant dense<0.000000e+00> : vector<144x128xf32>
    %31 = tpu.matmul %22, %30, %cst_20 {dimension_numbers = #tpu.dot_dimension_numbers<[1], [0], [0], [1], [0, 0, 1, 1], [], []>} : vector<144x128xbf16>, vector<128x128xbf16>, vector<144x128xf32> -> vector<144x128xf32>
    %32 = vector.shape_cast %31 : vector<144x128xf32> to vector<2x72x128xf32>
    %33 = vector.extract_strided_slice %32 {offsets = [0, 8, 0], sizes = [2, 64, 128], strides = [1, 1, 1]} : vector<2x72x128xf32> to vector<2x64x128xf32>
    %34 = arith.addf %28, %33 : vector<2x64x128xf32>
    %c2_21 = arith.constant 2 : index
    %c0_22 = arith.constant 0 : index
    %c0_23 = arith.constant 0 : index
    %c0_24 = arith.constant 0 : index
    %35 = vector.load %arg2[%c2_21, %c0_22, %c0_23, %c0_24] : memref<6x2x72x128xbf16, #tpu.memory_space<vmem>>, vector<1x2x72x128xbf16>
    %36 = vector.shape_cast %35 : vector<1x2x72x128xbf16> to vector<2x72x128xbf16>
    %37 = vector.shape_cast %36 : vector<2x72x128xbf16> to vector<144x128xbf16>
    %c2_25 = arith.constant 2 : index
    %c0_26 = arith.constant 0 : index
    %c0_27 = arith.constant 0 : index
    %38 = vector.load %arg3[%c2_25, %c0_26, %c0_27] : memref<9x128x128xbf16, #tpu.memory_space<vmem>>, vector<1x128x128xbf16>
    %39 = vector.shape_cast %38 : vector<1x128x128xbf16> to vector<128x128xbf16>
    %cst_28 = arith.constant dense<0.000000e+00> : vector<144x128xf32>
    %40 = tpu.matmul %37, %39, %cst_28 {dimension_numbers = #tpu.dot_dimension_numbers<[1], [0], [0], [1], [0, 0, 1, 1], [], []>} : vector<144x128xbf16>, vector<128x128xbf16>, vector<144x128xf32> -> vector<144x128xf32>
    %41 = vector.shape_cast %40 : vector<144x128xf32> to vector<2x72x128xf32>
    %42 = vector.extract_strided_slice %41 {offsets = [0, 0, 0], sizes = [2, 64, 128], strides = [1, 1, 1]} : vector<2x72x128xf32> to vector<2x64x128xf32>
    %43 = arith.addf %34, %42 : vector<2x64x128xf32>
    %c8 = arith.constant 8 : index
    %c0_29 = arith.constant 0 : index
    %c0_30 = arith.constant 0 : index
    %44 = vector.load %arg3[%c8, %c0_29, %c0_30] : memref<9x128x128xbf16, #tpu.memory_space<vmem>>, vector<1x128x128xbf16>
    %45 = vector.shape_cast %44 : vector<1x128x128xbf16> to vector<128x128xbf16>
    %cst_31 = arith.constant dense<0.000000e+00> : vector<144x128xf32>
    %46 = tpu.matmul %37, %45, %cst_31 {dimension_numbers = #tpu.dot_dimension_numbers<[1], [0], [0], [1], [0, 0, 1, 1], [], []>} : vector<144x128xbf16>, vector<128x128xbf16>, vector<144x128xf32> -> vector<144x128xf32>
    %47 = vector.shape_cast %46 : vector<144x128xf32> to vector<2x72x128xf32>
    %48 = vector.extract_strided_slice %47 {offsets = [0, 8, 0], sizes = [2, 64, 128], strides = [1, 1, 1]} : vector<2x72x128xf32> to vector<2x64x128xf32>
    %49 = arith.addf %43, %48 : vector<2x64x128xf32>
    %c3_32 = arith.constant 3 : index
    %c0_33 = arith.constant 0 : index
    %c0_34 = arith.constant 0 : index
    %c0_35 = arith.constant 0 : index
    %50 = vector.load %arg2[%c3_32, %c0_33, %c0_34, %c0_35] : memref<6x2x72x128xbf16, #tpu.memory_space<vmem>>, vector<1x2x72x128xbf16>
    %51 = vector.shape_cast %50 : vector<1x2x72x128xbf16> to vector<2x72x128xbf16>
    %52 = vector.shape_cast %51 : vector<2x72x128xbf16> to vector<144x128xbf16>
    %c3_36 = arith.constant 3 : index
    %c0_37 = arith.constant 0 : index
    %c0_38 = arith.constant 0 : index
    %53 = vector.load %arg3[%c3_36, %c0_37, %c0_38] : memref<9x128x128xbf16, #tpu.memory_space<vmem>>, vector<1x128x128xbf16>
    %54 = vector.shape_cast %53 : vector<1x128x128xbf16> to vector<128x128xbf16>
    %cst_39 = arith.constant dense<0.000000e+00> : vector<144x128xf32>
    %55 = tpu.matmul %52, %54, %cst_39 {dimension_numbers = #tpu.dot_dimension_numbers<[1], [0], [0], [1], [0, 0, 1, 1], [], []>} : vector<144x128xbf16>, vector<128x128xbf16>, vector<144x128xf32> -> vector<144x128xf32>
    %56 = vector.shape_cast %55 : vector<144x128xf32> to vector<2x72x128xf32>
    %57 = vector.extract_strided_slice %56 {offsets = [0, 0, 0], sizes = [2, 64, 128], strides = [1, 1, 1]} : vector<2x72x128xf32> to vector<2x64x128xf32>
    %58 = arith.addf %49, %57 : vector<2x64x128xf32>
    %c4_40 = arith.constant 4 : index
    %c0_41 = arith.constant 0 : index
    %c0_42 = arith.constant 0 : index
    %c0_43 = arith.constant 0 : index
    %59 = vector.load %arg2[%c4_40, %c0_41, %c0_42, %c0_43] : memref<6x2x72x128xbf16, #tpu.memory_space<vmem>>, vector<1x2x72x128xbf16>
    %60 = vector.shape_cast %59 : vector<1x2x72x128xbf16> to vector<2x72x128xbf16>
    %61 = vector.shape_cast %60 : vector<2x72x128xbf16> to vector<144x128xbf16>
    %c4_44 = arith.constant 4 : index
    %c0_45 = arith.constant 0 : index
    %c0_46 = arith.constant 0 : index
    %62 = vector.load %arg3[%c4_44, %c0_45, %c0_46] : memref<9x128x128xbf16, #tpu.memory_space<vmem>>, vector<1x128x128xbf16>
    %63 = vector.shape_cast %62 : vector<1x128x128xbf16> to vector<128x128xbf16>
    %cst_47 = arith.constant dense<0.000000e+00> : vector<144x128xf32>
    %64 = tpu.matmul %61, %63, %cst_47 {dimension_numbers = #tpu.dot_dimension_numbers<[1], [0], [0], [1], [0, 0, 1, 1], [], []>} : vector<144x128xbf16>, vector<128x128xbf16>, vector<144x128xf32> -> vector<144x128xf32>
    %65 = vector.shape_cast %64 : vector<144x128xf32> to vector<2x72x128xf32>
    %66 = vector.extract_strided_slice %65 {offsets = [0, 0, 0], sizes = [2, 64, 128], strides = [1, 1, 1]} : vector<2x72x128xf32> to vector<2x64x128xf32>
    %67 = arith.addf %58, %66 : vector<2x64x128xf32>
    %c5_48 = arith.constant 5 : index
    %c0_49 = arith.constant 0 : index
    %c0_50 = arith.constant 0 : index
    %c0_51 = arith.constant 0 : index
    %68 = vector.load %arg2[%c5_48, %c0_49, %c0_50, %c0_51] : memref<6x2x72x128xbf16, #tpu.memory_space<vmem>>, vector<1x2x72x128xbf16>
    %69 = vector.shape_cast %68 : vector<1x2x72x128xbf16> to vector<2x72x128xbf16>
    %70 = vector.shape_cast %69 : vector<2x72x128xbf16> to vector<144x128xbf16>
    %c5_52 = arith.constant 5 : index
    %c0_53 = arith.constant 0 : index
    %c0_54 = arith.constant 0 : index
    %71 = vector.load %arg3[%c5_52, %c0_53, %c0_54] : memref<9x128x128xbf16, #tpu.memory_space<vmem>>, vector<1x128x128xbf16>
    %72 = vector.shape_cast %71 : vector<1x128x128xbf16> to vector<128x128xbf16>
    %cst_55 = arith.constant dense<0.000000e+00> : vector<144x128xf32>
    %73 = tpu.matmul %70, %72, %cst_55 {dimension_numbers = #tpu.dot_dimension_numbers<[1], [0], [0], [1], [0, 0, 1, 1], [], []>} : vector<144x128xbf16>, vector<128x128xbf16>, vector<144x128xf32> -> vector<144x128xf32>
    %74 = vector.shape_cast %73 : vector<144x128xf32> to vector<2x72x128xf32>
    %75 = vector.extract_strided_slice %74 {offsets = [0, 0, 0], sizes = [2, 64, 128], strides = [1, 1, 1]} : vector<2x72x128xf32> to vector<2x64x128xf32>
    %76 = arith.addf %67, %75 : vector<2x64x128xf32>
    %c0_56 = arith.constant 0 : index
    %c0_57 = arith.constant 0 : index
    %c0_58 = arith.constant 0 : index
    %77 = vector.load %arg7[%c0_56, %c0_57, %c0_58] : memref<2x64x128xf32, #tpu.memory_space<vmem>>, vector<2x64x128xf32>
    %78 = vector.broadcast %0 : f32 to vector<2x64x128xf32>
    %79 = arith.mulf %78, %77 : vector<2x64x128xf32>
    %80 = arith.addf %79, %76 : vector<2x64x128xf32>
    %81 = vector.broadcast %1 : f32 to vector<2x64x128xf32>
    %82 = arith.divf %80, %81 : vector<2x64x128xf32>
    %cst_59 = arith.constant 1.000000e+00 : f32
    %83 = vector.broadcast %cst_59 : f32 to vector<2x64x128xf32>
    %84 = arith.subf %82, %83 : vector<2x64x128xf32>
    %cst_60 = arith.constant 0.000000e+00 : f32
    %85 = vector.broadcast %cst_60 : f32 to vector<2x64x128xf32>
    %86 = arith.cmpf ogt, %84, %85 : vector<2x64x128xf32>
    %87 = arith.extui %86 : vector<2x64x128xi1> to vector<2x64x128xi32>
    %88 = arith.sitofp %87 : vector<2x64x128xi32> to vector<2x64x128xf32>
    %89 = vector.broadcast %1 : f32 to vector<2x64x128xf32>
    %90 = arith.mulf %89, %88 : vector<2x64x128xf32>
    %91 = arith.subf %80, %90 : vector<2x64x128xf32>
    %c0_61 = arith.constant 0 : index
    %c0_62 = arith.constant 0 : index
    %c0_63 = arith.constant 0 : index
    %92 = vector.load %arg12[%c0_61, %c0_62, %c0_63] : memref<2x64x128xf32, #tpu.memory_space<vmem>>, vector<2x64x128xf32>
    tpu.vector_store %arg12[%c0_61, %c0_62, %c0_63], %91 {strides = array<i32>} : memref<2x64x128xf32, #tpu.memory_space<vmem>>, vector<2x64x128xf32>,
    %c0_64 = arith.constant 0 : index
    %c0_65 = arith.constant 0 : index
    %c0_66 = arith.constant 0 : index
    %93 = vector.load %arg8[%c0_64, %c0_65, %c0_66] : memref<2x64x128xbf16, #tpu.memory_space<vmem>>, vector<2x64x128xbf16>
    %94 = arith.extf %93 : vector<2x64x128xbf16> to vector<2x64x128xf32>
    %95 = vector.broadcast %4 : f32 to vector<2x64x128xf32>
    %96 = arith.select %86, %95, %94 : vector<2x64x128xi1>, vector<2x64x128xf32>
    %97 = arith.truncf %96 : vector<2x64x128xf32> to vector<2x64x128xbf16>
    %c0_67 = arith.constant 0 : index
    %c0_68 = arith.constant 0 : index
    %c0_69 = arith.constant 0 : index
    %98 = vector.load %arg13[%c0_67, %c0_68, %c0_69] : memref<2x64x128xbf16, #tpu.memory_space<vmem>>, vector<2x64x128xbf16>
    tpu.vector_store %arg13[%c0_67, %c0_68, %c0_69], %97 {strides = array<i32>} : memref<2x64x128xbf16, #tpu.memory_space<vmem>>, vector<2x64x128xbf16>,
    %c0_70 = arith.constant 0 : index
    %c0_71 = arith.constant 0 : index
    %c0_72 = arith.constant 0 : index
    %99 = vector.load %arg6[%c0_70, %c0_71, %c0_72] : memref<2x64x128xbf16, #tpu.memory_space<vmem>>, vector<2x64x128xbf16>
    %100 = arith.extui %86 : vector<2x64x128xi1> to vector<2x64x128xi32>
    %101 = arith.sitofp %100 : vector<2x64x128xi32> to vector<2x64x128xf32>
    %102 = arith.truncf %101 : vector<2x64x128xf32> to vector<2x64x128xbf16>
    %103 = arith.mulf %99, %102 : vector<2x64x128xbf16>
    %cst_73 = arith.constant 0.000000e+00 : bf16
    %104 = vector.broadcast %cst_73 : bf16 to vector<3x2x9x128xbf16>
    %c0_74 = arith.constant 0 : index
    %c0_75 = arith.constant 0 : index
    %c0_76 = arith.constant 0 : index
    %c0_77 = arith.constant 0 : index
    %105 = vector.load %arg16[%c0_74, %c0_75, %c0_76, %c0_77] : memref<3x2x80x128xbf16, #tpu.memory_space<vmem>>, vector<3x2x9x128xbf16>
    tpu.vector_store %arg16[%c0_74, %c0_75, %c0_76, %c0_77], %104 {strides = array<i32>} : memref<3x2x80x128xbf16, #tpu.memory_space<vmem>>, vector<3x2x9x128xbf16>,
    %c0_78 = arith.constant 0 : index
    %c0_79 = arith.constant 0 : index
    %c71 = arith.constant 71 : index
    %c0_80 = arith.constant 0 : index
    %106 = vector.load %arg16[%c0_78, %c0_79, %c71, %c0_80] : memref<3x2x80x128xbf16, #tpu.memory_space<vmem>>, vector<3x2x9x128xbf16>
    tpu.vector_store %arg16[%c0_78, %c0_79, %c71, %c0_80], %104 {strides = array<i32>} : memref<3x2x80x128xbf16, #tpu.memory_space<vmem>>, vector<3x2x9x128xbf16>,
    %107 = tpu.iota {dimensions = array<i32: 1>} : vector<1x64x1xi32>
    %c8_i32 = arith.constant 8 : i32
    %c0_i32 = arith.constant 0 : i32
    %108 = arith.cmpi eq, %c8_i32, %c0_i32 : i32
    %c1_i32 = arith.constant 1 : i32
    %109 = arith.select %108, %c1_i32, %c8_i32 : i32
    %110 = vector.broadcast %109 : i32 to vector<1x64x1xi32>
    %111 = arith.remsi %107, %110 : vector<1x64x1xi32>
    %c0_i32_81 = arith.constant 0 : i32
    %112 = vector.broadcast %c0_i32_81 : i32 to vector<1x64x1xi32>
    %113 = arith.cmpi ne, %111, %112 : vector<1x64x1xi32>
    %c0_i32_82 = arith.constant 0 : i32
    %114 = vector.broadcast %c0_i32_82 : i32 to vector<1x64x1xi32>
    %115 = arith.cmpi slt, %111, %114 : vector<1x64x1xi32>
    %c0_i32_83 = arith.constant 0 : i32
    %116 = arith.cmpi slt, %109, %c0_i32_83 : i32
    %117 = vector.broadcast %116 : i1 to vector<1x64x1xi1>
    %118 = vector.broadcast %117 : vector<1x64x1xi1> to vector<1x64x1xi1>
    %119 = arith.xori %115, %118 : vector<1x64x1xi1>
    %120 = arith.andi %119, %113 : vector<1x64x1xi1>
    %121 = vector.broadcast %109 : i32 to vector<1x64x1xi32>
    %122 = arith.addi %111, %121 : vector<1x64x1xi32>
    %123 = arith.select %120, %122, %111 : vector<1x64x1xi1>, vector<1x64x1xi32>
    %c7_i32 = arith.constant 7 : i32
    %124 = vector.broadcast %c7_i32 : i32 to vector<1x64x1xi32>
    %125 = arith.cmpi ne, %123, %124 : vector<1x64x1xi32>
    %126 = arith.extui %125 : vector<1x64x1xi1> to vector<1x64x1xi32>
    %127 = arith.sitofp %126 : vector<1x64x1xi32> to vector<1x64x1xf32>
    %128 = arith.truncf %127 : vector<1x64x1xf32> to vector<1x64x1xbf16>
    %129 = vector.broadcast %128 : vector<1x64x1xbf16> to vector<2x64x128xbf16>
    %130 = arith.mulf %103, %129 : vector<2x64x128xbf16>
    %c0_i32_84 = arith.constant 0 : i32
    %131 = vector.broadcast %c0_i32_84 : i32 to vector<1x64x1xi32>
    %132 = arith.cmpi ne, %123, %131 : vector<1x64x1xi32>
    %133 = arith.extui %132 : vector<1x64x1xi1> to vector<1x64x1xi32>
    %134 = arith.sitofp %133 : vector<1x64x1xi32> to vector<1x64x1xf32>
    %135 = arith.truncf %134 : vector<1x64x1xf32> to vector<1x64x1xbf16>
    %136 = vector.broadcast %135 : vector<1x64x1xbf16> to vector<2x64x128xbf16>
    %137 = arith.mulf %103, %136 : vector<2x64x128xbf16>
    %c1_85 = arith.constant 1 : index
    %c0_86 = arith.constant 0 : index
    %c8_87 = arith.constant 8 : index
    %c0_88 = arith.constant 0 : index
    %138 = vector.load %arg16[%c1_85, %c0_86, %c8_87, %c0_88] : memref<3x2x80x128xbf16, #tpu.memory_space<vmem>>, vector<1x2x64x128xbf16>
    %139 = vector.shape_cast %138 : vector<1x2x64x128xbf16> to vector<2x64x128xbf16>
    %140 = vector.shape_cast %103 : vector<2x64x128xbf16> to vector<1x2x64x128xbf16>
    tpu.vector_store %arg16[%c1_85, %c0_86, %c8_87, %c0_88], %140 {strides = array<i32>} : memref<3x2x80x128xbf16, #tpu.memory_space<vmem>>, vector<1x2x64x128xbf16>,
    %c0_89 = arith.constant 0 : index
    %c0_90 = arith.constant 0 : index
    %c9 = arith.constant 9 : index
    %c0_91 = arith.constant 0 : index
    %141 = vector.load %arg16[%c0_89, %c0_90, %c9, %c0_91] : memref<3x2x80x128xbf16, #tpu.memory_space<vmem>>, vector<1x2x64x128xbf16>
    %142 = vector.shape_cast %141 : vector<1x2x64x128xbf16> to vector<2x64x128xbf16>
    %143 = vector.shape_cast %130 : vector<2x64x128xbf16> to vector<1x2x64x128xbf16>
    tpu.vector_store %arg16[%c0_89, %c0_90, %c9, %c0_91], %143 {strides = array<i32>} : memref<3x2x80x128xbf16, #tpu.memory_space<vmem>>, vector<1x2x64x128xbf16>,
    %c2_92 = arith.constant 2 : index
    %c0_93 = arith.constant 0 : index
    %c7_94 = arith.constant 7 : index
    %c0_95 = arith.constant 0 : index
    %144 = vector.load %arg16[%c2_92, %c0_93, %c7_94, %c0_95] : memref<3x2x80x128xbf16, #tpu.memory_space<vmem>>, vector<1x2x64x128xbf16>
    %145 = vector.shape_cast %144 : vector<1x2x64x128xbf16> to vector<2x64x128xbf16>
    %146 = vector.shape_cast %137 : vector<2x64x128xbf16> to vector<1x2x64x128xbf16>
    tpu.vector_store %arg16[%c2_92, %c0_93, %c7_94, %c0_95], %146 {strides = array<i32>} : memref<3x2x80x128xbf16, #tpu.memory_space<vmem>>, vector<1x2x64x128xbf16>,
    %c0_96 = arith.constant 0 : index
    %c0_97 = arith.constant 0 : index
    %c0_98 = arith.constant 0 : index
    %c0_99 = arith.constant 0 : index
    %147 = vector.load %arg16[%c0_96, %c0_97, %c0_98, %c0_99] : memref<3x2x80x128xbf16, #tpu.memory_space<vmem>>, vector<1x2x80x128xbf16>
    %148 = vector.shape_cast %147 : vector<1x2x80x128xbf16> to vector<2x80x128xbf16>
    %149 = vector.shape_cast %148 : vector<2x80x128xbf16> to vector<160x128xbf16>
    %c0_100 = arith.constant 0 : index
    %c0_101 = arith.constant 0 : index
    %c0_102 = arith.constant 0 : index
    %150 = vector.load %arg4[%c0_100, %c0_101, %c0_102] : memref<9x128x128xbf16, #tpu.memory_space<vmem>>, vector<1x128x128xbf16>
    %151 = vector.shape_cast %150 : vector<1x128x128xbf16> to vector<128x128xbf16>
    %cst_103 = arith.constant dense<0.000000e+00> : vector<160x128xf32>
    %152 = tpu.matmul %149, %151, %cst_103 {dimension_numbers = #tpu.dot_dimension_numbers<[1], [0], [0], [1], [0, 0, 1, 1], [], []>} : vector<160x128xbf16>, vector<128x128xbf16>, vector<160x128xf32> -> vector<160x128xf32>
    %153 = vector.shape_cast %152 : vector<160x128xf32> to vector<2x80x128xf32>
    %154 = vector.extract_strided_slice %153 {offsets = [0, 0, 0], sizes = [2, 64, 128], strides = [1, 1, 1]} : vector<2x80x128xf32> to vector<2x64x128xf32>
    %c3_104 = arith.constant 3 : index
    %c0_105 = arith.constant 0 : index
    %c0_106 = arith.constant 0 : index
    %155 = vector.load %arg4[%c3_104, %c0_105, %c0_106] : memref<9x128x128xbf16, #tpu.memory_space<vmem>>, vector<1x128x128xbf16>
    %156 = vector.shape_cast %155 : vector<1x128x128xbf16> to vector<128x128xbf16>
    %cst_107 = arith.constant dense<0.000000e+00> : vector<160x128xf32>
    %157 = tpu.matmul %149, %156, %cst_107 {dimension_numbers = #tpu.dot_dimension_numbers<[1], [0], [0], [1], [0, 0, 1, 1], [], []>} : vector<160x128xbf16>, vector<128x128xbf16>, vector<160x128xf32> -> vector<160x128xf32>
    %158 = vector.shape_cast %157 : vector<160x128xf32> to vector<2x80x128xf32>
    %159 = vector.extract_strided_slice %158 {offsets = [0, 8, 0], sizes = [2, 64, 128], strides = [1, 1, 1]} : vector<2x80x128xf32> to vector<2x64x128xf32>
    %160 = arith.addf %154, %159 : vector<2x64x128xf32>
    %c6_108 = arith.constant 6 : index
    %c0_109 = arith.constant 0 : index
    %c0_110 = arith.constant 0 : index
    %161 = vector.load %arg4[%c6_108, %c0_109, %c0_110] : memref<9x128x128xbf16, #tpu.memory_space<vmem>>, vector<1x128x128xbf16>
    %162 = vector.shape_cast %161 : vector<1x128x128xbf16> to vector<128x128xbf16>
    %cst_111 = arith.constant dense<0.000000e+00> : vector<160x128xf32>
    %163 = tpu.matmul %149, %162, %cst_111 {dimension_numbers = #tpu.dot_dimension_numbers<[1], [0], [0], [1], [0, 0, 1, 1], [], []>} : vector<160x128xbf16>, vector<128x128xbf16>, vector<160x128xf32> -> vector<160x128xf32>
    %164 = vector.shape_cast %163 : vector<160x128xf32> to vector<2x80x128xf32>
    %165 = vector.extract_strided_slice %164 {offsets = [0, 16, 0], sizes = [2, 64, 128], strides = [1, 1, 1]} : vector<2x80x128xf32> to vector<2x64x128xf32>
    %166 = arith.addf %160, %165 : vector<2x64x128xf32>
    %c1_112 = arith.constant 1 : index
    %c0_113 = arith.constant 0 : index
    %c0_114 = arith.constant 0 : index
    %c0_115 = arith.constant 0 : index
    %167 = vector.load %arg16[%c1_112, %c0_113, %c0_114, %c0_115] : memref<3x2x80x128xbf16, #tpu.memory_space<vmem>>, vector<1x2x80x128xbf16>
    %168 = vector.shape_cast %167 : vector<1x2x80x128xbf16> to vector<2x80x128xbf16>
    %169 = vector.shape_cast %168 : vector<2x80x128xbf16> to vector<160x128xbf16>
    %c1_116 = arith.constant 1 : index
    %c0_117 = arith.constant 0 : index
    %c0_118 = arith.constant 0 : index
    %170 = vector.load %arg4[%c1_116, %c0_117, %c0_118] : memref<9x128x128xbf16, #tpu.memory_space<vmem>>, vector<1x128x128xbf16>
    %171 = vector.shape_cast %170 : vector<1x128x128xbf16> to vector<128x128xbf16>
    %cst_119 = arith.constant dense<0.000000e+00> : vector<160x128xf32>
    %172 = tpu.matmul %169, %171, %cst_119 {dimension_numbers = #tpu.dot_dimension_numbers<[1], [0], [0], [1], [0, 0, 1, 1], [], []>} : vector<160x128xbf16>, vector<128x128xbf16>, vector<160x128xf32> -> vector<160x128xf32>
    %173 = vector.shape_cast %172 : vector<160x128xf32> to vector<2x80x128xf32>
    %174 = vector.extract_strided_slice %173 {offsets = [0, 0, 0], sizes = [2, 64, 128], strides = [1, 1, 1]} : vector<2x80x128xf32> to vector<2x64x128xf32>
    %175 = arith.addf %166, %174 : vector<2x64x128xf32>
    %c4_120 = arith.constant 4 : index
    %c0_121 = arith.constant 0 : index
    %c0_122 = arith.constant 0 : index
    %176 = vector.load %arg4[%c4_120, %c0_121, %c0_122] : memref<9x128x128xbf16, #tpu.memory_space<vmem>>, vector<1x128x128xbf16>
    %177 = vector.shape_cast %176 : vector<1x128x128xbf16> to vector<128x128xbf16>
    %cst_123 = arith.constant dense<0.000000e+00> : vector<160x128xf32>
    %178 = tpu.matmul %169, %177, %cst_123 {dimension_numbers = #tpu.dot_dimension_numbers<[1], [0], [0], [1], [0, 0, 1, 1], [], []>} : vector<160x128xbf16>, vector<128x128xbf16>, vector<160x128xf32> -> vector<160x128xf32>
    %179 = vector.shape_cast %178 : vector<160x128xf32> to vector<2x80x128xf32>
    %180 = vector.extract_strided_slice %179 {offsets = [0, 8, 0], sizes = [2, 64, 128], strides = [1, 1, 1]} : vector<2x80x128xf32> to vector<2x64x128xf32>
    %181 = arith.addf %175, %180 : vector<2x64x128xf32>
    %c7_124 = arith.constant 7 : index
    %c0_125 = arith.constant 0 : index
    %c0_126 = arith.constant 0 : index
    %182 = vector.load %arg4[%c7_124, %c0_125, %c0_126] : memref<9x128x128xbf16, #tpu.memory_space<vmem>>, vector<1x128x128xbf16>
    %183 = vector.shape_cast %182 : vector<1x128x128xbf16> to vector<128x128xbf16>
    %cst_127 = arith.constant dense<0.000000e+00> : vector<160x128xf32>
    %184 = tpu.matmul %169, %183, %cst_127 {dimension_numbers = #tpu.dot_dimension_numbers<[1], [0], [0], [1], [0, 0, 1, 1], [], []>} : vector<160x128xbf16>, vector<128x128xbf16>, vector<160x128xf32> -> vector<160x128xf32>
    %185 = vector.shape_cast %184 : vector<160x128xf32> to vector<2x80x128xf32>
    %186 = vector.extract_strided_slice %185 {offsets = [0, 16, 0], sizes = [2, 64, 128], strides = [1, 1, 1]} : vector<2x80x128xf32> to vector<2x64x128xf32>
    %187 = arith.addf %181, %186 : vector<2x64x128xf32>
    %c2_128 = arith.constant 2 : index
    %c0_129 = arith.constant 0 : index
    %c0_130 = arith.constant 0 : index
    %c0_131 = arith.constant 0 : index
    %188 = vector.load %arg16[%c2_128, %c0_129, %c0_130, %c0_131] : memref<3x2x80x128xbf16, #tpu.memory_space<vmem>>, vector<1x2x80x128xbf16>
    %189 = vector.shape_cast %188 : vector<1x2x80x128xbf16> to vector<2x80x128xbf16>
    %190 = vector.shape_cast %189 : vector<2x80x128xbf16> to vector<160x128xbf16>
    %c2_132 = arith.constant 2 : index
    %c0_133 = arith.constant 0 : index
    %c0_134 = arith.constant 0 : index
    %191 = vector.load %arg4[%c2_132, %c0_133, %c0_134] : memref<9x128x128xbf16, #tpu.memory_space<vmem>>, vector<1x128x128xbf16>
    %192 = vector.shape_cast %191 : vector<1x128x128xbf16> to vector<128x128xbf16>
    %cst_135 = arith.constant dense<0.000000e+00> : vector<160x128xf32>
    %193 = tpu.matmul %190, %192, %cst_135 {dimension_numbers = #tpu.dot_dimension_numbers<[1], [0], [0], [1], [0, 0, 1, 1], [], []>} : vector<160x128xbf16>, vector<128x128xbf16>, vector<160x128xf32> -> vector<160x128xf32>
    %194 = vector.shape_cast %193 : vector<160x128xf32> to vector<2x80x128xf32>
    %195 = vector.extract_strided_slice %194 {offsets = [0, 0, 0], sizes = [2, 64, 128], strides = [1, 1, 1]} : vector<2x80x128xf32> to vector<2x64x128xf32>
    %196 = arith.addf %187, %195 : vector<2x64x128xf32>
    %c5_136 = arith.constant 5 : index
    %c0_137 = arith.constant 0 : index
    %c0_138 = arith.constant 0 : index
    %197 = vector.load %arg4[%c5_136, %c0_137, %c0_138] : memref<9x128x128xbf16, #tpu.memory_space<vmem>>, vector<1x128x128xbf16>
    %198 = vector.shape_cast %197 : vector<1x128x128xbf16> to vector<128x128xbf16>
    %cst_139 = arith.constant dense<0.000000e+00> : vector<160x128xf32>
    %199 = tpu.matmul %190, %198, %cst_139 {dimension_numbers = #tpu.dot_dimension_numbers<[1], [0], [0], [1], [0, 0, 1, 1], [], []>} : vector<160x128xbf16>, vector<128x128xbf16>, vector<160x128xf32> -> vector<160x128xf32>
    %200 = vector.shape_cast %199 : vector<160x128xf32> to vector<2x80x128xf32>
    %201 = vector.extract_strided_slice %200 {offsets = [0, 8, 0], sizes = [2, 64, 128], strides = [1, 1, 1]} : vector<2x80x128xf32> to vector<2x64x128xf32>
    %202 = arith.addf %196, %201 : vector<2x64x128xf32>
    %c8_140 = arith.constant 8 : index
    %c0_141 = arith.constant 0 : index
    %c0_142 = arith.constant 0 : index
    %203 = vector.load %arg4[%c8_140, %c0_141, %c0_142] : memref<9x128x128xbf16, #tpu.memory_space<vmem>>, vector<1x128x128xbf16>
    %204 = vector.shape_cast %203 : vector<1x128x128xbf16> to vector<128x128xbf16>
    %cst_143 = arith.constant dense<0.000000e+00> : vector<160x128xf32>
    %205 = tpu.matmul %190, %204, %cst_143 {dimension_numbers = #tpu.dot_dimension_numbers<[1], [0], [0], [1], [0, 0, 1, 1], [], []>} : vector<160x128xbf16>, vector<128x128xbf16>, vector<160x128xf32> -> vector<160x128xf32>
    %206 = vector.shape_cast %205 : vector<160x128xf32> to vector<2x80x128xf32>
    %207 = vector.extract_strided_slice %206 {offsets = [0, 16, 0], sizes = [2, 64, 128], strides = [1, 1, 1]} : vector<2x80x128xf32> to vector<2x64x128xf32>
    %208 = arith.addf %202, %207 : vector<2x64x128xf32>
    %c4_144 = arith.constant 4 : index
    %c0_145 = arith.constant 0 : index
    %c0_146 = arith.constant 0 : index
    %c0_147 = arith.constant 0 : index
    %209 = vector.load %arg2[%c4_144, %c0_145, %c0_146, %c0_147] : memref<6x2x72x128xbf16, #tpu.memory_space<vmem>>, vector<1x2x72x128xbf16>
    %210 = vector.shape_cast %209 : vector<1x2x72x128xbf16> to vector<2x72x128xbf16>
    %211 = vector.shape_cast %210 : vector<2x72x128xbf16> to vector<144x128xbf16>
    %c0_148 = arith.constant 0 : index
    %c0_149 = arith.constant 0 : index
    %212 = vector.load %arg5[%c0_148, %c0_149] : memref<128x128xbf16, #tpu.memory_space<vmem>>, vector<128x128xbf16>
    %cst_150 = arith.constant dense<0.000000e+00> : vector<144x128xf32>
    %213 = tpu.matmul %211, %212, %cst_150 {dimension_numbers = #tpu.dot_dimension_numbers<[1], [0], [0], [1], [0, 0, 1, 1], [], []>} : vector<144x128xbf16>, vector<128x128xbf16>, vector<144x128xf32> -> vector<144x128xf32>
    %214 = vector.shape_cast %213 : vector<144x128xf32> to vector<2x72x128xf32>
    %215 = vector.extract_strided_slice %214 {offsets = [0, 0, 0], sizes = [2, 64, 128], strides = [1, 1, 1]} : vector<2x72x128xf32> to vector<2x64x128xf32>
    %c0_151 = arith.constant 0 : index
    %c0_152 = arith.constant 0 : index
    %c0_153 = arith.constant 0 : index
    %216 = vector.load %arg9[%c0_151, %c0_152, %c0_153] : memref<2x64x128xf32, #tpu.memory_space<vmem>>, vector<2x64x128xf32>
    %217 = vector.broadcast %2 : f32 to vector<2x64x128xf32>
    %218 = arith.mulf %217, %216 : vector<2x64x128xf32>
    %219 = vector.broadcast %5 : f32 to vector<2x64x128xf32>
    %220 = arith.mulf %219, %208 : vector<2x64x128xf32>
    %221 = arith.addf %218, %220 : vector<2x64x128xf32>
    %222 = arith.addf %221, %215 : vector<2x64x128xf32>
    %223 = vector.broadcast %3 : f32 to vector<2x64x128xf32>
    %224 = arith.divf %222, %223 : vector<2x64x128xf32>
    %cst_154 = arith.constant 1.000000e+00 : f32
    %225 = vector.broadcast %cst_154 : f32 to vector<2x64x128xf32>
    %226 = arith.subf %224, %225 : vector<2x64x128xf32>
    %cst_155 = arith.constant 0.000000e+00 : f32
    %227 = vector.broadcast %cst_155 : f32 to vector<2x64x128xf32>
    %228 = arith.cmpf ogt, %226, %227 : vector<2x64x128xf32>
    %229 = arith.extui %228 : vector<2x64x128xi1> to vector<2x64x128xi32>
    %230 = arith.sitofp %229 : vector<2x64x128xi32> to vector<2x64x128xf32>
    %231 = vector.broadcast %3 : f32 to vector<2x64x128xf32>
    %232 = arith.mulf %231, %230 : vector<2x64x128xf32>
    %233 = arith.subf %222, %232 : vector<2x64x128xf32>
    %c0_156 = arith.constant 0 : index
    %c0_157 = arith.constant 0 : index
    %c0_158 = arith.constant 0 : index
    %234 = vector.load %arg14[%c0_156, %c0_157, %c0_158] : memref<2x64x128xf32, #tpu.memory_space<vmem>>, vector<2x64x128xf32>
    tpu.vector_store %arg14[%c0_156, %c0_157, %c0_158], %233 {strides = array<i32>} : memref<2x64x128xf32, #tpu.memory_space<vmem>>, vector<2x64x128xf32>,
    %c0_159 = arith.constant 0 : index
    %c0_160 = arith.constant 0 : index
    %c0_161 = arith.constant 0 : index
    %235 = vector.load %arg10[%c0_159, %c0_160, %c0_161] : memref<2x64x128xbf16, #tpu.memory_space<vmem>>, vector<2x64x128xbf16>
    %236 = arith.extf %235 : vector<2x64x128xbf16> to vector<2x64x128xf32>
    %237 = vector.broadcast %4 : f32 to vector<2x64x128xf32>
    %238 = arith.select %228, %237, %236 : vector<2x64x128xi1>, vector<2x64x128xf32>
    %239 = arith.truncf %238 : vector<2x64x128xf32> to vector<2x64x128xbf16>
    %c0_162 = arith.constant 0 : index
    %c0_163 = arith.constant 0 : index
    %c0_164 = arith.constant 0 : index
    %240 = vector.load %arg15[%c0_162, %c0_163, %c0_164] : memref<2x64x128xbf16, #tpu.memory_space<vmem>>, vector<2x64x128xbf16>
    tpu.vector_store %arg15[%c0_162, %c0_163, %c0_164], %239 {strides = array<i32>} : memref<2x64x128xbf16, #tpu.memory_space<vmem>>, vector<2x64x128xbf16>,
    %241 = arith.extui %228 : vector<2x64x128xi1> to vector<2x64x128xi32>
    %242 = arith.sitofp %241 : vector<2x64x128xi32> to vector<2x64x128xf32>
    %243 = arith.truncf %242 : vector<2x64x128xf32> to vector<2x64x128xbf16>
    %c0_165 = arith.constant 0 : index
    %c0_166 = arith.constant 0 : index
    %c0_167 = arith.constant 0 : index
    %244 = vector.load %arg11[%c0_165, %c0_166, %c0_167] : memref<2x64x128xbf16, #tpu.memory_space<vmem>>, vector<2x64x128xbf16>
    tpu.vector_store %arg11[%c0_165, %c0_166, %c0_167], %243 {strides = array<i32>} : memref<2x64x128xbf16, #tpu.memory_space<vmem>>, vector<2x64x128xbf16>,
    return
  }
  func.func @transform_0(%arg0: i32) -> i32 {
    %c0_i32 = arith.constant 0 : i32
    %c0_i32_0 = arith.constant 0 : i32
    return %c0_i32 : i32
  }
  func.func @transform_1(%arg0: i32) -> (i32, i32, i32, i32) {
    %c0_i32 = arith.constant 0 : i32
    %c0_i32_0 = arith.constant 0 : i32
    %c0_i32_1 = arith.constant 0 : i32
    %c0_i32_2 = arith.constant 0 : i32
    return %c0_i32, %arg0, %c0_i32_0, %c0_i32_1 : i32, i32, i32, i32
  }
  func.func @transform_2(%arg0: i32) -> (i32, i32, i32) {
    %c0_i32 = arith.constant 0 : i32
    %c0_i32_0 = arith.constant 0 : i32
    %c0_i32_1 = arith.constant 0 : i32
    %c0_i32_2 = arith.constant 0 : i32
    return %c0_i32, %c0_i32_0, %c0_i32_1 : i32, i32, i32
  }
  func.func @transform_3(%arg0: i32) -> (i32, i32, i32) {
    %c0_i32 = arith.constant 0 : i32
    %c0_i32_0 = arith.constant 0 : i32
    %c0_i32_1 = arith.constant 0 : i32
    %c0_i32_2 = arith.constant 0 : i32
    return %c0_i32, %c0_i32_0, %c0_i32_1 : i32, i32, i32
  }
  func.func @transform_4(%arg0: i32) -> (i32, i32) {
    %c0_i32 = arith.constant 0 : i32
    %c0_i32_0 = arith.constant 0 : i32
    %c0_i32_1 = arith.constant 0 : i32
    return %c0_i32, %c0_i32_0 : i32, i32
  }
  func.func @transform_5(%arg0: i32) -> (i32, i32, i32) {
    %c0_i32 = arith.constant 0 : i32
    %c0_i32_0 = arith.constant 0 : i32
    %c0_i32_1 = arith.constant 0 : i32
    return %arg0, %c0_i32, %c0_i32_0 : i32, i32, i32
  }
  func.func @transform_6(%arg0: i32) -> (i32, i32, i32) {
    %c0_i32 = arith.constant 0 : i32
    %c0_i32_0 = arith.constant 0 : i32
    %c0_i32_1 = arith.constant 0 : i32
    return %arg0, %c0_i32, %c0_i32_0 : i32, i32, i32
  }
  func.func @transform_7(%arg0: i32) -> (i32, i32, i32) {
    %c0_i32 = arith.constant 0 : i32
    %c0_i32_0 = arith.constant 0 : i32
    %c0_i32_1 = arith.constant 0 : i32
    return %arg0, %c0_i32, %c0_i32_0 : i32, i32, i32
  }
  func.func @transform_8(%arg0: i32) -> (i32, i32, i32) {
    %c0_i32 = arith.constant 0 : i32
    %c0_i32_0 = arith.constant 0 : i32
    %c0_i32_1 = arith.constant 0 : i32
    return %arg0, %c0_i32, %c0_i32_0 : i32, i32, i32
  }
  func.func @transform_9(%arg0: i32) -> (i32, i32, i32) {
    %c0_i32 = arith.constant 0 : i32
    %c0_i32_0 = arith.constant 0 : i32
    %c0_i32_1 = arith.constant 0 : i32
    return %arg0, %c0_i32, %c0_i32_0 : i32, i32, i32
  }
  func.func @transform_10(%arg0: i32) -> (i32, i32, i32) {
    %c0_i32 = arith.constant 0 : i32
    %c0_i32_0 = arith.constant 0 : i32
    %c0_i32_1 = arith.constant 0 : i32
    return %arg0, %c0_i32, %c0_i32_0 : i32, i32, i32
  }
  func.func @transform_11(%arg0: i32) -> (i32, i32, i32) {
    %c0_i32 = arith.constant 0 : i32
    %c0_i32_0 = arith.constant 0 : i32
    %c0_i32_1 = arith.constant 0 : i32
    return %arg0, %c0_i32, %c0_i32_0 : i32, i32, i32
  }
  func.func @transform_12(%arg0: i32) -> (i32, i32, i32) {
    %c0_i32 = arith.constant 0 : i32
    %c0_i32_0 = arith.constant 0 : i32
    %c0_i32_1 = arith.constant 0 : i32
    return %arg0, %c0_i32, %c0_i32_0 : i32, i32, i32
  }
  func.func @transform_13(%arg0: i32) -> (i32, i32, i32) {
    %c0_i32 = arith.constant 0 : i32
    %c0_i32_0 = arith.constant 0 : i32
    %c0_i32_1 = arith.constant 0 : i32
    return %arg0, %c0_i32, %c0_i32_0 : i32, i32, i32
  }
  func.func @transform_14(%arg0: i32) -> (i32, i32, i32) {
    %c0_i32 = arith.constant 0 : i32
    %c0_i32_0 = arith.constant 0 : i32
    %c0_i32_1 = arith.constant 0 : i32
    return %arg0, %c0_i32, %c0_i32_0 : i32, i32, i32
  }
}

</mosaic_0001>

<llo_original>
// kernel: tpu_custom_call.1
$region0: #{tpu_custom_call.1}
  #allocation0 [shape = 'u32[]', space=smem, size = 0x4, offset = 0x4, fixed_abs, tag = 'smem constant byte address 0x4 - core index']
  #allocation1 [shape = 'u32[144,128]{1,0:T(1,128)}', space=vmem, size = 0x12000, scoped, tag = 'internal scratch']
  #allocation2 [shape = 'bf16[3,2,80,128]{3,2,1,0:T(8,128)(2,1)}', space=vmem, size = 0x1e000, scoped, tag = 'scratch operand']
  %s0 = inlined_call_operand.vmem [shape: f32[8], index: 0, kind: input, shape index: {}]
  %s1 = inlined_call_operand.hbm [shape: bf16[6,2,72,128], index: 1, kind: input, shape index: {}]
  %s2 = inlined_call_operand.vmem [shape: bf16[9,128,128], index: 2, kind: input, shape index: {}]
  %s3 = inlined_call_operand.hbm [shape: bf16[9,128,128], index: 3, kind: input, shape index: {}]
  %s4 = inlined_call_operand.vmem [shape: bf16[128,128], index: 4, kind: input, shape index: {}]
  %s5 = inlined_call_operand.vmem [shape: bf16[2,64,128], index: 5, kind: input, shape index: {}]
  %s6 = inlined_call_operand.hbm [shape: f32[2,64,128], index: 6, kind: input, shape index: {}, may-alias: {6,11}]
  %s7 = inlined_call_operand.hbm [shape: bf16[2,64,128], index: 7, kind: input, shape index: {}, may-alias: {7,12}]
  %s8 = inlined_call_operand.hbm [shape: f32[2,64,128], index: 8, kind: input, shape index: {}, may-alias: {8,13}]
  %s9 = inlined_call_operand.hbm [shape: bf16[2,64,128], index: 9, kind: input, shape index: {}, may-alias: {9,14}]
  %s10 = inlined_call_operand.hbm [shape: bf16[2,64,128], index: 10, kind: output, shape index: {0}]
  %s11 = inlined_call_operand.hbm [shape: f32[2,64,128], index: 11, kind: output, shape index: {1}, may-alias: {6,11}]
  %s12 = inlined_call_operand.hbm [shape: bf16[2,64,128], index: 12, kind: output, shape index: {2}, may-alias: {7,12}]
  %s13 = inlined_call_operand.hbm [shape: f32[2,64,128], index: 13, kind: output, shape index: {3}, may-alias: {8,13}]
  %s14 = inlined_call_operand.hbm [shape: bf16[2,64,128], index: 14, kind: output, shape index: {4}, may-alias: {9,14}]
  %15 = xla_tuple %s10, %s11, %s12, %s13, %s14
  %s16 = sld [smem:[#allocation0]]
  $region110: #{tpu_custom_call.1} parent=0
    _
  %s18 = ssub.s32 1, %s16
  %s19 = scalar_select 0, %s18, %s16
  $region1: #{tpu_custom_call.1} parent=0
    #allocation3 [shape = 'u8[512]{0}', space=smem, size = 0x200, scoped, tag = 'input window, operand 0, single buffered']
    #allocation4 [shape = 's32[1]{0}', space=sflag, size = 0x4, scoped, tag = 'scoped memory for tpu_custom_call.1']
    #allocation5 [shape = 's32[1]{0}', space=sflag, size = 0x4, scoped, tag = 'scoped memory for tpu_custom_call.1']
    #allocation6 [shape = 's32[1]{0}', space=sflag, size = 0x4, scoped, tag = 'scoped memory for tpu_custom_call.1']
    #allocation7 [shape = 'u8[221184]{0}', space=vmem, size = 0x36000, scoped, tag = 'input window, operand 1, single buffered']
    #allocation8 [shape = 'u8[294912]{0}', space=vmem, size = 0x48000, scoped, tag = 'input window, operand 3, single buffered']
    #allocation9 [shape = 's32[1]{0}', space=sflag, size = 0x4, scoped, tag = 'scoped memory for tpu_custom_call.1']
    #allocation10 [shape = 'u8[65536]{0}', space=vmem, size = 0x10000, scoped, tag = 'input window, operand 6, single buffered']
    #allocation11 [shape = 'u8[32768]{0}', space=vmem, size = 0x8000, scoped, tag = 'input window, operand 7, single buffered']
    #allocation12 [shape = 's32[1]{0}', space=sflag, size = 0x4, scoped, tag = 'scoped memory for tpu_custom_call.1']
    #allocation13 [shape = 'u8[65536]{0}', space=vmem, size = 0x10000, scoped, tag = 'input window, operand 8, single buffered']
    #allocation14 [shape = 'u8[32768]{0}', space=vmem, size = 0x8000, scoped, tag = 'input window, operand 9, single buffered']
    #allocation15 [shape = 's32[1]{0}', space=sflag, size = 0x4, scoped, tag = 'scoped memory for tpu_custom_call.1']
    #allocation16 [shape = 'u8[32768]{0}', space=vmem, size = 0x8000, scoped, tag = 'output window, operand 0, single buffered']
    #allocation17 [shape = 'u8[65536]{0}', space=vmem, size = 0x10000, scoped, tag = 'output window, operand 1, single buffered']
    #allocation18 [shape = 's32[1]{0}', space=sflag, size = 0x4, scoped, tag = 'scoped memory for tpu_custom_call.1']
    #allocation19 [shape = 'u8[32768]{0}', space=vmem, size = 0x8000, scoped, tag = 'output window, operand 2, single buffered']
    #allocation20 [shape = 'u8[65536]{0}', space=vmem, size = 0x10000, scoped, tag = 'output window, operand 3, single buffered']
    #allocation21 [shape = 's32[1]{0}', space=sflag, size = 0x4, scoped, tag = 'scoped memory for tpu_custom_call.1']
    #allocation22 [shape = 'u8[32768]{0}', space=vmem, size = 0x8000, scoped, tag = 'output window, operand 4, single buffered']
    %20 = vsyncpa [#allocation6], 0
    %21 = vsyncpa [#allocation4], 0
    %22 = vsyncpa [#allocation9], 0
    %23 = vsyncpa [#allocation12], 0
    %24 = vsyncpa [#allocation15], 0
    %25 = vsyncpa [#allocation5], 0
    %26 = vsyncpa [#allocation18], 0
    %27 = vsyncpa [#allocation21], 0
    // Predicated region
    $region2: #{tpu_custom_call.1} parent=1 // pred_check
      _
    $region3: #{tpu_custom_call.1} parent=1 // pred_check_branch
      %29 = sbr.rel (0) target = $region5
    $region4: #{tpu_custom_call.1} parent=1 // pred_region
      %s31 = ssub.s32 16, 16
      %32 = vsyncadd [#allocation6], %s31
      %s34 = sshll.u32 %s0, 4
      %s35 = int_to_ptr.vmem [resolvable:$true] %s34
      %37 = dma.vmem_to_smem %s35, 16, [#allocation3], [#allocation6]
    $region5: #{tpu_custom_call.1} parent=1 // pred_fallthru
      _
    // Predicated region
    $region6: #{tpu_custom_call.1} parent=1 // pred_check
      _
    $region7: #{tpu_custom_call.1} parent=1 // pred_check_branch
      %39 = sbr.rel (0) target = $region9
    $region8: #{tpu_custom_call.1} parent=1 // pred_region
      %s41 = ssub.s32 6912, 6912
      %42 = vsyncadd [#allocation4], %s41
      %s43 = sshll.u32 [#allocation7], 4
      %s44 = int_to_ptr.vmem [resolvable:$true] %s43
      %49 = dma.hbm_to_vmem [thread:$0]  %s1, 6912, %s44, [#allocation4], 64, 64, 4
    $region9: #{tpu_custom_call.1} parent=1 // pred_fallthru
      _
    // Predicated region
    $region10: #{tpu_custom_call.1} parent=1 // pred_check
      _
    $region11: #{tpu_custom_call.1} parent=1 // pred_check_branch
      %51 = sbr.rel (0) target = $region13
    $region12: #{tpu_custom_call.1} parent=1 // pred_region
      _
    $region13: #{tpu_custom_call.1} parent=1 // pred_fallthru
      _
    // Predicated region
    $region14: #{tpu_custom_call.1} parent=1 // pred_check
      _
    $region15: #{tpu_custom_call.1} parent=1 // pred_check_branch
      %53 = sbr.rel (0) target = $region17
    $region16: #{tpu_custom_call.1} parent=1 // pred_region
      %s55 = ssub.s32 9216, 9216
      %56 = vsyncadd [#allocation9], %s55
      %s57 = sshll.u32 [#allocation8], 4
      %s58 = int_to_ptr.vmem [resolvable:$true] %s57
      %63 = dma.hbm_to_vmem [thread:$0]  %s3, 9216, %s58, [#allocation9], 64, 64, 4
    $region17: #{tpu_custom_call.1} parent=1 // pred_fallthru
      _
    // Predicated region
    $region18: #{tpu_custom_call.1} parent=1 // pred_check
      _
    $region19: #{tpu_custom_call.1} parent=1 // pred_check_branch
      %65 = sbr.rel (0) target = $region21
    $region20: #{tpu_custom_call.1} parent=1 // pred_region
      _
    $region21: #{tpu_custom_call.1} parent=1 // pred_fallthru
      _
    // Predicated region
    $region22: #{tpu_custom_call.1} parent=1 // pred_check
      _
    $region23: #{tpu_custom_call.1} parent=1 // pred_check_branch
      %67 = sbr.rel (0) target = $region25
    $region24: #{tpu_custom_call.1} parent=1 // pred_region
      _
    $region25: #{tpu_custom_call.1} parent=1 // pred_fallthru
      _
    // Predicated region
    $region26: #{tpu_custom_call.1} parent=1 // pred_check
      _
    $region27: #{tpu_custom_call.1} parent=1 // pred_check_branch
      %69 = sbr.rel (0) target = $region29
    $region28: #{tpu_custom_call.1} parent=1 // pred_region
      %s71 = ssub.s32 2048, 2048
      %72 = vsyncadd [#allocation9], %s71
      %s73 = sshll.u32 [#allocation10], 4
      %s74 = int_to_ptr.vmem [resolvable:$true] %s73
      %79 = dma.hbm_to_vmem [thread:$0]  %s6, 2048, %s74, [#allocation9], 128, 128, 8
    $region29: #{tpu_custom_call.1} parent=1 // pred_fallthru
      _
    // Predicated region
    $region30: #{tpu_custom_call.1} parent=1 // pred_check
      _
    $region31: #{tpu_custom_call.1} parent=1 // pred_check_branch
      %81 = sbr.rel (0) target = $region33
    $region32: #{tpu_custom_call.1} parent=1 // pred_region
      %s83 = ssub.s32 1024, 1024
      %84 = vsyncadd [#allocation12], %s83
      %s85 = sshll.u32 [#allocation11], 4
      %s86 = int_to_ptr.vmem [resolvable:$true] %s85
      %91 = dma.hbm_to_vmem [thread:$0]  %s7, 1024, %s86, [#allocation12], 64, 64, 4
    $region33: #{tpu_custom_call.1} parent=1 // pred_fallthru
      _
    // Predicated region
    $region34: #{tpu_custom_call.1} parent=1 // pred_check
      _
    $region35: #{tpu_custom_call.1} parent=1 // pred_check_branch
      %93 = sbr.rel (0) target = $region37
    $region36: #{tpu_custom_call.1} parent=1 // pred_region
      %s95 = ssub.s32 2048, 2048
      %96 = vsyncadd [#allocation12], %s95
      %s97 = sshll.u32 [#allocation13], 4
      %s98 = int_to_ptr.vmem [resolvable:$true] %s97
      %103 = dma.hbm_to_vmem [thread:$0]  %s8, 2048, %s98, [#allocation12], 128, 128, 8
    $region37: #{tpu_custom_call.1} parent=1 // pred_fallthru
      _
    // Predicated region
    $region38: #{tpu_custom_call.1} parent=1 // pred_check
      _
    $region39: #{tpu_custom_call.1} parent=1 // pred_check_branch
      %105 = sbr.rel (0) target = $region41
    $region40: #{tpu_custom_call.1} parent=1 // pred_region
      %s107 = ssub.s32 1024, 1024
      %108 = vsyncadd [#allocation15], %s107
      %s109 = sshll.u32 [#allocation14], 4
      %s110 = int_to_ptr.vmem [resolvable:$true] %s109
      %115 = dma.hbm_to_vmem [thread:$0]  %s9, 1024, %s110, [#allocation15], 64, 64, 4
    $region41: #{tpu_custom_call.1} parent=1 // pred_fallthru
      _
    // Predicated region
    $region42: #{tpu_custom_call.1} parent=1 // pred_check
      _
    $region43: #{tpu_custom_call.1} parent=1 // pred_check_branch
      %117 = sbr.rel (0) target = $region45
    $region44: #{tpu_custom_call.1} parent=1 // pred_region
      %118 = dma.done [#allocation6], 16
    $region45: #{tpu_custom_call.1} parent=1 // pred_fallthru
      _
    // Predicated region
    $region46: #{tpu_custom_call.1} parent=1 // pred_check
      _
    $region47: #{tpu_custom_call.1} parent=1 // pred_check_branch
      %120 = sbr.rel (0) target = $region49
    $region48: #{tpu_custom_call.1} parent=1 // pred_region
      %121 = dma.done [#allocation4], 6912
    $region49: #{tpu_custom_call.1} parent=1 // pred_fallthru
      _
    // Predicated region
    $region50: #{tpu_custom_call.1} parent=1 // pred_check
      _
    $region51: #{tpu_custom_call.1} parent=1 // pred_check_branch
      %123 = sbr.rel (0) target = $region53
    $region52: #{tpu_custom_call.1} parent=1 // pred_region
      %124 = dma.done [#allocation9], 9216
    $region53: #{tpu_custom_call.1} parent=1 // pred_fallthru
      _
    // Predicated region
    $region54: #{tpu_custom_call.1} parent=1 // pred_check
      _
    $region55: #{tpu_custom_call.1} parent=1 // pred_check_branch
      %126 = sbr.rel (0) target = $region57
    $region56: #{tpu_custom_call.1} parent=1 // pred_region
      %127 = dma.done [#allocation9], 2048
    $region57: #{tpu_custom_call.1} parent=1 // pred_fallthru
      _
    // Predicated region
    $region58: #{tpu_custom_call.1} parent=1 // pred_check
      _
    $region59: #{tpu_custom_call.1} parent=1 // pred_check_branch
      %129 = sbr.rel (0) target = $region61
    $region60: #{tpu_custom_call.1} parent=1 // pred_region
      %130 = dma.done [#allocation12], 1024
    $region61: #{tpu_custom_call.1} parent=1 // pred_fallthru
      _
    // Predicated region
    $region62: #{tpu_custom_call.1} parent=1 // pred_check
      _
    $region63: #{tpu_custom_call.1} parent=1 // pred_check_branch
      %132 = sbr.rel (0) target = $region65
    $region64: #{tpu_custom_call.1} parent=1 // pred_region
      %133 = dma.done [#allocation12], 2048
    $region65: #{tpu_custom_call.1} parent=1 // pred_fallthru
      _
    // Predicated region
    $region66: #{tpu_custom_call.1} parent=1 // pred_check
      _
    $region67: #{tpu_custom_call.1} parent=1 // pred_check_branch
      %135 = sbr.rel (0) target = $region69
    $region68: #{tpu_custom_call.1} parent=1 // pred_region
      %136 = dma.done [#allocation15], 1024
    $region69: #{tpu_custom_call.1} parent=1 // pred_fallthru
      _
    %137 = sfence
    %s139 = sld [smem:[#allocation3]]
    %s140 = sld [smem:[#allocation3 + $0x1]]
    %s141 = sld [smem:[#allocation3 + $0x2]]
    %s142 = sld [smem:[#allocation3 + $0x3]]
    %s143 = sld [smem:[#allocation3 + $0x4]]
    %s144 = sld [smem:[#allocation3 + $0x5]]
    %v145 = vld [vmem:[#allocation7] sm:$0xf]
    %v146 = vld [vmem:[#allocation7 + $0x4] sm:$0xf]
    %v147 = vld [vmem:[#allocation7 + $0x8] sm:$0xf]
    %v148 = vld [vmem:[#allocation7 + $0xc] sm:$0xf]
    %v149 = vld [vmem:[#allocation7 + $0x10] sm:$0xf]
    %v150 = vld [vmem:[#allocation7 + $0x14] sm:$0xf]
    %v151 = vld [vmem:[#allocation7 + $0x18] sm:$0xf]
    %v152 = vld [vmem:[#allocation7 + $0x1c] sm:$0xf]
    %v153 = vld [vmem:[#allocation7 + $0x20] sm:$0xf]
    %v154 = vld [vmem:[#allocation7 + $0x24] sm:$0xf]
    %v155 = vld [vmem:[#allocation7 + $0x28] sm:$0xf]
    %v156 = vld [vmem:[#allocation7 + $0x2c] sm:$0xf]
    %v157 = vld [vmem:[#allocation7 + $0x30] sm:$0xf]
    %v158 = vld [vmem:[#allocation7 + $0x34] sm:$0xf]
    %v159 = vld [vmem:[#allocation7 + $0x38] sm:$0xf]
    %v160 = vld [vmem:[#allocation7 + $0x3c] sm:$0xf]
    %v161 = vld [vmem:[#allocation7 + $0x40] sm:$0xf]
    %v162 = vld [vmem:[#allocation7 + $0x44] sm:$0xf]
    %v163 = vld [vmem:[%s2] sm:$0xf]
    %v164 = vld [vmem:[%s2 + $0x4] sm:$0xf]
    %v165 = vld [vmem:[%s2 + $0x8] sm:$0xf]
    %v166 = vld [vmem:[%s2 + $0xc] sm:$0xf]
    %v167 = vld [vmem:[%s2 + $0x10] sm:$0xf]
    %v168 = vld [vmem:[%s2 + $0x14] sm:$0xf]
    %v169 = vld [vmem:[%s2 + $0x18] sm:$0xf]
    %v170 = vld [vmem:[%s2 + $0x1c] sm:$0xf]
    %v171 = vld [vmem:[%s2 + $0x20] sm:$0xf]
    %v172 = vld [vmem:[%s2 + $0x24] sm:$0xf]
    %v173 = vld [vmem:[%s2 + $0x28] sm:$0xf]
    %v174 = vld [vmem:[%s2 + $0x2c] sm:$0xf]
    %v175 = vld [vmem:[%s2 + $0x30] sm:$0xf]
    %v176 = vld [vmem:[%s2 + $0x34] sm:$0xf]
    %v177 = vld [vmem:[%s2 + $0x38] sm:$0xf]
    %v178 = vld [vmem:[%s2 + $0x3c] sm:$0xf]
    %v197 = vunpack.c.l.b16 %v145
    %v198 = vunpack.c.l.b16 %v146
    %v199 = vunpack.c.l.b16 %v147
    %v200 = vunpack.c.l.b16 %v148
    %v201 = vunpack.c.l.b16 %v149
    %v202 = vunpack.c.l.b16 %v150
    %v203 = vunpack.c.l.b16 %v151
    %v204 = vunpack.c.l.b16 %v152
    %v205 = vunpack.c.l.b16 %v153
    %v206 = vunpack.c.l.b16 %v154
    %v207 = vunpack.c.l.b16 %v155
    %v208 = vunpack.c.l.b16 %v156
    %v209 = vunpack.c.l.b16 %v157
    %v210 = vunpack.c.l.b16 %v158
    %v211 = vunpack.c.l.b16 %v159
    %v212 = vunpack.c.l.b16 %v160
    %v213 = vunpack.c.l.b16 %v161
    %v214 = vunpack.c.l.b16 %v162
    %v215 = vpack.c.b16 %v198, %v197
    %v216 = vpack.c.b16 %v200, %v199
    %v217 = vpack.c.b16 %v202, %v201
    %v218 = vpack.c.b16 %v204, %v203
    %v219 = vpack.c.b16 %v206, %v205
    %v220 = vpack.c.b16 %v208, %v207
    %v221 = vpack.c.b16 %v210, %v209
    %v222 = vpack.c.b16 %v212, %v211
    %v223 = vpack.c.b16 %v214, %v213
    %v249 = vunpack.c.l.b16 %v163
    %v250 = vunpack.c.l.b16 %v164
    %v251 = vunpack.c.l.b16 %v165
    %v252 = vunpack.c.l.b16 %v166
    %v253 = vunpack.c.l.b16 %v167
    %v254 = vunpack.c.l.b16 %v168
    %v255 = vunpack.c.l.b16 %v169
    %v256 = vunpack.c.l.b16 %v170
    %v257 = vunpack.c.l.b16 %v171
    %v258 = vunpack.c.l.b16 %v172
    %v259 = vunpack.c.l.b16 %v173
    %v260 = vunpack.c.l.b16 %v174
    %v261 = vunpack.c.l.b16 %v175
    %v262 = vunpack.c.l.b16 %v176
    %v263 = vunpack.c.l.b16 %v177
    %v264 = vunpack.c.l.b16 %v178
    %v265 = vpack.c.b16 %v250, %v249
    %v266 = vpack.c.b16 %v252, %v251
    %v267 = vpack.c.b16 %v254, %v253
    %v268 = vpack.c.b16 %v256, %v255
    %v269 = vpack.c.b16 %v258, %v257
    %v270 = vpack.c.b16 %v260, %v259
    %v271 = vpack.c.b16 %v262, %v261
    %v272 = vpack.c.b16 %v264, %v263
    %281 = vmatprep.subr.bf16.mxu0 0
    %282 = vmatpush1.bf16.msra.mxu0 %v272
    %283 = vmatprep.subr.bf16.mxu0 0
    %284 = vmatpush1.bf16.msra.mxu0 %v271
    %285 = vmatprep.subr.bf16.mxu0 0
    %286 = vmatpush1.bf16.msra.mxu0 %v270
    %287 = vmatprep.subr.bf16.mxu0 0
    %288 = vmatpush1.bf16.msra.mxu0 %v269
    %289 = vmatprep.subr.bf16.mxu0 0
    %290 = vmatpush1.bf16.msra.mxu0 %v268
    %291 = vmatprep.subr.bf16.mxu0 0
    %292 = vmatpush1.bf16.msra.mxu0 %v267
    %293 = vmatprep.subr.bf16.mxu0 0
    %294 = vmatpush1.bf16.msra.mxu0 %v266
    %295 = vmatprep.subr.bf16.mxu0 0
    %296 = vmatpush1.bf16.msra.mxu0 %v265
    %297 = vmatprep.subr.bf16.mxu0 0
    %298 = vmatpush2.bf16.msra.mxu0 0
    %299 = vmatprep.subr.bf16.mxu0 0
    %300 = vmatpush2.bf16.msra.mxu0 0
    %301 = vmatprep.subr.bf16.mxu0 0
    %302 = vmatpush2.bf16.msra.mxu0 0
    %303 = vmatprep.subr.bf16.mxu0 0
    %304 = vmatpush2.bf16.msra.mxu0 0
    %305 = vmatprep.subr.bf16.mxu0 0
    %306 = vmatpush2.bf16.msra.mxu0 0
    %307 = vmatprep.subr.bf16.mxu0 0
    %308 = vmatpush2.bf16.msra.mxu0 0
    %309 = vmatprep.subr.bf16.mxu0 0
    %310 = vmatpush2.bf16.msra.mxu0 0
    %311 = vmatprep.subr.bf16.mxu0 0
    %312 = vmatpush2.bf16.msra.mxu0 0
    %313 = vmatprep.mubr.bf16.mxu0 0
    %314 = vmatmul.mubr.bf16.gmra.mxu0 %v215
    %v315 = vpop.f32.mrf.mxu0
    %v316 = vadd.f32 0.0, %v315
    %v317 = vpop.f32.mrf.mxu0
    %v318 = vpop.f32.mrf.mxu0
    %v319 = vadd.f32 0.0, %v318
    %v320 = vpop.f32.mrf.mxu0
    %321 = vmatprep.mubr.bf16.mxu0 0
    %322 = vmatmul.mubr.bf16.gmra.mxu0 %v216
    %v323 = vpop.f32.mrf.mxu0
    %v324 = vadd.f32 0.0, %v323
    %v325 = vpop.f32.mrf.mxu0
    %v326 = vpop.f32.mrf.mxu0
    %v327 = vadd.f32 0.0, %v326
    %v328 = vpop.f32.mrf.mxu0
    %329 = vmatprep.mubr.bf16.mxu0 0
    %330 = vmatmul.mubr.bf16.gmra.mxu0 %v217
    %v331 = vpop.f32.mrf.mxu0
    %v332 = vadd.f32 0.0, %v331
    %v333 = vpop.f32.mrf.mxu0
    %v334 = vpop.f32.mrf.mxu0
    %v335 = vadd.f32 0.0, %v334
    %v336 = vpop.f32.mrf.mxu0
    %337 = vmatprep.mubr.bf16.mxu0 0
    %338 = vmatmul.mubr.bf16.gmra.mxu0 %v218
    %v339 = vpop.f32.mrf.mxu0
    %v340 = vadd.f32 0.0, %v339
    %v341 = vpop.f32.mrf.mxu0
    %v342 = vpop.f32.mrf.mxu0
    %v343 = vadd.f32 0.0, %v342
    %v344 = vpop.f32.mrf.mxu0
    %345 = vmatprep.mubr.bf16.mxu0 0
    %346 = vmatmul.mubr.bf16.gmra.mxu0 %v219
    %v347 = vpop.f32.mrf.mxu0
    %v348 = vpop.f32.mrf.mxu0
    %v349 = vpop.f32.mrf.mxu0
    %v350 = vadd.f32 0.0, %v349
    %v351 = vpop.f32.mrf.mxu0
    %352 = vmatprep.mubr.bf16.mxu0 0
    %353 = vmatmul.mubr.bf16.gmra.mxu0 %v220
    %v354 = vpop.f32.mrf.mxu0
    %v355 = vadd.f32 0.0, %v354
    %v356 = vpop.f32.mrf.mxu0
    %v357 = vpop.f32.mrf.mxu0
    %v358 = vadd.f32 0.0, %v357
    %v359 = vpop.f32.mrf.mxu0
    %360 = vmatprep.mubr.bf16.mxu0 0
    %361 = vmatmul.mubr.bf16.gmra.mxu0 %v221
    %v362 = vpop.f32.mrf.mxu0
    %v363 = vadd.f32 0.0, %v362
    %v364 = vpop.f32.mrf.mxu0
    %v365 = vpop.f32.mrf.mxu0
    %v366 = vadd.f32 0.0, %v365
    %v367 = vpop.f32.mrf.mxu0
    %368 = vmatprep.mubr.bf16.mxu0 0
    %369 = vmatmul.mubr.bf16.gmra.mxu0 %v222
    %v370 = vpop.f32.mrf.mxu0
    %v371 = vadd.f32 0.0, %v370
    %v372 = vpop.f32.mrf.mxu0
    %v373 = vpop.f32.mrf.mxu0
    %v374 = vadd.f32 0.0, %v373
    %v375 = vpop.f32.mrf.mxu0
    %376 = vmatprep.mubr.bf16.mxu0 0
    %377 = vmatmul.mubr.bf16.gmra.mxu0 %v223
    %v378 = vpop.f32.mrf.mxu0
    %v379 = vadd.f32 0.0, %v378
    %v380 = vpop.f32.mrf.mxu0
    %v381 = vpop.f32.mrf.mxu0
    %v382 = vpop.f32.mrf.mxu0
    %383 = vdwg.mxu0
    %s384 = scalar_lea.vmem %s2, 384
    %v385 = vld [vmem:[%s384] sm:$0xf]
    %v386 = vld [vmem:[%s384 + $0x4] sm:$0xf]
    %v387 = vld [vmem:[%s384 + $0x8] sm:$0xf]
    %v388 = vld [vmem:[%s384 + $0xc] sm:$0xf]
    %v389 = vld [vmem:[%s384 + $0x10] sm:$0xf]
    %v390 = vld [vmem:[%s384 + $0x14] sm:$0xf]
    %v391 = vld [vmem:[%s384 + $0x18] sm:$0xf]
    %v392 = vld [vmem:[%s384 + $0x1c] sm:$0xf]
    %v393 = vld [vmem:[%s384 + $0x20] sm:$0xf]
    %v394 = vld [vmem:[%s384 + $0x24] sm:$0xf]
    %v395 = vld [vmem:[%s384 + $0x28] sm:$0xf]
    %v396 = vld [vmem:[%s384 + $0x2c] sm:$0xf]
    %v397 = vld [vmem:[%s384 + $0x30] sm:$0xf]
    %v398 = vld [vmem:[%s384 + $0x34] sm:$0xf]
    %v399 = vld [vmem:[%s384 + $0x38] sm:$0xf]
    %v400 = vld [vmem:[%s384 + $0x3c] sm:$0xf]
    %v417 = vunpack.c.l.b16 %v385
    %v418 = vunpack.c.l.b16 %v386
    %v419 = vunpack.c.l.b16 %v387
    %v420 = vunpack.c.l.b16 %v388
    %v421 = vunpack.c.l.b16 %v389
    %v422 = vunpack.c.l.b16 %v390
    %v423 = vunpack.c.l.b16 %v391
    %v424 = vunpack.c.l.b16 %v392
    %v425 = vunpack.c.l.b16 %v393
    %v426 = vunpack.c.l.b16 %v394
    %v427 = vunpack.c.l.b16 %v395
    %v428 = vunpack.c.l.b16 %v396
    %v429 = vunpack.c.l.b16 %v397
    %v430 = vunpack.c.l.b16 %v398
    %v431 = vunpack.c.l.b16 %v399
    %v432 = vunpack.c.l.b16 %v400
    %v433 = vpack.c.b16 %v418, %v417
    %v434 = vpack.c.b16 %v420, %v419
    %v435 = vpack.c.b16 %v422, %v421
    %v436 = vpack.c.b16 %v424, %v423
    %v437 = vpack.c.b16 %v426, %v425
    %v438 = vpack.c.b16 %v428, %v427
    %v439 = vpack.c.b16 %v430, %v429
    %v440 = vpack.c.b16 %v432, %v431
    %449 = vmatprep.subr.bf16.mxu0 0
    %450 = vmatpush1.bf16.msra.mxu0 %v440
    %451 = vmatprep.subr.bf16.mxu0 0
    %452 = vmatpush1.bf16.msra.mxu0 %v439
    %453 = vmatprep.subr.bf16.mxu0 0
    %454 = vmatpush1.bf16.msra.mxu0 %v438
    %455 = vmatprep.subr.bf16.mxu0 0
    %456 = vmatpush1.bf16.msra.mxu0 %v437
    %457 = vmatprep.subr.bf16.mxu0 0
    %458 = vmatpush1.bf16.msra.mxu0 %v436
    %459 = vmatprep.subr.bf16.mxu0 0
    %460 = vmatpush1.bf16.msra.mxu0 %v435
    %461 = vmatprep.subr.bf16.mxu0 0
    %462 = vmatpush1.bf16.msra.mxu0 %v434
    %463 = vmatprep.subr.bf16.mxu0 0
    %464 = vmatpush1.bf16.msra.mxu0 %v433
    %465 = vmatprep.subr.bf16.mxu0 0
    %466 = vmatpush2.bf16.msra.mxu0 0
    %467 = vmatprep.subr.bf16.mxu0 0
    %468 = vmatpush2.bf16.msra.mxu0 0
    %469 = vmatprep.subr.bf16.mxu0 0
    %470 = vmatpush2.bf16.msra.mxu0 0
    %471 = vmatprep.subr.bf16.mxu0 0
    %472 = vmatpush2.bf16.msra.mxu0 0
    %473 = vmatprep.subr.bf16.mxu0 0
    %474 = vmatpush2.bf16.msra.mxu0 0
    %475 = vmatprep.subr.bf16.mxu0 0
    %476 = vmatpush2.bf16.msra.mxu0 0
    %477 = vmatprep.subr.bf16.mxu0 0
    %478 = vmatpush2.bf16.msra.mxu0 0
    %479 = vmatprep.subr.bf16.mxu0 0
    %480 = vmatpush2.bf16.msra.mxu0 0
    %481 = vmatprep.mubr.bf16.mxu0 0
    %482 = vmatmul.mubr.bf16.gmra.mxu0 %v215
    %v483 = vpop.f32.mrf.mxu0
    %v484 = vpop.f32.mrf.mxu0
    %v485 = vpop.f32.mrf.mxu0
    %v486 = vadd.f32 0.0, %v485
    %v487 = vpop.f32.mrf.mxu0
    %488 = vmatprep.mubr.bf16.mxu0 0
    %489 = vmatmul.mubr.bf16.gmra.mxu0 %v216
    %v490 = vpop.f32.mrf.mxu0
    %v491 = vadd.f32 0.0, %v490
    %v492 = vpop.f32.mrf.mxu0
    %v493 = vpop.f32.mrf.mxu0
    %v494 = vadd.f32 0.0, %v493
    %v495 = vpop.f32.mrf.mxu0
    %496 = vmatprep.mubr.bf16.mxu0 0
    %497 = vmatmul.mubr.bf16.gmra.mxu0 %v217
    %v498 = vpop.f32.mrf.mxu0
    %v499 = vadd.f32 0.0, %v498
    %v500 = vpop.f32.mrf.mxu0
    %v501 = vpop.f32.mrf.mxu0
    %v502 = vadd.f32 0.0, %v501
    %v503 = vpop.f32.mrf.mxu0
    %504 = vmatprep.mubr.bf16.mxu0 0
    %505 = vmatmul.mubr.bf16.gmra.mxu0 %v218
    %v506 = vpop.f32.mrf.mxu0
    %v507 = vadd.f32 0.0, %v506
    %v508 = vpop.f32.mrf.mxu0
    %v509 = vpop.f32.mrf.mxu0
    %v510 = vadd.f32 0.0, %v509
    %v511 = vpop.f32.mrf.mxu0
    %512 = vmatprep.mubr.bf16.mxu0 0
    %513 = vmatmul.mubr.bf16.gmra.mxu0 %v219
    %v514 = vpop.f32.mrf.mxu0
    %v515 = vadd.f32 0.0, %v514
    %v516 = vpop.f32.mrf.mxu0
    %v517 = vpop.f32.mrf.mxu0
    %v518 = vpop.f32.mrf.mxu0
    %519 = vmatprep.mubr.bf16.mxu0 0
    %520 = vmatmul.mubr.bf16.gmra.mxu0 %v220
    %v521 = vpop.f32.mrf.mxu0
    %v522 = vadd.f32 0.0, %v521
    %v523 = vpop.f32.mrf.mxu0
    %v524 = vpop.f32.mrf.mxu0
    %v525 = vadd.f32 0.0, %v524
    %v526 = vpop.f32.mrf.mxu0
    %527 = vmatprep.mubr.bf16.mxu0 0
    %528 = vmatmul.mubr.bf16.gmra.mxu0 %v221
    %v529 = vpop.f32.mrf.mxu0
    %v530 = vadd.f32 0.0, %v529
    %v531 = vpop.f32.mrf.mxu0
    %v532 = vpop.f32.mrf.mxu0
    %v533 = vadd.f32 0.0, %v532
    %v534 = vpop.f32.mrf.mxu0
    %535 = vmatprep.mubr.bf16.mxu0 0
    %536 = vmatmul.mubr.bf16.gmra.mxu0 %v222
    %v537 = vpop.f32.mrf.mxu0
    %v538 = vadd.f32 0.0, %v537
    %v539 = vpop.f32.mrf.mxu0
    %v540 = vpop.f32.mrf.mxu0
    %v541 = vadd.f32 0.0, %v540
    %v542 = vpop.f32.mrf.mxu0
    %543 = vmatprep.mubr.bf16.mxu0 0
    %544 = vmatmul.mubr.bf16.gmra.mxu0 %v223
    %v545 = vpop.f32.mrf.mxu0
    %v546 = vadd.f32 0.0, %v545
    %v547 = vpop.f32.mrf.mxu0
    %v548 = vpop.f32.mrf.mxu0
    %v549 = vadd.f32 0.0, %v548
    %v550 = vpop.f32.mrf.mxu0
    %551 = vdwg.mxu0
    %v552 = vadd.f32 %v316, %v486
    %v553 = vadd.f32 %v319, %v491
    %v554 = vadd.f32 %v324, %v494
    %v555 = vadd.f32 %v327, %v499
    %v556 = vadd.f32 %v332, %v502
    %v557 = vadd.f32 %v335, %v507
    %v558 = vadd.f32 %v340, %v510
    %v559 = vadd.f32 %v343, %v515
    %v560 = vadd.f32 %v350, %v522
    %v561 = vadd.f32 %v355, %v525
    %v562 = vadd.f32 %v358, %v530
    %v563 = vadd.f32 %v363, %v533
    %v564 = vadd.f32 %v366, %v538
    %v565 = vadd.f32 %v371, %v541
    %v566 = vadd.f32 %v374, %v546
    %v567 = vadd.f32 %v379, %v549
    %s568 = scalar_lea.vmem [#allocation7], 72
    %v569 = vld [vmem:[%s568] sm:$0xf]
    %v570 = vld [vmem:[%s568 + $0x4] sm:$0xf]
    %v571 = vld [vmem:[%s568 + $0x8] sm:$0xf]
    %v572 = vld [vmem:[%s568 + $0xc] sm:$0xf]
    %v573 = vld [vmem:[%s568 + $0x10] sm:$0xf]
    %v574 = vld [vmem:[%s568 + $0x14] sm:$0xf]
    %v575 = vld [vmem:[%s568 + $0x18] sm:$0xf]
    %v576 = vld [vmem:[%s568 + $0x1c] sm:$0xf]
    %v577 = vld [vmem:[%s568 + $0x20] sm:$0xf]
    %v578 = vld [vmem:[%s568 + $0x24] sm:$0xf]
    %v579 = vld [vmem:[%s568 + $0x28] sm:$0xf]
    %v580 = vld [vmem:[%s568 + $0x2c] sm:$0xf]
    %v581 = vld [vmem:[%s568 + $0x30] sm:$0xf]
    %v582 = vld [vmem:[%s568 + $0x34] sm:$0xf]
    %v583 = vld [vmem:[%s568 + $0x38] sm:$0xf]
    %v584 = vld [vmem:[%s568 + $0x3c] sm:$0xf]
    %v585 = vld [vmem:[%s568 + $0x40] sm:$0xf]
    %v586 = vld [vmem:[%s568 + $0x44] sm:$0xf]
    %s587 = scalar_lea.vmem %s2, 64
    %v588 = vld [vmem:[%s587] sm:$0xf]
    %v589 = vld [vmem:[%s587 + $0x4] sm:$0xf]
    %v590 = vld [vmem:[%s587 + $0x8] sm:$0xf]
    %v591 = vld [vmem:[%s587 + $0xc] sm:$0xf]
    %v592 = vld [vmem:[%s587 + $0x10] sm:$0xf]
    %v593 = vld [vmem:[%s587 + $0x14] sm:$0xf]
    %v594 = vld [vmem:[%s587 + $0x18] sm:$0xf]
    %v595 = vld [vmem:[%s587 + $0x1c] sm:$0xf]
    %v596 = vld [vmem:[%s587 + $0x20] sm:$0xf]
    %v597 = vld [vmem:[%s587 + $0x24] sm:$0xf]
    %v598 = vld [vmem:[%s587 + $0x28] sm:$0xf]
    %v599 = vld [vmem:[%s587 + $0x2c] sm:$0xf]
    %v600 = vld [vmem:[%s587 + $0x30] sm:$0xf]
    %v601 = vld [vmem:[%s587 + $0x34] sm:$0xf]
    %v602 = vld [vmem:[%s587 + $0x38] sm:$0xf]
    %v603 = vld [vmem:[%s587 + $0x3c] sm:$0xf]
    %v622 = vunpack.c.l.b16 %v569
    %v623 = vunpack.c.l.b16 %v570
    %v624 = vunpack.c.l.b16 %v571
    %v625 = vunpack.c.l.b16 %v572
    %v626 = vunpack.c.l.b16 %v573
    %v627 = vunpack.c.l.b16 %v574
    %v628 = vunpack.c.l.b16 %v575
    %v629 = vunpack.c.l.b16 %v576
    %v630 = vunpack.c.l.b16 %v577
    %v631 = vunpack.c.l.b16 %v578
    %v632 = vunpack.c.l.b16 %v579
    %v633 = vunpack.c.l.b16 %v580
    %v634 = vunpack.c.l.b16 %v581
    %v635 = vunpack.c.l.b16 %v582
    %v636 = vunpack.c.l.b16 %v583
    %v637 = vunpack.c.l.b16 %v584
    %v638 = vunpack.c.l.b16 %v585
    %v639 = vunpack.c.l.b16 %v586
    %v640 = vpack.c.b16 %v623, %v622
    %v641 = vpack.c.b16 %v625, %v624
    %v642 = vpack.c.b16 %v627, %v626
    %v643 = vpack.c.b16 %v629, %v628
    %v644 = vpack.c.b16 %v631, %v630
    %v645 = vpack.c.b16 %v633, %v632
    %v646 = vpack.c.b16 %v635, %v634
    %v647 = vpack.c.b16 %v637, %v636
    %v648 = vpack.c.b16 %v639, %v638
    %v674 = vunpack.c.l.b16 %v588
    %v675 = vunpack.c.l.b16 %v589
    %v676 = vunpack.c.l.b16 %v590
    %v677 = vunpack.c.l.b16 %v591
    %v678 = vunpack.c.l.b16 %v592
    %v679 = vunpack.c.l.b16 %v593
    %v680 = vunpack.c.l.b16 %v594
    %v681 = vunpack.c.l.b16 %v595
    %v682 = vunpack.c.l.b16 %v596
    %v683 = vunpack.c.l.b16 %v597
    %v684 = vunpack.c.l.b16 %v598
    %v685 = vunpack.c.l.b16 %v599
    %v686 = vunpack.c.l.b16 %v600
    %v687 = vunpack.c.l.b16 %v601
    %v688 = vunpack.c.l.b16 %v602
    %v689 = vunpack.c.l.b16 %v603
    %v690 = vpack.c.b16 %v675, %v674
    %v691 = vpack.c.b16 %v677, %v676
    %v692 = vpack.c.b16 %v679, %v678
    %v693 = vpack.c.b16 %v681, %v680
    %v694 = vpack.c.b16 %v683, %v682
    %v695 = vpack.c.b16 %v685, %v684
    %v696 = vpack.c.b16 %v687, %v686
    %v697 = vpack.c.b16 %v689, %v688
    %706 = vmatprep.subr.bf16.mxu0 0
    %707 = vmatpush1.bf16.msra.mxu0 %v697
    %708 = vmatprep.subr.bf16.mxu0 0
    %709 = vmatpush1.bf16.msra.mxu0 %v696
    %710 = vmatprep.subr.bf16.mxu0 0
    %711 = vmatpush1.bf16.msra.mxu0 %v695
    %712 = vmatprep.subr.bf16.mxu0 0
    %713 = vmatpush1.bf16.msra.mxu0 %v694
    %714 = vmatprep.subr.bf16.mxu0 0
    %715 = vmatpush1.bf16.msra.mxu0 %v693
    %716 = vmatprep.subr.bf16.mxu0 0
    %717 = vmatpush1.bf16.msra.mxu0 %v692
    %718 = vmatprep.subr.bf16.mxu0 0
    %719 = vmatpush1.bf16.msra.mxu0 %v691
    %720 = vmatprep.subr.bf16.mxu0 0
    %721 = vmatpush1.bf16.msra.mxu0 %v690
    %722 = vmatprep.subr.bf16.mxu0 0
    %723 = vmatpush2.bf16.msra.mxu0 0
    %724 = vmatprep.subr.bf16.mxu0 0
    %725 = vmatpush2.bf16.msra.mxu0 0
    %726 = vmatprep.subr.bf16.mxu0 0
    %727 = vmatpush2.bf16.msra.mxu0 0
    %728 = vmatprep.subr.bf16.mxu0 0
    %729 = vmatpush2.bf16.msra.mxu0 0
    %730 = vmatprep.subr.bf16.mxu0 0
    %731 = vmatpush2.bf16.msra.mxu0 0
    %732 = vmatprep.subr.bf16.mxu0 0
    %733 = vmatpush2.bf16.msra.mxu0 0
    %734 = vmatprep.subr.bf16.mxu0 0
    %735 = vmatpush2.bf16.msra.mxu0 0
    %736 = vmatprep.subr.bf16.mxu0 0
    %737 = vmatpush2.bf16.msra.mxu0 0
    %738 = vmatprep.mubr.bf16.mxu0 0
    %739 = vmatmul.mubr.bf16.gmra.mxu0 %v640
    %v740 = vpop.f32.mrf.mxu0
    %v741 = vadd.f32 0.0, %v740
    %v742 = vpop.f32.mrf.mxu0
    %v743 = vpop.f32.mrf.mxu0
    %v744 = vadd.f32 0.0, %v743
    %v745 = vpop.f32.mrf.mxu0
    %746 = vmatprep.mubr.bf16.mxu0 0
    %747 = vmatmul.mubr.bf16.gmra.mxu0 %v641
    %v748 = vpop.f32.mrf.mxu0
    %v749 = vadd.f32 0.0, %v748
    %v750 = vpop.f32.mrf.mxu0
    %v751 = vpop.f32.mrf.mxu0
    %v752 = vadd.f32 0.0, %v751
    %v753 = vpop.f32.mrf.mxu0
    %754 = vmatprep.mubr.bf16.mxu0 0
    %755 = vmatmul.mubr.bf16.gmra.mxu0 %v642
    %v756 = vpop.f32.mrf.mxu0
    %v757 = vadd.f32 0.0, %v756
    %v758 = vpop.f32.mrf.mxu0
    %v759 = vpop.f32.mrf.mxu0
    %v760 = vadd.f32 0.0, %v759
    %v761 = vpop.f32.mrf.mxu0
    %762 = vmatprep.mubr.bf16.mxu0 0
    %763 = vmatmul.mubr.bf16.gmra.mxu0 %v643
    %v764 = vpop.f32.mrf.mxu0
    %v765 = vadd.f32 0.0, %v764
    %v766 = vpop.f32.mrf.mxu0
    %v767 = vpop.f32.mrf.mxu0
    %v768 = vadd.f32 0.0, %v767
    %v769 = vpop.f32.mrf.mxu0
    %770 = vmatprep.mubr.bf16.mxu0 0
    %771 = vmatmul.mubr.bf16.gmra.mxu0 %v644
    %v772 = vpop.f32.mrf.mxu0
    %v773 = vpop.f32.mrf.mxu0
    %v774 = vpop.f32.mrf.mxu0
    %v775 = vadd.f32 0.0, %v774
    %v776 = vpop.f32.mrf.mxu0
    %777 = vmatprep.mubr.bf16.mxu0 0
    %778 = vmatmul.mubr.bf16.gmra.mxu0 %v645
    %v779 = vpop.f32.mrf.mxu0
    %v780 = vadd.f32 0.0, %v779
    %v781 = vpop.f32.mrf.mxu0
    %v782 = vpop.f32.mrf.mxu0
    %v783 = vadd.f32 0.0, %v782
    %v784 = vpop.f32.mrf.mxu0
    %785 = vmatprep.mubr.bf16.mxu0 0
    %786 = vmatmul.mubr.bf16.gmra.mxu0 %v646
    %v787 = vpop.f32.mrf.mxu0
    %v788 = vadd.f32 0.0, %v787
    %v789 = vpop.f32.mrf.mxu0
    %v790 = vpop.f32.mrf.mxu0
    %v791 = vadd.f32 0.0, %v790
    %v792 = vpop.f32.mrf.mxu0
    %793 = vmatprep.mubr.bf16.mxu0 0
    %794 = vmatmul.mubr.bf16.gmra.mxu0 %v647
    %v795 = vpop.f32.mrf.mxu0
    %v796 = vadd.f32 0.0, %v795
    %v797 = vpop.f32.mrf.mxu0
    %v798 = vpop.f32.mrf.mxu0
    %v799 = vadd.f32 0.0, %v798
    %v800 = vpop.f32.mrf.mxu0
    %801 = vmatprep.mubr.bf16.mxu0 0
    %802 = vmatmul.mubr.bf16.gmra.mxu0 %v648
    %v803 = vpop.f32.mrf.mxu0
    %v804 = vadd.f32 0.0, %v803
    %v805 = vpop.f32.mrf.mxu0
    %v806 = vpop.f32.mrf.mxu0
    %v807 = vpop.f32.mrf.mxu0
    %808 = vdwg.mxu0
    %v809 = vadd.f32 %v552, %v741
    %v810 = vadd.f32 %v553, %v744
    %v811 = vadd.f32 %v554, %v749
    %v812 = vadd.f32 %v555, %v752
    %v813 = vadd.f32 %v556, %v757
    %v814 = vadd.f32 %v557, %v760
    %v815 = vadd.f32 %v558, %v765
    %v816 = vadd.f32 %v559, %v768
    %v817 = vadd.f32 %v560, %v775
    %v818 = vadd.f32 %v561, %v780
    %v819 = vadd.f32 %v562, %v783
    %v820 = vadd.f32 %v563, %v788
    %v821 = vadd.f32 %v564, %v791
    %v822 = vadd.f32 %v565, %v796
    %v823 = vadd.f32 %v566, %v799
    %v824 = vadd.f32 %v567, %v804
    %s825 = scalar_lea.vmem %s2, 448
    %v826 = vld [vmem:[%s825] sm:$0xf]
    %v827 = vld [vmem:[%s825 + $0x4] sm:$0xf]
    %v828 = vld [vmem:[%s825 + $0x8] sm:$0xf]
    %v829 = vld [vmem:[%s825 + $0xc] sm:$0xf]
    %v830 = vld [vmem:[%s825 + $0x10] sm:$0xf]
    %v831 = vld [vmem:[%s825 + $0x14] sm:$0xf]
    %v832 = vld [vmem:[%s825 + $0x18] sm:$0xf]
    %v833 = vld [vmem:[%s825 + $0x1c] sm:$0xf]
    %v834 = vld [vmem:[%s825 + $0x20] sm:$0xf]
    %v835 = vld [vmem:[%s825 + $0x24] sm:$0xf]
    %v836 = vld [vmem:[%s825 + $0x28] sm:$0xf]
    %v837 = vld [vmem:[%s825 + $0x2c] sm:$0xf]
    %v838 = vld [vmem:[%s825 + $0x30] sm:$0xf]
    %v839 = vld [vmem:[%s825 + $0x34] sm:$0xf]
    %v840 = vld [vmem:[%s825 + $0x38] sm:$0xf]
    %v841 = vld [vmem:[%s825 + $0x3c] sm:$0xf]
    %v858 = vunpack.c.l.b16 %v826
    %v859 = vunpack.c.l.b16 %v827
    %v860 = vunpack.c.l.b16 %v828
    %v861 = vunpack.c.l.b16 %v829
    %v862 = vunpack.c.l.b16 %v830
    %v863 = vunpack.c.l.b16 %v831
    %v864 = vunpack.c.l.b16 %v832
    %v865 = vunpack.c.l.b16 %v833
    %v866 = vunpack.c.l.b16 %v834
    %v867 = vunpack.c.l.b16 %v835
    %v868 = vunpack.c.l.b16 %v836
    %v869 = vunpack.c.l.b16 %v837
    %v870 = vunpack.c.l.b16 %v838
    %v871 = vunpack.c.l.b16 %v839
    %v872 = vunpack.c.l.b16 %v840
    %v873 = vunpack.c.l.b16 %v841
    %v874 = vpack.c.b16 %v859, %v858
    %v875 = vpack.c.b16 %v861, %v860
    %v876 = vpack.c.b16 %v863, %v862
    %v877 = vpack.c.b16 %v865, %v864
    %v878 = vpack.c.b16 %v867, %v866
    %v879 = vpack.c.b16 %v869, %v868
    %v880 = vpack.c.b16 %v871, %v870
    %v881 = vpack.c.b16 %v873, %v872
    %890 = vmatprep.subr.bf16.mxu0 0
    %891 = vmatpush1.bf16.msra.mxu0 %v881
    %892 = vmatprep.subr.bf16.mxu0 0
    %893 = vmatpush1.bf16.msra.mxu0 %v880
    %894 = vmatprep.subr.bf16.mxu0 0
    %895 = vmatpush1.bf16.msra.mxu0 %v879
    %896 = vmatprep.subr.bf16.mxu0 0
    %897 = vmatpush1.bf16.msra.mxu0 %v878
    %898 = vmatprep.subr.bf16.mxu0 0
    %899 = vmatpush1.bf16.msra.mxu0 %v877
    %900 = vmatprep.subr.bf16.mxu0 0
    %901 = vmatpush1.bf16.msra.mxu0 %v876
    %902 = vmatprep.subr.bf16.mxu0 0
    %903 = vmatpush1.bf16.msra.mxu0 %v875
    %904 = vmatprep.subr.bf16.mxu0 0
    %905 = vmatpush1.bf16.msra.mxu0 %v874
    %906 = vmatprep.subr.bf16.mxu0 0
    %907 = vmatpush2.bf16.msra.mxu0 0
    %908 = vmatprep.subr.bf16.mxu0 0
    %909 = vmatpush2.bf16.msra.mxu0 0
    %910 = vmatprep.subr.bf16.mxu0 0
    %911 = vmatpush2.bf16.msra.mxu0 0
    %912 = vmatprep.subr.bf16.mxu0 0
    %913 = vmatpush2.bf16.msra.mxu0 0
    %914 = vmatprep.subr.bf16.mxu0 0
    %915 = vmatpush2.bf16.msra.mxu0 0
    %916 = vmatprep.subr.bf16.mxu0 0
    %917 = vmatpush2.bf16.msra.mxu0 0
    %918 = vmatprep.subr.bf16.mxu0 0
    %919 = vmatpush2.bf16.msra.mxu0 0
    %920 = vmatprep.subr.bf16.mxu0 0
    %921 = vmatpush2.bf16.msra.mxu0 0
    %922 = vmatprep.mubr.bf16.mxu0 0
    %923 = vmatmul.mubr.bf16.gmra.mxu0 %v640
    %v924 = vpop.f32.mrf.mxu0
    %v925 = vpop.f32.mrf.mxu0
    %v926 = vpop.f32.mrf.mxu0
    %v927 = vadd.f32 0.0, %v926
    %v928 = vpop.f32.mrf.mxu0
    %929 = vmatprep.mubr.bf16.mxu0 0
    %930 = vmatmul.mubr.bf16.gmra.mxu0 %v641
    %v931 = vpop.f32.mrf.mxu0
    %v932 = vadd.f32 0.0, %v931
    %v933 = vpop.f32.mrf.mxu0
    %v934 = vpop.f32.mrf.mxu0
    %v935 = vadd.f32 0.0, %v934
    %v936 = vpop.f32.mrf.mxu0
    %937 = vmatprep.mubr.bf16.mxu0 0
    %938 = vmatmul.mubr.bf16.gmra.mxu0 %v642
    %v939 = vpop.f32.mrf.mxu0
    %v940 = vadd.f32 0.0, %v939
    %v941 = vpop.f32.mrf.mxu0
    %v942 = vpop.f32.mrf.mxu0
    %v943 = vadd.f32 0.0, %v942
    %v944 = vpop.f32.mrf.mxu0
    %945 = vmatprep.mubr.bf16.mxu0 0
    %946 = vmatmul.mubr.bf16.gmra.mxu0 %v643
    %v947 = vpop.f32.mrf.mxu0
    %v948 = vadd.f32 0.0, %v947
    %v949 = vpop.f32.mrf.mxu0
    %v950 = vpop.f32.mrf.mxu0
    %v951 = vadd.f32 0.0, %v950
    %v952 = vpop.f32.mrf.mxu0
    %953 = vmatprep.mubr.bf16.mxu0 0
    %954 = vmatmul.mubr.bf16.gmra.mxu0 %v644
    %v955 = vpop.f32.mrf.mxu0
    %v956 = vadd.f32 0.0, %v955
    %v957 = vpop.f32.mrf.mxu0
    %v958 = vpop.f32.mrf.mxu0
    %v959 = vpop.f32.mrf.mxu0
    %960 = vmatprep.mubr.bf16.mxu0 0
    %961 = vmatmul.mubr.bf16.gmra.mxu0 %v645
    %v962 = vpop.f32.mrf.mxu0
    %v963 = vadd.f32 0.0, %v962
    %v964 = vpop.f32.mrf.mxu0
    %v965 = vpop.f32.mrf.mxu0
    %v966 = vadd.f32 0.0, %v965
    %v967 = vpop.f32.mrf.mxu0
    %968 = vmatprep.mubr.bf16.mxu0 0
    %969 = vmatmul.mubr.bf16.gmra.mxu0 %v646
    %v970 = vpop.f32.mrf.mxu0
    %v971 = vadd.f32 0.0, %v970
    %v972 = vpop.f32.mrf.mxu0
    %v973 = vpop.f32.mrf.mxu0
    %v974 = vadd.f32 0.0, %v973
    %v975 = vpop.f32.mrf.mxu0
    %976 = vmatprep.mubr.bf16.mxu0 0
    %977 = vmatmul.mubr.bf16.gmra.mxu0 %v647
    %v978 = vpop.f32.mrf.mxu0
    %v979 = vadd.f32 0.0, %v978
    %v980 = vpop.f32.mrf.mxu0
    %v981 = vpop.f32.mrf.mxu0
    %v982 = vadd.f32 0.0, %v981
    %v983 = vpop.f32.mrf.mxu0
    %984 = vmatprep.mubr.bf16.mxu0 0
    %985 = vmatmul.mubr.bf16.gmra.mxu0 %v648
    %v986 = vpop.f32.mrf.mxu0
    %v987 = vadd.f32 0.0, %v986
    %v988 = vpop.f32.mrf.mxu0
    %v989 = vpop.f32.mrf.mxu0
    %v990 = vadd.f32 0.0, %v989
    %v991 = vpop.f32.mrf.mxu0
    %992 = vdwg.mxu0
    %v993 = vadd.f32 %v809, %v927
    %v994 = vadd.f32 %v810, %v932
    %v995 = vadd.f32 %v811, %v935
    %v996 = vadd.f32 %v812, %v940
    %v997 = vadd.f32 %v813, %v943
    %v998 = vadd.f32 %v814, %v948
    %v999 = vadd.f32 %v815, %v951
    %v1000 = vadd.f32 %v816, %v956
    %v1001 = vadd.f32 %v817, %v963
    %v1002 = vadd.f32 %v818, %v966
    %v1003 = vadd.f32 %v819, %v971
    %v1004 = vadd.f32 %v820, %v974
    %v1005 = vadd.f32 %v821, %v979
    %v1006 = vadd.f32 %v822, %v982
    %v1007 = vadd.f32 %v823, %v987
    %v1008 = vadd.f32 %v824, %v990
    %s1009 = scalar_lea.vmem [#allocation7], 144
    %v1010 = vld [vmem:[%s1009] sm:$0xf]
    %v1011 = vld [vmem:[%s1009 + $0x4] sm:$0xf]
    %v1012 = vld [vmem:[%s1009 + $0x8] sm:$0xf]
    %v1013 = vld [vmem:[%s1009 + $0xc] sm:$0xf]
    %v1014 = vld [vmem:[%s1009 + $0x10] sm:$0xf]
    %v1015 = vld [vmem:[%s1009 + $0x14] sm:$0xf]
    %v1016 = vld [vmem:[%s1009 + $0x18] sm:$0xf]
    %v1017 = vld [vmem:[%s1009 + $0x1c] sm:$0xf]
    %v1018 = vld [vmem:[%s1009 + $0x20] sm:$0xf]
    %v1019 = vld [vmem:[%s1009 + $0x24] sm:$0xf]
    %v1020 = vld [vmem:[%s1009 + $0x28] sm:$0xf]
    %v1021 = vld [vmem:[%s1009 + $0x2c] sm:$0xf]
    %v1022 = vld [vmem:[%s1009 + $0x30] sm:$0xf]
    %v1023 = vld [vmem:[%s1009 + $0x34] sm:$0xf]
    %v1024 = vld [vmem:[%s1009 + $0x38] sm:$0xf]
    %v1025 = vld [vmem:[%s1009 + $0x3c] sm:$0xf]
    %v1026 = vld [vmem:[%s1009 + $0x40] sm:$0xf]
    %v1027 = vld [vmem:[%s1009 + $0x44] sm:$0xf]
    %s1028 = scalar_lea.vmem %s2, 128
    %v1029 = vld [vmem:[%s1028] sm:$0xf]
    %v1030 = vld [vmem:[%s1028 + $0x4] sm:$0xf]
    %v1031 = vld [vmem:[%s1028 + $0x8] sm:$0xf]
    %v1032 = vld [vmem:[%s1028 + $0xc] sm:$0xf]
    %v1033 = vld [vmem:[%s1028 + $0x10] sm:$0xf]
    %v1034 = vld [vmem:[%s1028 + $0x14] sm:$0xf]
    %v1035 = vld [vmem:[%s1028 + $0x18] sm:$0xf]
    %v1036 = vld [vmem:[%s1028 + $0x1c] sm:$0xf]
    %v1037 = vld [vmem:[%s1028 + $0x20] sm:$0xf]
    %v1038 = vld [vmem:[%s1028 + $0x24] sm:$0xf]
    %v1039 = vld [vmem:[%s1028 + $0x28] sm:$0xf]
    %v1040 = vld [vmem:[%s1028 + $0x2c] sm:$0xf]
    %v1041 = vld [vmem:[%s1028 + $0x30] sm:$0xf]
    %v1042 = vld [vmem:[%s1028 + $0x34] sm:$0xf]
    %v1043 = vld [vmem:[%s1028 + $0x38] sm:$0xf]
    %v1044 = vld [vmem:[%s1028 + $0x3c] sm:$0xf]
    %v1063 = vunpack.c.l.b16 %v1010
    %v1064 = vunpack.c.l.b16 %v1011
    %v1065 = vunpack.c.l.b16 %v1012
    %v1066 = vunpack.c.l.b16 %v1013
    %v1067 = vunpack.c.l.b16 %v1014
    %v1068 = vunpack.c.l.b16 %v1015
    %v1069 = vunpack.c.l.b16 %v1016
    %v1070 = vunpack.c.l.b16 %v1017
    %v1071 = vunpack.c.l.b16 %v1018
    %v1072 = vunpack.c.l.b16 %v1019
    %v1073 = vunpack.c.l.b16 %v1020
    %v1074 = vunpack.c.l.b16 %v1021
    %v1075 = vunpack.c.l.b16 %v1022
    %v1076 = vunpack.c.l.b16 %v1023
    %v1077 = vunpack.c.l.b16 %v1024
    %v1078 = vunpack.c.l.b16 %v1025
    %v1079 = vunpack.c.l.b16 %v1026
    %v1080 = vunpack.c.l.b16 %v1027
    %v1081 = vpack.c.b16 %v1064, %v1063
    %v1082 = vpack.c.b16 %v1066, %v1065
    %v1083 = vpack.c.b16 %v1068, %v1067
    %v1084 = vpack.c.b16 %v1070, %v1069
    %v1085 = vpack.c.b16 %v1072, %v1071
    %v1086 = vpack.c.b16 %v1074, %v1073
    %v1087 = vpack.c.b16 %v1076, %v1075
    %v1088 = vpack.c.b16 %v1078, %v1077
    %v1089 = vpack.c.b16 %v1080, %v1079
    %v1115 = vunpack.c.l.b16 %v1029
    %v1116 = vunpack.c.l.b16 %v1030
    %v1117 = vunpack.c.l.b16 %v1031
    %v1118 = vunpack.c.l.b16 %v1032
    %v1119 = vunpack.c.l.b16 %v1033
    %v1120 = vunpack.c.l.b16 %v1034
    %v1121 = vunpack.c.l.b16 %v1035
    %v1122 = vunpack.c.l.b16 %v1036
    %v1123 = vunpack.c.l.b16 %v1037
    %v1124 = vunpack.c.l.b16 %v1038
    %v1125 = vunpack.c.l.b16 %v1039
    %v1126 = vunpack.c.l.b16 %v1040
    %v1127 = vunpack.c.l.b16 %v1041
    %v1128 = vunpack.c.l.b16 %v1042
    %v1129 = vunpack.c.l.b16 %v1043
    %v1130 = vunpack.c.l.b16 %v1044
    %v1131 = vpack.c.b16 %v1116, %v1115
    %v1132 = vpack.c.b16 %v1118, %v1117
    %v1133 = vpack.c.b16 %v1120, %v1119
    %v1134 = vpack.c.b16 %v1122, %v1121
    %v1135 = vpack.c.b16 %v1124, %v1123
    %v1136 = vpack.c.b16 %v1126, %v1125
    %v1137 = vpack.c.b16 %v1128, %v1127
    %v1138 = vpack.c.b16 %v1130, %v1129
    %1147 = vmatprep.subr.bf16.mxu0 0
    %1148 = vmatpush1.bf16.msra.mxu0 %v1138
    %1149 = vmatprep.subr.bf16.mxu0 0
    %1150 = vmatpush1.bf16.msra.mxu0 %v1137
    %1151 = vmatprep.subr.bf16.mxu0 0
    %1152 = vmatpush1.bf16.msra.mxu0 %v1136
    %1153 = vmatprep.subr.bf16.mxu0 0
    %1154 = vmatpush1.bf16.msra.mxu0 %v1135
    %1155 = vmatprep.subr.bf16.mxu0 0
    %1156 = vmatpush1.bf16.msra.mxu0 %v1134
    %1157 = vmatprep.subr.bf16.mxu0 0
    %1158 = vmatpush1.bf16.msra.mxu0 %v1133
    %1159 = vmatprep.subr.bf16.mxu0 0
    %1160 = vmatpush1.bf16.msra.mxu0 %v1132
    %1161 = vmatprep.subr.bf16.mxu0 0
    %1162 = vmatpush1.bf16.msra.mxu0 %v1131
    %1163 = vmatprep.subr.bf16.mxu0 0
    %1164 = vmatpush2.bf16.msra.mxu0 0
    %1165 = vmatprep.subr.bf16.mxu0 0
    %1166 = vmatpush2.bf16.msra.mxu0 0
    %1167 = vmatprep.subr.bf16.mxu0 0
    %1168 = vmatpush2.bf16.msra.mxu0 0
    %1169 = vmatprep.subr.bf16.mxu0 0
    %1170 = vmatpush2.bf16.msra.mxu0 0
    %1171 = vmatprep.subr.bf16.mxu0 0
    %1172 = vmatpush2.bf16.msra.mxu0 0
    %1173 = vmatprep.subr.bf16.mxu0 0
    %1174 = vmatpush2.bf16.msra.mxu0 0
    %1175 = vmatprep.subr.bf16.mxu0 0
    %1176 = vmatpush2.bf16.msra.mxu0 0
    %1177 = vmatprep.subr.bf16.mxu0 0
    %1178 = vmatpush2.bf16.msra.mxu0 0
    %1179 = vmatprep.mubr.bf16.mxu0 0
    %1180 = vmatmul.mubr.bf16.gmra.mxu0 %v1081
    %v1181 = vpop.f32.mrf.mxu0
    %v1182 = vadd.f32 0.0, %v1181
    %v1183 = vpop.f32.mrf.mxu0
    %v1184 = vpop.f32.mrf.mxu0
    %v1185 = vadd.f32 0.0, %v1184
    %v1186 = vpop.f32.mrf.mxu0
    %1187 = vmatprep.mubr.bf16.mxu0 0
    %1188 = vmatmul.mubr.bf16.gmra.mxu0 %v1082
    %v1189 = vpop.f32.mrf.mxu0
    %v1190 = vadd.f32 0.0, %v1189
    %v1191 = vpop.f32.mrf.mxu0
    %v1192 = vpop.f32.mrf.mxu0
    %v1193 = vadd.f32 0.0, %v1192
    %v1194 = vpop.f32.mrf.mxu0
    %1195 = vmatprep.mubr.bf16.mxu0 0
    %1196 = vmatmul.mubr.bf16.gmra.mxu0 %v1083
    %v1197 = vpop.f32.mrf.mxu0
    %v1198 = vadd.f32 0.0, %v1197
    %v1199 = vpop.f32.mrf.mxu0
    %v1200 = vpop.f32.mrf.mxu0
    %v1201 = vadd.f32 0.0, %v1200
    %v1202 = vpop.f32.mrf.mxu0
    %1203 = vmatprep.mubr.bf16.mxu0 0
    %1204 = vmatmul.mubr.bf16.gmra.mxu0 %v1084
    %v1205 = vpop.f32.mrf.mxu0
    %v1206 = vadd.f32 0.0, %v1205
    %v1207 = vpop.f32.mrf.mxu0
    %v1208 = vpop.f32.mrf.mxu0
    %v1209 = vadd.f32 0.0, %v1208
    %v1210 = vpop.f32.mrf.mxu0
    %1211 = vmatprep.mubr.bf16.mxu0 0
    %1212 = vmatmul.mubr.bf16.gmra.mxu0 %v1085
    %v1213 = vpop.f32.mrf.mxu0
    %v1214 = vpop.f32.mrf.mxu0
    %v1215 = vpop.f32.mrf.mxu0
    %v1216 = vadd.f32 0.0, %v1215
    %v1217 = vpop.f32.mrf.mxu0
    %1218 = vmatprep.mubr.bf16.mxu0 0
    %1219 = vmatmul.mubr.bf16.gmra.mxu0 %v1086
    %v1220 = vpop.f32.mrf.mxu0
    %v1221 = vadd.f32 0.0, %v1220
    %v1222 = vpop.f32.mrf.mxu0
    %v1223 = vpop.f32.mrf.mxu0
    %v1224 = vadd.f32 0.0, %v1223
    %v1225 = vpop.f32.mrf.mxu0
    %1226 = vmatprep.mubr.bf16.mxu0 0
    %1227 = vmatmul.mubr.bf16.gmra.mxu0 %v1087
    %v1228 = vpop.f32.mrf.mxu0
    %v1229 = vadd.f32 0.0, %v1228
    %v1230 = vpop.f32.mrf.mxu0
    %v1231 = vpop.f32.mrf.mxu0
    %v1232 = vadd.f32 0.0, %v1231
    %v1233 = vpop.f32.mrf.mxu0
    %1234 = vmatprep.mubr.bf16.mxu0 0
    %1235 = vmatmul.mubr.bf16.gmra.mxu0 %v1088
    %v1236 = vpop.f32.mrf.mxu0
    %v1237 = vadd.f32 0.0, %v1236
    %v1238 = vpop.f32.mrf.mxu0
    %v1239 = vpop.f32.mrf.mxu0
    %v1240 = vadd.f32 0.0, %v1239
    %v1241 = vpop.f32.mrf.mxu0
    %1242 = vmatprep.mubr.bf16.mxu0 0
    %1243 = vmatmul.mubr.bf16.gmra.mxu0 %v1089
    %v1244 = vpop.f32.mrf.mxu0
    %v1245 = vadd.f32 0.0, %v1244
    %v1246 = vpop.f32.mrf.mxu0
    %v1247 = vpop.f32.mrf.mxu0
    %v1248 = vpop.f32.mrf.mxu0
    %1249 = vdwg.mxu0
    %v1250 = vadd.f32 %v993, %v1182
    %v1251 = vadd.f32 %v994, %v1185
    %v1252 = vadd.f32 %v995, %v1190
    %v1253 = vadd.f32 %v996, %v1193
    %v1254 = vadd.f32 %v997, %v1198
    %v1255 = vadd.f32 %v998, %v1201
    %v1256 = vadd.f32 %v999, %v1206
    %v1257 = vadd.f32 %v1000, %v1209
    %v1258 = vadd.f32 %v1001, %v1216
    %v1259 = vadd.f32 %v1002, %v1221
    %v1260 = vadd.f32 %v1003, %v1224
    %v1261 = vadd.f32 %v1004, %v1229
    %v1262 = vadd.f32 %v1005, %v1232
    %v1263 = vadd.f32 %v1006, %v1237
    %v1264 = vadd.f32 %v1007, %v1240
    %v1265 = vadd.f32 %v1008, %v1245
    %s1266 = scalar_lea.vmem %s2, 512
    %v1267 = vld [vmem:[%s1266] sm:$0xf]
    %v1268 = vld [vmem:[%s1266 + $0x4] sm:$0xf]
    %v1269 = vld [vmem:[%s1266 + $0x8] sm:$0xf]
    %v1270 = vld [vmem:[%s1266 + $0xc] sm:$0xf]
    %v1271 = vld [vmem:[%s1266 + $0x10] sm:$0xf]
    %v1272 = vld [vmem:[%s1266 + $0x14] sm:$0xf]
    %v1273 = vld [vmem:[%s1266 + $0x18] sm:$0xf]
    %v1274 = vld [vmem:[%s1266 + $0x1c] sm:$0xf]
    %v1275 = vld [vmem:[%s1266 + $0x20] sm:$0xf]
    %v1276 = vld [vmem:[%s1266 + $0x24] sm:$0xf]
    %v1277 = vld [vmem:[%s1266 + $0x28] sm:$0xf]
    %v1278 = vld [vmem:[%s1266 + $0x2c] sm:$0xf]
    %v1279 = vld [vmem:[%s1266 + $0x30] sm:$0xf]
    %v1280 = vld [vmem:[%s1266 + $0x34] sm:$0xf]
    %v1281 = vld [vmem:[%s1266 + $0x38] sm:$0xf]
    %v1282 = vld [vmem:[%s1266 + $0x3c] sm:$0xf]
    %v1299 = vunpack.c.l.b16 %v1267
    %v1300 = vunpack.c.l.b16 %v1268
    %v1301 = vunpack.c.l.b16 %v1269
    %v1302 = vunpack.c.l.b16 %v1270
    %v1303 = vunpack.c.l.b16 %v1271
    %v1304 = vunpack.c.l.b16 %v1272
    %v1305 = vunpack.c.l.b16 %v1273
    %v1306 = vunpack.c.l.b16 %v1274
    %v1307 = vunpack.c.l.b16 %v1275
    %v1308 = vunpack.c.l.b16 %v1276
    %v1309 = vunpack.c.l.b16 %v1277
    %v1310 = vunpack.c.l.b16 %v1278
    %v1311 = vunpack.c.l.b16 %v1279
    %v1312 = vunpack.c.l.b16 %v1280
    %v1313 = vunpack.c.l.b16 %v1281
    %v1314 = vunpack.c.l.b16 %v1282
    %v1315 = vpack.c.b16 %v1300, %v1299
    %v1316 = vpack.c.b16 %v1302, %v1301
    %v1317 = vpack.c.b16 %v1304, %v1303
    %v1318 = vpack.c.b16 %v1306, %v1305
    %v1319 = vpack.c.b16 %v1308, %v1307
    %v1320 = vpack.c.b16 %v1310, %v1309
    %v1321 = vpack.c.b16 %v1312, %v1311
    %v1322 = vpack.c.b16 %v1314, %v1313
    %1331 = vmatprep.subr.bf16.mxu0 0
    %1332 = vmatpush1.bf16.msra.mxu0 %v1322
    %1333 = vmatprep.subr.bf16.mxu0 0
    %1334 = vmatpush1.bf16.msra.mxu0 %v1321
    %1335 = vmatprep.subr.bf16.mxu0 0
    %1336 = vmatpush1.bf16.msra.mxu0 %v1320
    %1337 = vmatprep.subr.bf16.mxu0 0
    %1338 = vmatpush1.bf16.msra.mxu0 %v1319
    %1339 = vmatprep.subr.bf16.mxu0 0
    %1340 = vmatpush1.bf16.msra.mxu0 %v1318
    %1341 = vmatprep.subr.bf16.mxu0 0
    %1342 = vmatpush1.bf16.msra.mxu0 %v1317
    %1343 = vmatprep.subr.bf16.mxu0 0
    %1344 = vmatpush1.bf16.msra.mxu0 %v1316
    %1345 = vmatprep.subr.bf16.mxu0 0
    %1346 = vmatpush1.bf16.msra.mxu0 %v1315
    %1347 = vmatprep.subr.bf16.mxu0 0
    %1348 = vmatpush2.bf16.msra.mxu0 0
    %1349 = vmatprep.subr.bf16.mxu0 0
    %1350 = vmatpush2.bf16.msra.mxu0 0
    %1351 = vmatprep.subr.bf16.mxu0 0
    %1352 = vmatpush2.bf16.msra.mxu0 0
    %1353 = vmatprep.subr.bf16.mxu0 0
    %1354 = vmatpush2.bf16.msra.mxu0 0
    %1355 = vmatprep.subr.bf16.mxu0 0
    %1356 = vmatpush2.bf16.msra.mxu0 0
    %1357 = vmatprep.subr.bf16.mxu0 0
    %1358 = vmatpush2.bf16.msra.mxu0 0
    %1359 = vmatprep.subr.bf16.mxu0 0
    %1360 = vmatpush2.bf16.msra.mxu0 0
    %1361 = vmatprep.subr.bf16.mxu0 0
    %1362 = vmatpush2.bf16.msra.mxu0 0
    %1363 = vmatprep.mubr.bf16.mxu0 0
    %1364 = vmatmul.mubr.bf16.gmra.mxu0 %v1081
    %v1365 = vpop.f32.mrf.mxu0
    %v1366 = vpop.f32.mrf.mxu0
    %v1367 = vpop.f32.mrf.mxu0
    %v1368 = vadd.f32 0.0, %v1367
    %v1369 = vpop.f32.mrf.mxu0
    %1370 = vmatprep.mubr.bf16.mxu0 0
    %1371 = vmatmul.mubr.bf16.gmra.mxu0 %v1082
    %v1372 = vpop.f32.mrf.mxu0
    %v1373 = vadd.f32 0.0, %v1372
    %v1374 = vpop.f32.mrf.mxu0
    %v1375 = vpop.f32.mrf.mxu0
    %v1376 = vadd.f32 0.0, %v1375
    %v1377 = vpop.f32.mrf.mxu0
    %1378 = vmatprep.mubr.bf16.mxu0 0
    %1379 = vmatmul.mubr.bf16.gmra.mxu0 %v1083
    %v1380 = vpop.f32.mrf.mxu0
    %v1381 = vadd.f32 0.0, %v1380
    %v1382 = vpop.f32.mrf.mxu0
    %v1383 = vpop.f32.mrf.mxu0
    %v1384 = vadd.f32 0.0, %v1383
    %v1385 = vpop.f32.mrf.mxu0
    %1386 = vmatprep.mubr.bf16.mxu0 0
    %1387 = vmatmul.mubr.bf16.gmra.mxu0 %v1084
    %v1388 = vpop.f32.mrf.mxu0
    %v1389 = vadd.f32 0.0, %v1388
    %v1390 = vpop.f32.mrf.mxu0
    %v1391 = vpop.f32.mrf.mxu0
    %v1392 = vadd.f32 0.0, %v1391
    %v1393 = vpop.f32.mrf.mxu0
    %1394 = vmatprep.mubr.bf16.mxu0 0
    %1395 = vmatmul.mubr.bf16.gmra.mxu0 %v1085
    %v1396 = vpop.f32.mrf.mxu0
    %v1397 = vadd.f32 0.0, %v1396
    %v1398 = vpop.f32.mrf.mxu0
    %v1399 = vpop.f32.mrf.mxu0
    %v1400 = vpop.f32.mrf.mxu0
    %1401 = vmatprep.mubr.bf16.mxu0 0
    %1402 = vmatmul.mubr.bf16.gmra.mxu0 %v1086
    %v1403 = vpop.f32.mrf.mxu0
    %v1404 = vadd.f32 0.0, %v1403
    %v1405 = vpop.f32.mrf.mxu0
    %v1406 = vpop.f32.mrf.mxu0
    %v1407 = vadd.f32 0.0, %v1406
    %v1408 = vpop.f32.mrf.mxu0
    %1409 = vmatprep.mubr.bf16.mxu0 0
    %1410 = vmatmul.mubr.bf16.gmra.mxu0 %v1087
    %v1411 = vpop.f32.mrf.mxu0
    %v1412 = vadd.f32 0.0, %v1411
    %v1413 = vpop.f32.mrf.mxu0
    %v1414 = vpop.f32.mrf.mxu0
    %v1415 = vadd.f32 0.0, %v1414
    %v1416 = vpop.f32.mrf.mxu0
    %1417 = vmatprep.mubr.bf16.mxu0 0
    %1418 = vmatmul.mubr.bf16.gmra.mxu0 %v1088
    %v1419 = vpop.f32.mrf.mxu0
    %v1420 = vadd.f32 0.0, %v1419
    %v1421 = vpop.f32.mrf.mxu0
    %v1422 = vpop.f32.mrf.mxu0
    %v1423 = vadd.f32 0.0, %v1422
    %v1424 = vpop.f32.mrf.mxu0
    %1425 = vmatprep.mubr.bf16.mxu0 0
    %1426 = vmatmul.mubr.bf16.gmra.mxu0 %v1089
    %v1427 = vpop.f32.mrf.mxu0
    %v1428 = vadd.f32 0.0, %v1427
    %v1429 = vpop.f32.mrf.mxu0
    %v1430 = vpop.f32.mrf.mxu0
    %v1431 = vadd.f32 0.0, %v1430
    %v1432 = vpop.f32.mrf.mxu0
    %1433 = vdwg.mxu0
    %v1434 = vadd.f32 %v1250, %v1368
    %v1435 = vadd.f32 %v1251, %v1373
    %v1436 = vadd.f32 %v1252, %v1376
    %v1437 = vadd.f32 %v1253, %v1381
    %v1438 = vadd.f32 %v1254, %v1384
    %v1439 = vadd.f32 %v1255, %v1389
    %v1440 = vadd.f32 %v1256, %v1392
    %v1441 = vadd.f32 %v1257, %v1397
    %v1442 = vadd.f32 %v1258, %v1404
    %v1443 = vadd.f32 %v1259, %v1407
    %v1444 = vadd.f32 %v1260, %v1412
    %v1445 = vadd.f32 %v1261, %v1415
    %v1446 = vadd.f32 %v1262, %v1420
    %v1447 = vadd.f32 %v1263, %v1423
    %v1448 = vadd.f32 %v1264, %v1428
    %v1449 = vadd.f32 %v1265, %v1431
    %s1450 = scalar_lea.vmem [#allocation7], 216
    %v1451 = vld [vmem:[%s1450] sm:$0xf]
    %v1452 = vld [vmem:[%s1450 + $0x4] sm:$0xf]
    %v1453 = vld [vmem:[%s1450 + $0x8] sm:$0xf]
    %v1454 = vld [vmem:[%s1450 + $0xc] sm:$0xf]
    %v1455 = vld [vmem:[%s1450 + $0x10] sm:$0xf]
    %v1456 = vld [vmem:[%s1450 + $0x14] sm:$0xf]
    %v1457 = vld [vmem:[%s1450 + $0x18] sm:$0xf]
    %v1458 = vld [vmem:[%s1450 + $0x1c] sm:$0xf]
    %v1459 = vld [vmem:[%s1450 + $0x20] sm:$0xf]
    %v1460 = vld [vmem:[%s1450 + $0x24] sm:$0xf]
    %v1461 = vld [vmem:[%s1450 + $0x28] sm:$0xf]
    %v1462 = vld [vmem:[%s1450 + $0x2c] sm:$0xf]
    %v1463 = vld [vmem:[%s1450 + $0x30] sm:$0xf]
    %v1464 = vld [vmem:[%s1450 + $0x34] sm:$0xf]
    %v1465 = vld [vmem:[%s1450 + $0x38] sm:$0xf]
    %v1466 = vld [vmem:[%s1450 + $0x3c] sm:$0xf]
    %v1467 = vld [vmem:[%s1450 + $0x40] sm:$0xf]
    %v1468 = vld [vmem:[%s1450 + $0x44] sm:$0xf]
    %s1469 = scalar_lea.vmem %s2, 192
    %v1470 = vld [vmem:[%s1469] sm:$0xf]
    %v1471 = vld [vmem:[%s1469 + $0x4] sm:$0xf]
    %v1472 = vld [vmem:[%s1469 + $0x8] sm:$0xf]
    %v1473 = vld [vmem:[%s1469 + $0xc] sm:$0xf]
    %v1474 = vld [vmem:[%s1469 + $0x10] sm:$0xf]
    %v1475 = vld [vmem:[%s1469 + $0x14] sm:$0xf]
    %v1476 = vld [vmem:[%s1469 + $0x18] sm:$0xf]
    %v1477 = vld [vmem:[%s1469 + $0x1c] sm:$0xf]
    %v1478 = vld [vmem:[%s1469 + $0x20] sm:$0xf]
    %v1479 = vld [vmem:[%s1469 + $0x24] sm:$0xf]
    %v1480 = vld [vmem:[%s1469 + $0x28] sm:$0xf]
    %v1481 = vld [vmem:[%s1469 + $0x2c] sm:$0xf]
    %v1482 = vld [vmem:[%s1469 + $0x30] sm:$0xf]
    %v1483 = vld [vmem:[%s1469 + $0x34] sm:$0xf]
    %v1484 = vld [vmem:[%s1469 + $0x38] sm:$0xf]
    %v1485 = vld [vmem:[%s1469 + $0x3c] sm:$0xf]
    %v1504 = vunpack.c.l.b16 %v1451
    %v1505 = vunpack.c.l.b16 %v1452
    %v1506 = vunpack.c.l.b16 %v1453
    %v1507 = vunpack.c.l.b16 %v1454
    %v1508 = vunpack.c.l.b16 %v1455
    %v1509 = vunpack.c.l.b16 %v1456
    %v1510 = vunpack.c.l.b16 %v1457
    %v1511 = vunpack.c.l.b16 %v1458
    %v1512 = vunpack.c.l.b16 %v1459
    %v1513 = vunpack.c.l.b16 %v1460
    %v1514 = vunpack.c.l.b16 %v1461
    %v1515 = vunpack.c.l.b16 %v1462
    %v1516 = vunpack.c.l.b16 %v1463
    %v1517 = vunpack.c.l.b16 %v1464
    %v1518 = vunpack.c.l.b16 %v1465
    %v1519 = vunpack.c.l.b16 %v1466
    %v1520 = vunpack.c.l.b16 %v1467
    %v1521 = vunpack.c.l.b16 %v1468
    %v1522 = vpack.c.b16 %v1505, %v1504
    %v1523 = vpack.c.b16 %v1507, %v1506
    %v1524 = vpack.c.b16 %v1509, %v1508
    %v1525 = vpack.c.b16 %v1511, %v1510
    %v1526 = vpack.c.b16 %v1513, %v1512
    %v1527 = vpack.c.b16 %v1515, %v1514
    %v1528 = vpack.c.b16 %v1517, %v1516
    %v1529 = vpack.c.b16 %v1519, %v1518
    %v1530 = vpack.c.b16 %v1521, %v1520
    %v1556 = vunpack.c.l.b16 %v1470
    %v1557 = vunpack.c.l.b16 %v1471
    %v1558 = vunpack.c.l.b16 %v1472
    %v1559 = vunpack.c.l.b16 %v1473
    %v1560 = vunpack.c.l.b16 %v1474
    %v1561 = vunpack.c.l.b16 %v1475
    %v1562 = vunpack.c.l.b16 %v1476
    %v1563 = vunpack.c.l.b16 %v1477
    %v1564 = vunpack.c.l.b16 %v1478
    %v1565 = vunpack.c.l.b16 %v1479
    %v1566 = vunpack.c.l.b16 %v1480
    %v1567 = vunpack.c.l.b16 %v1481
    %v1568 = vunpack.c.l.b16 %v1482
    %v1569 = vunpack.c.l.b16 %v1483
    %v1570 = vunpack.c.l.b16 %v1484
    %v1571 = vunpack.c.l.b16 %v1485
    %v1572 = vpack.c.b16 %v1557, %v1556
    %v1573 = vpack.c.b16 %v1559, %v1558
    %v1574 = vpack.c.b16 %v1561, %v1560
    %v1575 = vpack.c.b16 %v1563, %v1562
    %v1576 = vpack.c.b16 %v1565, %v1564
    %v1577 = vpack.c.b16 %v1567, %v1566
    %v1578 = vpack.c.b16 %v1569, %v1568
    %v1579 = vpack.c.b16 %v1571, %v1570
    %1588 = vmatprep.subr.bf16.mxu0 0
    %1589 = vmatpush1.bf16.msra.mxu0 %v1579
    %1590 = vmatprep.subr.bf16.mxu0 0
    %1591 = vmatpush1.bf16.msra.mxu0 %v1578
    %1592 = vmatprep.subr.bf16.mxu0 0
    %1593 = vmatpush1.bf16.msra.mxu0 %v1577
    %1594 = vmatprep.subr.bf16.mxu0 0
    %1595 = vmatpush1.bf16.msra.mxu0 %v1576
    %1596 = vmatprep.subr.bf16.mxu0 0
    %1597 = vmatpush1.bf16.msra.mxu0 %v1575
    %1598 = vmatprep.subr.bf16.mxu0 0
    %1599 = vmatpush1.bf16.msra.mxu0 %v1574
    %1600 = vmatprep.subr.bf16.mxu0 0
    %1601 = vmatpush1.bf16.msra.mxu0 %v1573
    %1602 = vmatprep.subr.bf16.mxu0 0
    %1603 = vmatpush1.bf16.msra.mxu0 %v1572
    %1604 = vmatprep.subr.bf16.mxu0 0
    %1605 = vmatpush2.bf16.msra.mxu0 0
    %1606 = vmatprep.subr.bf16.mxu0 0
    %1607 = vmatpush2.bf16.msra.mxu0 0
    %1608 = vmatprep.subr.bf16.mxu0 0
    %1609 = vmatpush2.bf16.msra.mxu0 0
    %1610 = vmatprep.subr.bf16.mxu0 0
    %1611 = vmatpush2.bf16.msra.mxu0 0
    %1612 = vmatprep.subr.bf16.mxu0 0
    %1613 = vmatpush2.bf16.msra.mxu0 0
    %1614 = vmatprep.subr.bf16.mxu0 0
    %1615 = vmatpush2.bf16.msra.mxu0 0
    %1616 = vmatprep.subr.bf16.mxu0 0
    %1617 = vmatpush2.bf16.msra.mxu0 0
    %1618 = vmatprep.subr.bf16.mxu0 0
    %1619 = vmatpush2.bf16.msra.mxu0 0
    %1620 = vmatprep.mubr.bf16.mxu0 0
    %1621 = vmatmul.mubr.bf16.gmra.mxu0 %v1522
    %v1622 = vpop.f32.mrf.mxu0
    %v1623 = vadd.f32 0.0, %v1622
    %v1624 = vpop.f32.mrf.mxu0
    %v1625 = vpop.f32.mrf.mxu0
    %v1626 = vadd.f32 0.0, %v1625
    %v1627 = vpop.f32.mrf.mxu0
    %1628 = vmatprep.mubr.bf16.mxu0 0
    %1629 = vmatmul.mubr.bf16.gmra.mxu0 %v1523
    %v1630 = vpop.f32.mrf.mxu0
    %v1631 = vadd.f32 0.0, %v1630
    %v1632 = vpop.f32.mrf.mxu0
    %v1633 = vpop.f32.mrf.mxu0
    %v1634 = vadd.f32 0.0, %v1633
    %v1635 = vpop.f32.mrf.mxu0
    %1636 = vmatprep.mubr.bf16.mxu0 0
    %1637 = vmatmul.mubr.bf16.gmra.mxu0 %v1524
    %v1638 = vpop.f32.mrf.mxu0
    %v1639 = vadd.f32 0.0, %v1638
    %v1640 = vpop.f32.mrf.mxu0
    %v1641 = vpop.f32.mrf.mxu0
    %v1642 = vadd.f32 0.0, %v1641
    %v1643 = vpop.f32.mrf.mxu0
    %1644 = vmatprep.mubr.bf16.mxu0 0
    %1645 = vmatmul.mubr.bf16.gmra.mxu0 %v1525
    %v1646 = vpop.f32.mrf.mxu0
    %v1647 = vadd.f32 0.0, %v1646
    %v1648 = vpop.f32.mrf.mxu0
    %v1649 = vpop.f32.mrf.mxu0
    %v1650 = vadd.f32 0.0, %v1649
    %v1651 = vpop.f32.mrf.mxu0
    %1652 = vmatprep.mubr.bf16.mxu0 0
    %1653 = vmatmul.mubr.bf16.gmra.mxu0 %v1526
    %v1654 = vpop.f32.mrf.mxu0
    %v1655 = vpop.f32.mrf.mxu0
    %v1656 = vpop.f32.mrf.mxu0
    %v1657 = vadd.f32 0.0, %v1656
    %v1658 = vpop.f32.mrf.mxu0
    %1659 = vmatprep.mubr.bf16.mxu0 0
    %1660 = vmatmul.mubr.bf16.gmra.mxu0 %v1527
    %v1661 = vpop.f32.mrf.mxu0
    %v1662 = vadd.f32 0.0, %v1661
    %v1663 = vpop.f32.mrf.mxu0
    %v1664 = vpop.f32.mrf.mxu0
    %v1665 = vadd.f32 0.0, %v1664
    %v1666 = vpop.f32.mrf.mxu0
    %1667 = vmatprep.mubr.bf16.mxu0 0
    %1668 = vmatmul.mubr.bf16.gmra.mxu0 %v1528
    %v1669 = vpop.f32.mrf.mxu0
    %v1670 = vadd.f32 0.0, %v1669
    %v1671 = vpop.f32.mrf.mxu0
    %v1672 = vpop.f32.mrf.mxu0
    %v1673 = vadd.f32 0.0, %v1672
    %v1674 = vpop.f32.mrf.mxu0
    %1675 = vmatprep.mubr.bf16.mxu0 0
    %1676 = vmatmul.mubr.bf16.gmra.mxu0 %v1529
    %v1677 = vpop.f32.mrf.mxu0
    %v1678 = vadd.f32 0.0, %v1677
    %v1679 = vpop.f32.mrf.mxu0
    %v1680 = vpop.f32.mrf.mxu0
    %v1681 = vadd.f32 0.0, %v1680
    %v1682 = vpop.f32.mrf.mxu0
    %1683 = vmatprep.mubr.bf16.mxu0 0
    %1684 = vmatmul.mubr.bf16.gmra.mxu0 %v1530
    %v1685 = vpop.f32.mrf.mxu0
    %v1686 = vadd.f32 0.0, %v1685
    %v1687 = vpop.f32.mrf.mxu0
    %v1688 = vpop.f32.mrf.mxu0
    %v1689 = vpop.f32.mrf.mxu0
    %1690 = vdwg.mxu0
    %v1691 = vadd.f32 %v1434, %v1623
    %v1692 = vadd.f32 %v1435, %v1626
    %v1693 = vadd.f32 %v1436, %v1631
    %v1694 = vadd.f32 %v1437, %v1634
    %v1695 = vadd.f32 %v1438, %v1639
    %v1696 = vadd.f32 %v1439, %v1642
    %v1697 = vadd.f32 %v1440, %v1647
    %v1698 = vadd.f32 %v1441, %v1650
    %v1699 = vadd.f32 %v1442, %v1657
    %v1700 = vadd.f32 %v1443, %v1662
    %v1701 = vadd.f32 %v1444, %v1665
    %v1702 = vadd.f32 %v1445, %v1670
    %v1703 = vadd.f32 %v1446, %v1673
    %v1704 = vadd.f32 %v1447, %v1678
    %v1705 = vadd.f32 %v1448, %v1681
    %v1706 = vadd.f32 %v1449, %v1686
    %s1707 = scalar_lea.vmem [#allocation7], 288
    %v1708 = vld [vmem:[%s1707] sm:$0xf]
    %v1709 = vld [vmem:[%s1707 + $0x4] sm:$0xf]
    %v1710 = vld [vmem:[%s1707 + $0x8] sm:$0xf]
    %v1711 = vld [vmem:[%s1707 + $0xc] sm:$0xf]
    %v1712 = vld [vmem:[%s1707 + $0x10] sm:$0xf]
    %v1713 = vld [vmem:[%s1707 + $0x14] sm:$0xf]
    %v1714 = vld [vmem:[%s1707 + $0x18] sm:$0xf]
    %v1715 = vld [vmem:[%s1707 + $0x1c] sm:$0xf]
    %v1716 = vld [vmem:[%s1707 + $0x20] sm:$0xf]
    %v1717 = vld [vmem:[%s1707 + $0x24] sm:$0xf]
    %v1718 = vld [vmem:[%s1707 + $0x28] sm:$0xf]
    %v1719 = vld [vmem:[%s1707 + $0x2c] sm:$0xf]
    %v1720 = vld [vmem:[%s1707 + $0x30] sm:$0xf]
    %v1721 = vld [vmem:[%s1707 + $0x34] sm:$0xf]
    %v1722 = vld [vmem:[%s1707 + $0x38] sm:$0xf]
    %v1723 = vld [vmem:[%s1707 + $0x3c] sm:$0xf]
    %v1724 = vld [vmem:[%s1707 + $0x40] sm:$0xf]
    %v1725 = vld [vmem:[%s1707 + $0x44] sm:$0xf]
    %s1726 = scalar_lea.vmem %s2, 256
    %v1727 = vld [vmem:[%s1726] sm:$0xf]
    %v1728 = vld [vmem:[%s1726 + $0x4] sm:$0xf]
    %v1729 = vld [vmem:[%s1726 + $0x8] sm:$0xf]
    %v1730 = vld [vmem:[%s1726 + $0xc] sm:$0xf]
    %v1731 = vld [vmem:[%s1726 + $0x10] sm:$0xf]
    %v1732 = vld [vmem:[%s1726 + $0x14] sm:$0xf]
    %v1733 = vld [vmem:[%s1726 + $0x18] sm:$0xf]
    %v1734 = vld [vmem:[%s1726 + $0x1c] sm:$0xf]
    %v1735 = vld [vmem:[%s1726 + $0x20] sm:$0xf]
    %v1736 = vld [vmem:[%s1726 + $0x24] sm:$0xf]
    %v1737 = vld [vmem:[%s1726 + $0x28] sm:$0xf]
    %v1738 = vld [vmem:[%s1726 + $0x2c] sm:$0xf]
    %v1739 = vld [vmem:[%s1726 + $0x30] sm:$0xf]
    %v1740 = vld [vmem:[%s1726 + $0x34] sm:$0xf]
    %v1741 = vld [vmem:[%s1726 + $0x38] sm:$0xf]
    %v1742 = vld [vmem:[%s1726 + $0x3c] sm:$0xf]
    %v1761 = vunpack.c.l.b16 %v1708
    %v1762 = vunpack.c.l.b16 %v1709
    %v1763 = vunpack.c.l.b16 %v1710
    %v1764 = vunpack.c.l.b16 %v1711
    %v1765 = vunpack.c.l.b16 %v1712
    %v1766 = vunpack.c.l.b16 %v1713
    %v1767 = vunpack.c.l.b16 %v1714
    %v1768 = vunpack.c.l.b16 %v1715
    %v1769 = vunpack.c.l.b16 %v1716
    %v1770 = vunpack.c.l.b16 %v1717
    %v1771 = vunpack.c.l.b16 %v1718
    %v1772 = vunpack.c.l.b16 %v1719
    %v1773 = vunpack.c.l.b16 %v1720
    %v1774 = vunpack.c.l.b16 %v1721
    %v1775 = vunpack.c.l.b16 %v1722
    %v1776 = vunpack.c.l.b16 %v1723
    %v1777 = vunpack.c.l.b16 %v1724
    %v1778 = vunpack.c.l.b16 %v1725
    %v1779 = vpack.c.b16 %v1762, %v1761
    %v1780 = vpack.c.b16 %v1764, %v1763
    %v1781 = vpack.c.b16 %v1766, %v1765
    %v1782 = vpack.c.b16 %v1768, %v1767
    %v1783 = vpack.c.b16 %v1770, %v1769
    %v1784 = vpack.c.b16 %v1772, %v1771
    %v1785 = vpack.c.b16 %v1774, %v1773
    %v1786 = vpack.c.b16 %v1776, %v1775
    %v1787 = vpack.c.b16 %v1778, %v1777
    %v1813 = vunpack.c.l.b16 %v1727
    %v1814 = vunpack.c.l.b16 %v1728
    %v1815 = vunpack.c.l.b16 %v1729
    %v1816 = vunpack.c.l.b16 %v1730
    %v1817 = vunpack.c.l.b16 %v1731
    %v1818 = vunpack.c.l.b16 %v1732
    %v1819 = vunpack.c.l.b16 %v1733
    %v1820 = vunpack.c.l.b16 %v1734
    %v1821 = vunpack.c.l.b16 %v1735
    %v1822 = vunpack.c.l.b16 %v1736
    %v1823 = vunpack.c.l.b16 %v1737
    %v1824 = vunpack.c.l.b16 %v1738
    %v1825 = vunpack.c.l.b16 %v1739
    %v1826 = vunpack.c.l.b16 %v1740
    %v1827 = vunpack.c.l.b16 %v1741
    %v1828 = vunpack.c.l.b16 %v1742
    %v1829 = vpack.c.b16 %v1814, %v1813
    %v1830 = vpack.c.b16 %v1816, %v1815
    %v1831 = vpack.c.b16 %v1818, %v1817
    %v1832 = vpack.c.b16 %v1820, %v1819
    %v1833 = vpack.c.b16 %v1822, %v1821
    %v1834 = vpack.c.b16 %v1824, %v1823
    %v1835 = vpack.c.b16 %v1826, %v1825
    %v1836 = vpack.c.b16 %v1828, %v1827
    %1845 = vmatprep.subr.bf16.mxu0 0
    %1846 = vmatpush1.bf16.msra.mxu0 %v1836
    %1847 = vmatprep.subr.bf16.mxu0 0
    %1848 = vmatpush1.bf16.msra.mxu0 %v1835
    %1849 = vmatprep.subr.bf16.mxu0 0
    %1850 = vmatpush1.bf16.msra.mxu0 %v1834
    %1851 = vmatprep.subr.bf16.mxu0 0
    %1852 = vmatpush1.bf16.msra.mxu0 %v1833
    %1853 = vmatprep.subr.bf16.mxu0 0
    %1854 = vmatpush1.bf16.msra.mxu0 %v1832
    %1855 = vmatprep.subr.bf16.mxu0 0
    %1856 = vmatpush1.bf16.msra.mxu0 %v1831
    %1857 = vmatprep.subr.bf16.mxu0 0
    %1858 = vmatpush1.bf16.msra.mxu0 %v1830
    %1859 = vmatprep.subr.bf16.mxu0 0
    %1860 = vmatpush1.bf16.msra.mxu0 %v1829
    %1861 = vmatprep.subr.bf16.mxu0 0
    %1862 = vmatpush2.bf16.msra.mxu0 0
    %1863 = vmatprep.subr.bf16.mxu0 0
    %1864 = vmatpush2.bf16.msra.mxu0 0
    %1865 = vmatprep.subr.bf16.mxu0 0
    %1866 = vmatpush2.bf16.msra.mxu0 0
    %1867 = vmatprep.subr.bf16.mxu0 0
    %1868 = vmatpush2.bf16.msra.mxu0 0
    %1869 = vmatprep.subr.bf16.mxu0 0
    %1870 = vmatpush2.bf16.msra.mxu0 0
    %1871 = vmatprep.subr.bf16.mxu0 0
    %1872 = vmatpush2.bf16.msra.mxu0 0
    %1873 = vmatprep.subr.bf16.mxu0 0
    %1874 = vmatpush2.bf16.msra.mxu0 0
    %1875 = vmatprep.subr.bf16.mxu0 0
    %1876 = vmatpush2.bf16.msra.mxu0 0
    %1877 = vmatprep.mubr.bf16.mxu0 0
    %1878 = vmatmul.mubr.bf16.gmra.mxu0 %v1779
    %v1879 = vpop.f32.mrf.mxu0
    %v1880 = vadd.f32 0.0, %v1879
    %v1881 = vpop.f32.mrf.mxu0
    %v1882 = vpop.f32.mrf.mxu0
    %v1883 = vadd.f32 0.0, %v1882
    %v1884 = vpop.f32.mrf.mxu0
    %1885 = vmatprep.mubr.bf16.mxu0 0
    %1886 = vmatmul.mubr.bf16.gmra.mxu0 %v1780
    %v1887 = vpop.f32.mrf.mxu0
    %v1888 = vadd.f32 0.0, %v1887
    %v1889 = vpop.f32.mrf.mxu0
    %v1890 = vpop.f32.mrf.mxu0
    %v1891 = vadd.f32 0.0, %v1890
    %v1892 = vpop.f32.mrf.mxu0
    %1893 = vmatprep.mubr.bf16.mxu0 0
    %1894 = vmatmul.mubr.bf16.gmra.mxu0 %v1781
    %v1895 = vpop.f32.mrf.mxu0
    %v1896 = vadd.f32 0.0, %v1895
    %v1897 = vpop.f32.mrf.mxu0
    %v1898 = vpop.f32.mrf.mxu0
    %v1899 = vadd.f32 0.0, %v1898
    %v1900 = vpop.f32.mrf.mxu0
    %1901 = vmatprep.mubr.bf16.mxu0 0
    %1902 = vmatmul.mubr.bf16.gmra.mxu0 %v1782
    %v1903 = vpop.f32.mrf.mxu0
    %v1904 = vadd.f32 0.0, %v1903
    %v1905 = vpop.f32.mrf.mxu0
    %v1906 = vpop.f32.mrf.mxu0
    %v1907 = vadd.f32 0.0, %v1906
    %v1908 = vpop.f32.mrf.mxu0
    %1909 = vmatprep.mubr.bf16.mxu0 0
    %1910 = vmatmul.mubr.bf16.gmra.mxu0 %v1783
    %v1911 = vpop.f32.mrf.mxu0
    %v1912 = vpop.f32.mrf.mxu0
    %v1913 = vpop.f32.mrf.mxu0
    %v1914 = vadd.f32 0.0, %v1913
    %v1915 = vpop.f32.mrf.mxu0
    %1916 = vmatprep.mubr.bf16.mxu0 0
    %1917 = vmatmul.mubr.bf16.gmra.mxu0 %v1784
    %v1918 = vpop.f32.mrf.mxu0
    %v1919 = vadd.f32 0.0, %v1918
    %v1920 = vpop.f32.mrf.mxu0
    %v1921 = vpop.f32.mrf.mxu0
    %v1922 = vadd.f32 0.0, %v1921
    %v1923 = vpop.f32.mrf.mxu0
    %1924 = vmatprep.mubr.bf16.mxu0 0
    %1925 = vmatmul.mubr.bf16.gmra.mxu0 %v1785
    %v1926 = vpop.f32.mrf.mxu0
    %v1927 = vadd.f32 0.0, %v1926
    %v1928 = vpop.f32.mrf.mxu0
    %v1929 = vpop.f32.mrf.mxu0
    %v1930 = vadd.f32 0.0, %v1929
    %v1931 = vpop.f32.mrf.mxu0
    %1932 = vmatprep.mubr.bf16.mxu0 0
    %1933 = vmatmul.mubr.bf16.gmra.mxu0 %v1786
    %v1934 = vpop.f32.mrf.mxu0
    %v1935 = vadd.f32 0.0, %v1934
    %v1936 = vpop.f32.mrf.mxu0
    %v1937 = vpop.f32.mrf.mxu0
    %v1938 = vadd.f32 0.0, %v1937
    %v1939 = vpop.f32.mrf.mxu0
    %1940 = vmatprep.mubr.bf16.mxu0 0
    %1941 = vmatmul.mubr.bf16.gmra.mxu0 %v1787
    %v1942 = vpop.f32.mrf.mxu0
    %v1943 = vadd.f32 0.0, %v1942
    %v1944 = vpop.f32.mrf.mxu0
    %v1945 = vpop.f32.mrf.mxu0
    %v1946 = vpop.f32.mrf.mxu0
    %1947 = vdwg.mxu0
    %v1948 = vadd.f32 %v1691, %v1880
    %v1949 = vadd.f32 %v1692, %v1883
    %v1950 = vadd.f32 %v1693, %v1888
    %v1951 = vadd.f32 %v1694, %v1891
    %v1952 = vadd.f32 %v1695, %v1896
    %v1953 = vadd.f32 %v1696, %v1899
    %v1954 = vadd.f32 %v1697, %v1904
    %v1955 = vadd.f32 %v1698, %v1907
    %v1956 = vadd.f32 %v1699, %v1914
    %v1957 = vadd.f32 %v1700, %v1919
    %v1958 = vadd.f32 %v1701, %v1922
    %v1959 = vadd.f32 %v1702, %v1927
    %v1960 = vadd.f32 %v1703, %v1930
    %v1961 = vadd.f32 %v1704, %v1935
    %v1962 = vadd.f32 %v1705, %v1938
    %v1963 = vadd.f32 %v1706, %v1943
    %s1964 = scalar_lea.vmem [#allocation7], 360
    %v1965 = vld [vmem:[%s1964] sm:$0xf]
    %v1966 = vld [vmem:[%s1964 + $0x4] sm:$0xf]
    %v1967 = vld [vmem:[%s1964 + $0x8] sm:$0xf]
    %v1968 = vld [vmem:[%s1964 + $0xc] sm:$0xf]
    %v1969 = vld [vmem:[%s1964 + $0x10] sm:$0xf]
    %v1970 = vld [vmem:[%s1964 + $0x14] sm:$0xf]
    %v1971 = vld [vmem:[%s1964 + $0x18] sm:$0xf]
    %v1972 = vld [vmem:[%s1964 + $0x1c] sm:$0xf]
    %v1973 = vld [vmem:[%s1964 + $0x20] sm:$0xf]
    %v1974 = vld [vmem:[%s1964 + $0x24] sm:$0xf]
    %v1975 = vld [vmem:[%s1964 + $0x28] sm:$0xf]
    %v1976 = vld [vmem:[%s1964 + $0x2c] sm:$0xf]
    %v1977 = vld [vmem:[%s1964 + $0x30] sm:$0xf]
    %v1978 = vld [vmem:[%s1964 + $0x34] sm:$0xf]
    %v1979 = vld [vmem:[%s1964 + $0x38] sm:$0xf]
    %v1980 = vld [vmem:[%s1964 + $0x3c] sm:$0xf]
    %v1981 = vld [vmem:[%s1964 + $0x40] sm:$0xf]
    %v1982 = vld [vmem:[%s1964 + $0x44] sm:$0xf]
    %s1983 = scalar_lea.vmem %s2, 320
    %v1984 = vld [vmem:[%s1983] sm:$0xf]
    %v1985 = vld [vmem:[%s1983 + $0x4] sm:$0xf]
    %v1986 = vld [vmem:[%s1983 + $0x8] sm:$0xf]
    %v1987 = vld [vmem:[%s1983 + $0xc] sm:$0xf]
    %v1988 = vld [vmem:[%s1983 + $0x10] sm:$0xf]
    %v1989 = vld [vmem:[%s1983 + $0x14] sm:$0xf]
    %v1990 = vld [vmem:[%s1983 + $0x18] sm:$0xf]
    %v1991 = vld [vmem:[%s1983 + $0x1c] sm:$0xf]
    %v1992 = vld [vmem:[%s1983 + $0x20] sm:$0xf]
    %v1993 = vld [vmem:[%s1983 + $0x24] sm:$0xf]
    %v1994 = vld [vmem:[%s1983 + $0x28] sm:$0xf]
    %v1995 = vld [vmem:[%s1983 + $0x2c] sm:$0xf]
    %v1996 = vld [vmem:[%s1983 + $0x30] sm:$0xf]
    %v1997 = vld [vmem:[%s1983 + $0x34] sm:$0xf]
    %v1998 = vld [vmem:[%s1983 + $0x38] sm:$0xf]
    %v1999 = vld [vmem:[%s1983 + $0x3c] sm:$0xf]
    %v2018 = vunpack.c.l.b16 %v1965
    %v2019 = vunpack.c.l.b16 %v1966
    %v2020 = vunpack.c.l.b16 %v1967
    %v2021 = vunpack.c.l.b16 %v1968
    %v2022 = vunpack.c.l.b16 %v1969
    %v2023 = vunpack.c.l.b16 %v1970
    %v2024 = vunpack.c.l.b16 %v1971
    %v2025 = vunpack.c.l.b16 %v1972
    %v2026 = vunpack.c.l.b16 %v1973
    %v2027 = vunpack.c.l.b16 %v1974
    %v2028 = vunpack.c.l.b16 %v1975
    %v2029 = vunpack.c.l.b16 %v1976
    %v2030 = vunpack.c.l.b16 %v1977
    %v2031 = vunpack.c.l.b16 %v1978
    %v2032 = vunpack.c.l.b16 %v1979
    %v2033 = vunpack.c.l.b16 %v1980
    %v2034 = vunpack.c.l.b16 %v1981
    %v2035 = vunpack.c.l.b16 %v1982
    %v2036 = vpack.c.b16 %v2019, %v2018
    %v2037 = vpack.c.b16 %v2021, %v2020
    %v2038 = vpack.c.b16 %v2023, %v2022
    %v2039 = vpack.c.b16 %v2025, %v2024
    %v2040 = vpack.c.b16 %v2027, %v2026
    %v2041 = vpack.c.b16 %v2029, %v2028
    %v2042 = vpack.c.b16 %v2031, %v2030
    %v2043 = vpack.c.b16 %v2033, %v2032
    %v2044 = vpack.c.b16 %v2035, %v2034
    %v2070 = vunpack.c.l.b16 %v1984
    %v2071 = vunpack.c.l.b16 %v1985
    %v2072 = vunpack.c.l.b16 %v1986
    %v2073 = vunpack.c.l.b16 %v1987
    %v2074 = vunpack.c.l.b16 %v1988
    %v2075 = vunpack.c.l.b16 %v1989
    %v2076 = vunpack.c.l.b16 %v1990
    %v2077 = vunpack.c.l.b16 %v1991
    %v2078 = vunpack.c.l.b16 %v1992
    %v2079 = vunpack.c.l.b16 %v1993
    %v2080 = vunpack.c.l.b16 %v1994
    %v2081 = vunpack.c.l.b16 %v1995
    %v2082 = vunpack.c.l.b16 %v1996
    %v2083 = vunpack.c.l.b16 %v1997
    %v2084 = vunpack.c.l.b16 %v1998
    %v2085 = vunpack.c.l.b16 %v1999
    %v2086 = vpack.c.b16 %v2071, %v2070
    %v2087 = vpack.c.b16 %v2073, %v2072
    %v2088 = vpack.c.b16 %v2075, %v2074
    %v2089 = vpack.c.b16 %v2077, %v2076
    %v2090 = vpack.c.b16 %v2079, %v2078
    %v2091 = vpack.c.b16 %v2081, %v2080
    %v2092 = vpack.c.b16 %v2083, %v2082
    %v2093 = vpack.c.b16 %v2085, %v2084
    %2102 = vmatprep.subr.bf16.mxu0 0
    %2103 = vmatpush1.bf16.msra.mxu0 %v2093
    %2104 = vmatprep.subr.bf16.mxu0 0
    %2105 = vmatpush1.bf16.msra.mxu0 %v2092
    %2106 = vmatprep.subr.bf16.mxu0 0
    %2107 = vmatpush1.bf16.msra.mxu0 %v2091
    %2108 = vmatprep.subr.bf16.mxu0 0
    %2109 = vmatpush1.bf16.msra.mxu0 %v2090
    %2110 = vmatprep.subr.bf16.mxu0 0
    %2111 = vmatpush1.bf16.msra.mxu0 %v2089
    %2112 = vmatprep.subr.bf16.mxu0 0
    %2113 = vmatpush1.bf16.msra.mxu0 %v2088
    %2114 = vmatprep.subr.bf16.mxu0 0
    %2115 = vmatpush1.bf16.msra.mxu0 %v2087
    %2116 = vmatprep.subr.bf16.mxu0 0
    %2117 = vmatpush1.bf16.msra.mxu0 %v2086
    %2118 = vmatprep.subr.bf16.mxu0 0
    %2119 = vmatpush2.bf16.msra.mxu0 0
    %2120 = vmatprep.subr.bf16.mxu0 0
    %2121 = vmatpush2.bf16.msra.mxu0 0
    %2122 = vmatprep.subr.bf16.mxu0 0
    %2123 = vmatpush2.bf16.msra.mxu0 0
    %2124 = vmatprep.subr.bf16.mxu0 0
    %2125 = vmatpush2.bf16.msra.mxu0 0
    %2126 = vmatprep.subr.bf16.mxu0 0
    %2127 = vmatpush2.bf16.msra.mxu0 0
    %2128 = vmatprep.subr.bf16.mxu0 0
    %2129 = vmatpush2.bf16.msra.mxu0 0
    %2130 = vmatprep.subr.bf16.mxu0 0
    %2131 = vmatpush2.bf16.msra.mxu0 0
    %2132 = vmatprep.subr.bf16.mxu0 0
    %2133 = vmatpush2.bf16.msra.mxu0 0
    %2134 = vmatprep.mubr.bf16.mxu0 0
    %2135 = vmatmul.mubr.bf16.gmra.mxu0 %v2036
    %v2136 = vpop.f32.mrf.mxu0
    %v2137 = vadd.f32 0.0, %v2136
    %v2138 = vpop.f32.mrf.mxu0
    %v2139 = vpop.f32.mrf.mxu0
    %v2140 = vadd.f32 0.0, %v2139
    %v2141 = vpop.f32.mrf.mxu0
    %2142 = vmatprep.mubr.bf16.mxu0 0
    %2143 = vmatmul.mubr.bf16.gmra.mxu0 %v2037
    %v2144 = vpop.f32.mrf.mxu0
    %v2145 = vadd.f32 0.0, %v2144
    %v2146 = vpop.f32.mrf.mxu0
    %v2147 = vpop.f32.mrf.mxu0
    %v2148 = vadd.f32 0.0, %v2147
    %v2149 = vpop.f32.mrf.mxu0
    %2150 = vmatprep.mubr.bf16.mxu0 0
    %2151 = vmatmul.mubr.bf16.gmra.mxu0 %v2038
    %v2152 = vpop.f32.mrf.mxu0
    %v2153 = vadd.f32 0.0, %v2152
    %v2154 = vpop.f32.mrf.mxu0
    %v2155 = vpop.f32.mrf.mxu0
    %v2156 = vadd.f32 0.0, %v2155
    %v2157 = vpop.f32.mrf.mxu0
    %2158 = vmatprep.mubr.bf16.mxu0 0
    %2159 = vmatmul.mubr.bf16.gmra.mxu0 %v2039
    %v2160 = vpop.f32.mrf.mxu0
    %v2161 = vadd.f32 0.0, %v2160
    %v2162 = vpop.f32.mrf.mxu0
    %v2163 = vpop.f32.mrf.mxu0
    %v2164 = vadd.f32 0.0, %v2163
    %v2165 = vpop.f32.mrf.mxu0
    %2166 = vmatprep.mubr.bf16.mxu0 0
    %2167 = vmatmul.mubr.bf16.gmra.mxu0 %v2040
    %v2168 = vpop.f32.mrf.mxu0
    %v2169 = vpop.f32.mrf.mxu0
    %v2170 = vpop.f32.mrf.mxu0
    %v2171 = vadd.f32 0.0, %v2170
    %v2172 = vpop.f32.mrf.mxu0
    %2173 = vmatprep.mubr.bf16.mxu0 0
    %2174 = vmatmul.mubr.bf16.gmra.mxu0 %v2041
    %v2175 = vpop.f32.mrf.mxu0
    %v2176 = vadd.f32 0.0, %v2175
    %v2177 = vpop.f32.mrf.mxu0
    %v2178 = vpop.f32.mrf.mxu0
    %v2179 = vadd.f32 0.0, %v2178
    %v2180 = vpop.f32.mrf.mxu0
    %2181 = vmatprep.mubr.bf16.mxu0 0
    %2182 = vmatmul.mubr.bf16.gmra.mxu0 %v2042
    %v2183 = vpop.f32.mrf.mxu0
    %v2184 = vadd.f32 0.0, %v2183
    %v2185 = vpop.f32.mrf.mxu0
    %v2186 = vpop.f32.mrf.mxu0
    %v2187 = vadd.f32 0.0, %v2186
    %v2188 = vpop.f32.mrf.mxu0
    %2189 = vmatprep.mubr.bf16.mxu0 0
    %2190 = vmatmul.mubr.bf16.gmra.mxu0 %v2043
    %v2191 = vpop.f32.mrf.mxu0
    %v2192 = vadd.f32 0.0, %v2191
    %v2193 = vpop.f32.mrf.mxu0
    %v2194 = vpop.f32.mrf.mxu0
    %v2195 = vadd.f32 0.0, %v2194
    %v2196 = vpop.f32.mrf.mxu0
    %2197 = vmatprep.mubr.bf16.mxu0 0
    %2198 = vmatmul.mubr.bf16.gmra.mxu0 %v2044
    %v2199 = vpop.f32.mrf.mxu0
    %v2200 = vadd.f32 0.0, %v2199
    %v2201 = vpop.f32.mrf.mxu0
    %v2202 = vpop.f32.mrf.mxu0
    %v2203 = vpop.f32.mrf.mxu0
    %2204 = vdwg.mxu0
    %v2205 = vadd.f32 %v1948, %v2137
    %v2206 = vadd.f32 %v1949, %v2140
    %v2207 = vadd.f32 %v1950, %v2145
    %v2208 = vadd.f32 %v1951, %v2148
    %v2209 = vadd.f32 %v1952, %v2153
    %v2210 = vadd.f32 %v1953, %v2156
    %v2211 = vadd.f32 %v1954, %v2161
    %v2212 = vadd.f32 %v1955, %v2164
    %v2213 = vadd.f32 %v1956, %v2171
    %v2214 = vadd.f32 %v1957, %v2176
    %v2215 = vadd.f32 %v1958, %v2179
    %v2216 = vadd.f32 %v1959, %v2184
    %v2217 = vadd.f32 %v1960, %v2187
    %v2218 = vadd.f32 %v1961, %v2192
    %v2219 = vadd.f32 %v1962, %v2195
    %v2220 = vadd.f32 %v1963, %v2200
    %v2221 = vld [vmem:[#allocation10] sm:$0xff]
    %v2222 = vld [vmem:[#allocation10 + $0x8] sm:$0xff]
    %v2223 = vld [vmem:[#allocation10 + $0x10] sm:$0xff]
    %v2224 = vld [vmem:[#allocation10 + $0x18] sm:$0xff]
    %v2225 = vld [vmem:[#allocation10 + $0x20] sm:$0xff]
    %v2226 = vld [vmem:[#allocation10 + $0x28] sm:$0xff]
    %v2227 = vld [vmem:[#allocation10 + $0x30] sm:$0xff]
    %v2228 = vld [vmem:[#allocation10 + $0x38] sm:$0xff]
    %v2229 = vld [vmem:[#allocation10 + $0x40] sm:$0xff]
    %v2230 = vld [vmem:[#allocation10 + $0x48] sm:$0xff]
    %v2231 = vld [vmem:[#allocation10 + $0x50] sm:$0xff]
    %v2232 = vld [vmem:[#allocation10 + $0x58] sm:$0xff]
    %v2233 = vld [vmem:[#allocation10 + $0x60] sm:$0xff]
    %v2234 = vld [vmem:[#allocation10 + $0x68] sm:$0xff]
    %v2235 = vld [vmem:[#allocation10 + $0x70] sm:$0xff]
    %v2236 = vld [vmem:[#allocation10 + $0x78] sm:$0xff]
    %v2237 = vstv %s139
    %v2238 = vmul.f32 %v2237, %v2221
    %v2239 = vmul.f32 %v2237, %v2222
    %v2240 = vmul.f32 %v2237, %v2223
    %v2241 = vmul.f32 %v2237, %v2224
    %v2242 = vmul.f32 %v2237, %v2225
    %v2243 = vmul.f32 %v2237, %v2226
    %v2244 = vmul.f32 %v2237, %v2227
    %v2245 = vmul.f32 %v2237, %v2228
    %v2246 = vmul.f32 %v2237, %v2229
    %v2247 = vmul.f32 %v2237, %v2230
    %v2248 = vmul.f32 %v2237, %v2231
    %v2249 = vmul.f32 %v2237, %v2232
    %v2250 = vmul.f32 %v2237, %v2233
    %v2251 = vmul.f32 %v2237, %v2234
    %v2252 = vmul.f32 %v2237, %v2235
    %v2253 = vmul.f32 %v2237, %v2236
    %v2254 = vadd.f32 %v2238, %v2205
    %v2255 = vadd.f32 %v2239, %v2206
    %v2256 = vadd.f32 %v2240, %v2207
    %v2257 = vadd.f32 %v2241, %v2208
    %v2258 = vadd.f32 %v2242, %v2209
    %v2259 = vadd.f32 %v2243, %v2210
    %v2260 = vadd.f32 %v2244, %v2211
    %v2261 = vadd.f32 %v2245, %v2212
    %v2262 = vadd.f32 %v2246, %v2213
    %v2263 = vadd.f32 %v2247, %v2214
    %v2264 = vadd.f32 %v2248, %v2215
    %v2265 = vadd.f32 %v2249, %v2216
    %v2266 = vadd.f32 %v2250, %v2217
    %v2267 = vadd.f32 %v2251, %v2218
    %v2268 = vadd.f32 %v2252, %v2219
    %v2269 = vadd.f32 %v2253, %v2220
    %v2270 = vstv %s140
    %v2271 = vrcp.pop %v2270
    %v2272 = vmul.f32 %v2254, %v2271
    %v2273 = vmul.f32 %v2255, %v2271
    %v2274 = vmul.f32 %v2256, %v2271
    %v2275 = vmul.f32 %v2257, %v2271
    %v2276 = vmul.f32 %v2258, %v2271
    %v2277 = vmul.f32 %v2259, %v2271
    %v2278 = vmul.f32 %v2260, %v2271
    %v2279 = vmul.f32 %v2261, %v2271
    %v2280 = vmul.f32 %v2262, %v2271
    %v2281 = vmul.f32 %v2263, %v2271
    %v2282 = vmul.f32 %v2264, %v2271
    %v2283 = vmul.f32 %v2265, %v2271
    %v2284 = vmul.f32 %v2266, %v2271
    %v2285 = vmul.f32 %v2267, %v2271
    %v2286 = vmul.f32 %v2268, %v2271
    %v2287 = vmul.f32 %v2269, %v2271
    %v2288 = vsub.f32 %v2272, 1.0
    %v2289 = vsub.f32 %v2273, 1.0
    %v2290 = vsub.f32 %v2274, 1.0
    %v2291 = vsub.f32 %v2275, 1.0
    %v2292 = vsub.f32 %v2276, 1.0
    %v2293 = vsub.f32 %v2277, 1.0
    %v2294 = vsub.f32 %v2278, 1.0
    %v2295 = vsub.f32 %v2279, 1.0
    %v2296 = vsub.f32 %v2280, 1.0
    %v2297 = vsub.f32 %v2281, 1.0
    %v2298 = vsub.f32 %v2282, 1.0
    %v2299 = vsub.f32 %v2283, 1.0
    %v2300 = vsub.f32 %v2284, 1.0
    %v2301 = vsub.f32 %v2285, 1.0
    %v2302 = vsub.f32 %v2286, 1.0
    %v2303 = vsub.f32 %v2287, 1.0
    %vm2304 = vcmp.gt.f32.partialorder %v2288, 0.0
    %vm2305 = vcmp.gt.f32.partialorder %v2289, 0.0
    %vm2306 = vcmp.gt.f32.partialorder %v2290, 0.0
    %vm2307 = vcmp.gt.f32.partialorder %v2291, 0.0
    %vm2308 = vcmp.gt.f32.partialorder %v2292, 0.0
    %vm2309 = vcmp.gt.f32.partialorder %v2293, 0.0
    %vm2310 = vcmp.gt.f32.partialorder %v2294, 0.0
    %vm2311 = vcmp.gt.f32.partialorder %v2295, 0.0
    %vm2312 = vcmp.gt.f32.partialorder %v2296, 0.0
    %vm2313 = vcmp.gt.f32.partialorder %v2297, 0.0
    %vm2314 = vcmp.gt.f32.partialorder %v2298, 0.0
    %vm2315 = vcmp.gt.f32.partialorder %v2299, 0.0
    %vm2316 = vcmp.gt.f32.partialorder %v2300, 0.0
    %vm2317 = vcmp.gt.f32.partialorder %v2301, 0.0
    %vm2318 = vcmp.gt.f32.partialorder %v2302, 0.0
    %vm2319 = vcmp.gt.f32.partialorder %v2303, 0.0
    %v2320 = vsel %vm2304, 1, 0
    %v2321 = vsel %vm2305, 1, 0
    %v2322 = vsel %vm2306, 1, 0
    %v2323 = vsel %vm2307, 1, 0
    %v2324 = vsel %vm2308, 1, 0
    %v2325 = vsel %vm2309, 1, 0
    %v2326 = vsel %vm2310, 1, 0
    %v2327 = vsel %vm2311, 1, 0
    %v2328 = vsel %vm2312, 1, 0
    %v2329 = vsel %vm2313, 1, 0
    %v2330 = vsel %vm2314, 1, 0
    %v2331 = vsel %vm2315, 1, 0
    %v2332 = vsel %vm2316, 1, 0
    %v2333 = vsel %vm2317, 1, 0
    %v2334 = vsel %vm2318, 1, 0
    %v2335 = vsel %vm2319, 1, 0
    %v2336 = vcvt.s32.f32 %v2320
    %v2337 = vcvt.s32.f32 %v2321
    %v2338 = vcvt.s32.f32 %v2322
    %v2339 = vcvt.s32.f32 %v2323
    %v2340 = vcvt.s32.f32 %v2324
    %v2341 = vcvt.s32.f32 %v2325
    %v2342 = vcvt.s32.f32 %v2326
    %v2343 = vcvt.s32.f32 %v2327
    %v2344 = vcvt.s32.f32 %v2328
    %v2345 = vcvt.s32.f32 %v2329
    %v2346 = vcvt.s32.f32 %v2330
    %v2347 = vcvt.s32.f32 %v2331
    %v2348 = vcvt.s32.f32 %v2332
    %v2349 = vcvt.s32.f32 %v2333
    %v2350 = vcvt.s32.f32 %v2334
    %v2351 = vcvt.s32.f32 %v2335
    %v2352 = vmul.f32 %v2270, %v2336
    %v2353 = vmul.f32 %v2270, %v2337
    %v2354 = vmul.f32 %v2270, %v2338
    %v2355 = vmul.f32 %v2270, %v2339
    %v2356 = vmul.f32 %v2270, %v2340
    %v2357 = vmul.f32 %v2270, %v2341
    %v2358 = vmul.f32 %v2270, %v2342
    %v2359 = vmul.f32 %v2270, %v2343
    %v2360 = vmul.f32 %v2270, %v2344
    %v2361 = vmul.f32 %v2270, %v2345
    %v2362 = vmul.f32 %v2270, %v2346
    %v2363 = vmul.f32 %v2270, %v2347
    %v2364 = vmul.f32 %v2270, %v2348
    %v2365 = vmul.f32 %v2270, %v2349
    %v2366 = vmul.f32 %v2270, %v2350
    %v2367 = vmul.f32 %v2270, %v2351
    %v2368 = vsub.f32 %v2254, %v2352
    %v2369 = vsub.f32 %v2255, %v2353
    %v2370 = vsub.f32 %v2256, %v2354
    %v2371 = vsub.f32 %v2257, %v2355
    %v2372 = vsub.f32 %v2258, %v2356
    %v2373 = vsub.f32 %v2259, %v2357
    %v2374 = vsub.f32 %v2260, %v2358
    %v2375 = vsub.f32 %v2261, %v2359
    %v2376 = vsub.f32 %v2262, %v2360
    %v2377 = vsub.f32 %v2263, %v2361
    %v2378 = vsub.f32 %v2264, %v2362
    %v2379 = vsub.f32 %v2265, %v2363
    %v2380 = vsub.f32 %v2266, %v2364
    %v2381 = vsub.f32 %v2267, %v2365
    %v2382 = vsub.f32 %v2268, %v2366
    %v2383 = vsub.f32 %v2269, %v2367
    %2384 = vst [vmem:[#allocation17] sm:$0xff] %v2368
    %2385 = vst [vmem:[#allocation17 + $0x8] sm:$0xff] %v2369
    %2386 = vst [vmem:[#allocation17 + $0x10] sm:$0xff] %v2370
    %2387 = vst [vmem:[#allocation17 + $0x18] sm:$0xff] %v2371
    %2388 = vst [vmem:[#allocation17 + $0x20] sm:$0xff] %v2372
    %2389 = vst [vmem:[#allocation17 + $0x28] sm:$0xff] %v2373
    %2390 = vst [vmem:[#allocation17 + $0x30] sm:$0xff] %v2374
    %2391 = vst [vmem:[#allocation17 + $0x38] sm:$0xff] %v2375
    %2392 = vst [vmem:[#allocation17 + $0x40] sm:$0xff] %v2376
    %2393 = vst [vmem:[#allocation17 + $0x48] sm:$0xff] %v2377
    %2394 = vst [vmem:[#allocation17 + $0x50] sm:$0xff] %v2378
    %2395 = vst [vmem:[#allocation17 + $0x58] sm:$0xff] %v2379
    %2396 = vst [vmem:[#allocation17 + $0x60] sm:$0xff] %v2380
    %2397 = vst [vmem:[#allocation17 + $0x68] sm:$0xff] %v2381
    %2398 = vst [vmem:[#allocation17 + $0x70] sm:$0xff] %v2382
    %2399 = vst [vmem:[#allocation17 + $0x78] sm:$0xff] %v2383
    %v2400 = vld [vmem:[#allocation11] sm:$0xf]
    %v2401 = vld [vmem:[#allocation11 + $0x4] sm:$0xf]
    %v2402 = vld [vmem:[#allocation11 + $0x8] sm:$0xf]
    %v2403 = vld [vmem:[#allocation11 + $0xc] sm:$0xf]
    %v2404 = vld [vmem:[#allocation11 + $0x10] sm:$0xf]
    %v2405 = vld [vmem:[#allocation11 + $0x14] sm:$0xf]
    %v2406 = vld [vmem:[#allocation11 + $0x18] sm:$0xf]
    %v2407 = vld [vmem:[#allocation11 + $0x1c] sm:$0xf]
    %v2408 = vld [vmem:[#allocation11 + $0x20] sm:$0xf]
    %v2409 = vld [vmem:[#allocation11 + $0x24] sm:$0xf]
    %v2410 = vld [vmem:[#allocation11 + $0x28] sm:$0xf]
    %v2411 = vld [vmem:[#allocation11 + $0x2c] sm:$0xf]
    %v2412 = vld [vmem:[#allocation11 + $0x30] sm:$0xf]
    %v2413 = vld [vmem:[#allocation11 + $0x34] sm:$0xf]
    %v2414 = vld [vmem:[#allocation11 + $0x38] sm:$0xf]
    %v2415 = vld [vmem:[#allocation11 + $0x3c] sm:$0xf]
    %v2416 = vunpack.c.l.bf16 %v2400
    %v2417 = vunpack.c.l.bf16 %v2401
    %v2418 = vunpack.c.l.bf16 %v2402
    %v2419 = vunpack.c.l.bf16 %v2403
    %v2420 = vunpack.c.l.bf16 %v2404
    %v2421 = vunpack.c.l.bf16 %v2405
    %v2422 = vunpack.c.l.bf16 %v2406
    %v2423 = vunpack.c.l.bf16 %v2407
    %v2424 = vunpack.c.l.bf16 %v2408
    %v2425 = vunpack.c.l.bf16 %v2409
    %v2426 = vunpack.c.l.bf16 %v2410
    %v2427 = vunpack.c.l.bf16 %v2411
    %v2428 = vunpack.c.l.bf16 %v2412
    %v2429 = vunpack.c.l.bf16 %v2413
    %v2430 = vunpack.c.l.bf16 %v2414
    %v2431 = vunpack.c.l.bf16 %v2415
    %v2432 = vstv %s143
    %v2433 = vsel %vm2304, %v2432, %v2416
    %v2434 = vsel %vm2305, %v2432, %v2417
    %v2435 = vsel %vm2306, %v2432, %v2418
    %v2436 = vsel %vm2307, %v2432, %v2419
    %v2437 = vsel %vm2308, %v2432, %v2420
    %v2438 = vsel %vm2309, %v2432, %v2421
    %v2439 = vsel %vm2310, %v2432, %v2422
    %v2440 = vsel %vm2311, %v2432, %v2423
    %v2441 = vsel %vm2312, %v2432, %v2424
    %v2442 = vsel %vm2313, %v2432, %v2425
    %v2443 = vsel %vm2314, %v2432, %v2426
    %v2444 = vsel %vm2315, %v2432, %v2427
    %v2445 = vsel %vm2316, %v2432, %v2428
    %v2446 = vsel %vm2317, %v2432, %v2429
    %v2447 = vsel %vm2318, %v2432, %v2430
    %v2448 = vsel %vm2319, %v2432, %v2431
    %v2449 = vpack.c.bf16 %v2434, %v2433
    %v2450 = vpack.c.bf16 %v2436, %v2435
    %v2451 = vpack.c.bf16 %v2438, %v2437
    %v2452 = vpack.c.bf16 %v2440, %v2439
    %v2453 = vpack.c.bf16 %v2442, %v2441
    %v2454 = vpack.c.bf16 %v2444, %v2443
    %v2455 = vpack.c.bf16 %v2446, %v2445
    %v2456 = vpack.c.bf16 %v2448, %v2447
    %v2465 = vunpack.c.l.b16 %v2449
    %v2466 = vunpack.c.h.b16 %v2449
    %v2467 = vunpack.c.l.b16 %v2450
    %v2468 = vunpack.c.h.b16 %v2450
    %v2469 = vunpack.c.l.b16 %v2451
    %v2470 = vunpack.c.h.b16 %v2451
    %v2471 = vunpack.c.l.b16 %v2452
    %v2472 = vunpack.c.h.b16 %v2452
    %v2473 = vunpack.c.l.b16 %v2453
    %v2474 = vunpack.c.h.b16 %v2453
    %v2475 = vunpack.c.l.b16 %v2454
    %v2476 = vunpack.c.h.b16 %v2454
    %v2477 = vunpack.c.l.b16 %v2455
    %v2478 = vunpack.c.h.b16 %v2455
    %v2479 = vunpack.c.l.b16 %v2456
    %v2480 = vunpack.c.h.b16 %v2456
    %v2481 = vpack.c.b16 %v2465, %v2465
    %v2482 = vpack.c.b16 %v2466, %v2466
    %v2483 = vpack.c.b16 %v2467, %v2467
    %v2484 = vpack.c.b16 %v2468, %v2468
    %v2485 = vpack.c.b16 %v2469, %v2469
    %v2486 = vpack.c.b16 %v2470, %v2470
    %v2487 = vpack.c.b16 %v2471, %v2471
    %v2488 = vpack.c.b16 %v2472, %v2472
    %v2489 = vpack.c.b16 %v2473, %v2473
    %v2490 = vpack.c.b16 %v2474, %v2474
    %v2491 = vpack.c.b16 %v2475, %v2475
    %v2492 = vpack.c.b16 %v2476, %v2476
    %v2493 = vpack.c.b16 %v2477, %v2477
    %v2494 = vpack.c.b16 %v2478, %v2478
    %v2495 = vpack.c.b16 %v2479, %v2479
    %v2496 = vpack.c.b16 %v2480, %v2480
    %2513 = vst [vmem:[#allocation19] sm:$0xf] %v2481
    %2514 = vst [vmem:[#allocation19 + $0x4] sm:$0xf] %v2482
    %2515 = vst [vmem:[#allocation19 + $0x8] sm:$0xf] %v2483
    %2516 = vst [vmem:[#allocation19 + $0xc] sm:$0xf] %v2484
    %2517 = vst [vmem:[#allocation19 + $0x10] sm:$0xf] %v2485
    %2518 = vst [vmem:[#allocation19 + $0x14] sm:$0xf] %v2486
    %2519 = vst [vmem:[#allocation19 + $0x18] sm:$0xf] %v2487
    %2520 = vst [vmem:[#allocation19 + $0x1c] sm:$0xf] %v2488
    %2521 = vst [vmem:[#allocation19 + $0x20] sm:$0xf] %v2489
    %2522 = vst [vmem:[#allocation19 + $0x24] sm:$0xf] %v2490
    %2523 = vst [vmem:[#allocation19 + $0x28] sm:$0xf] %v2491
    %2524 = vst [vmem:[#allocation19 + $0x2c] sm:$0xf] %v2492
    %2525 = vst [vmem:[#allocation19 + $0x30] sm:$0xf] %v2493
    %2526 = vst [vmem:[#allocation19 + $0x34] sm:$0xf] %v2494
    %2527 = vst [vmem:[#allocation19 + $0x38] sm:$0xf] %v2495
    %2528 = vst [vmem:[#allocation19 + $0x3c] sm:$0xf] %v2496
    %v2529 = vld [vmem:[%s5] sm:$0xf]
    %v2530 = vld [vmem:[%s5 + $0x4] sm:$0xf]
    %v2531 = vld [vmem:[%s5 + $0x8] sm:$0xf]
    %v2532 = vld [vmem:[%s5 + $0xc] sm:$0xf]
    %v2533 = vld [vmem:[%s5 + $0x10] sm:$0xf]
    %v2534 = vld [vmem:[%s5 + $0x14] sm:$0xf]
    %v2535 = vld [vmem:[%s5 + $0x18] sm:$0xf]
    %v2536 = vld [vmem:[%s5 + $0x1c] sm:$0xf]
    %v2537 = vld [vmem:[%s5 + $0x20] sm:$0xf]
    %v2538 = vld [vmem:[%s5 + $0x24] sm:$0xf]
    %v2539 = vld [vmem:[%s5 + $0x28] sm:$0xf]
    %v2540 = vld [vmem:[%s5 + $0x2c] sm:$0xf]
    %v2541 = vld [vmem:[%s5 + $0x30] sm:$0xf]
    %v2542 = vld [vmem:[%s5 + $0x34] sm:$0xf]
    %v2543 = vld [vmem:[%s5 + $0x38] sm:$0xf]
    %v2544 = vld [vmem:[%s5 + $0x3c] sm:$0xf]
    %v2545 = vpack.c.bf16 %v2337, %v2336
    %v2546 = vpack.c.bf16 %v2339, %v2338
    %v2547 = vpack.c.bf16 %v2341, %v2340
    %v2548 = vpack.c.bf16 %v2343, %v2342
    %v2549 = vpack.c.bf16 %v2345, %v2344
    %v2550 = vpack.c.bf16 %v2347, %v2346
    %v2551 = vpack.c.bf16 %v2349, %v2348
    %v2552 = vpack.c.bf16 %v2351, %v2350
    %v2561 = vunpack.c.l.b16 %v2545
    %v2562 = vunpack.c.h.b16 %v2545
    %v2563 = vunpack.c.l.b16 %v2546
    %v2564 = vunpack.c.h.b16 %v2546
    %v2565 = vunpack.c.l.b16 %v2547
    %v2566 = vunpack.c.h.b16 %v2547
    %v2567 = vunpack.c.l.b16 %v2548
    %v2568 = vunpack.c.h.b16 %v2548
    %v2569 = vunpack.c.l.b16 %v2549
    %v2570 = vunpack.c.h.b16 %v2549
    %v2571 = vunpack.c.l.b16 %v2550
    %v2572 = vunpack.c.h.b16 %v2550
    %v2573 = vunpack.c.l.b16 %v2551
    %v2574 = vunpack.c.h.b16 %v2551
    %v2575 = vunpack.c.l.b16 %v2552
    %v2576 = vunpack.c.h.b16 %v2552
    %v2577 = vpack.c.b16 %v2561, %v2561
    %v2578 = vpack.c.b16 %v2562, %v2562
    %v2579 = vpack.c.b16 %v2563, %v2563
    %v2580 = vpack.c.b16 %v2564, %v2564
    %v2581 = vpack.c.b16 %v2565, %v2565
    %v2582 = vpack.c.b16 %v2566, %v2566
    %v2583 = vpack.c.b16 %v2567, %v2567
    %v2584 = vpack.c.b16 %v2568, %v2568
    %v2585 = vpack.c.b16 %v2569, %v2569
    %v2586 = vpack.c.b16 %v2570, %v2570
    %v2587 = vpack.c.b16 %v2571, %v2571
    %v2588 = vpack.c.b16 %v2572, %v2572
    %v2589 = vpack.c.b16 %v2573, %v2573
    %v2590 = vpack.c.b16 %v2574, %v2574
    %v2591 = vpack.c.b16 %v2575, %v2575
    %v2592 = vpack.c.b16 %v2576, %v2576
    %v2609 = vmul.bf16 %v2529, %v2577
    %v2610 = vmul.bf16 %v2530, %v2578
    %v2611 = vmul.bf16 %v2531, %v2579
    %v2612 = vmul.bf16 %v2532, %v2580
    %v2613 = vmul.bf16 %v2533, %v2581
    %v2614 = vmul.bf16 %v2534, %v2582
    %v2615 = vmul.bf16 %v2535, %v2583
    %v2616 = vmul.bf16 %v2536, %v2584
    %v2617 = vmul.bf16 %v2537, %v2585
    %v2618 = vmul.bf16 %v2538, %v2586
    %v2619 = vmul.bf16 %v2539, %v2587
    %v2620 = vmul.bf16 %v2540, %v2588
    %v2621 = vmul.bf16 %v2541, %v2589
    %v2622 = vmul.bf16 %v2542, %v2590
    %v2623 = vmul.bf16 %v2543, %v2591
    %v2624 = vmul.bf16 %v2544, %v2592
    %2625 = vst [vmem:[#allocation2] sm:$0xf] 0
    %vm2626 = vcmask 1040384
    %vm2627 = vsmask.f32 256
    %vm2628 = vmand %vm2626, %vm2627
    %v2629 = vld [vmem:[#allocation2 + $0x4] sm:$0x1]
    %v2630 = vsel %vm2628, 0, %v2629
    %2631 = vst [vmem:[#allocation2 + $0x4] sm:$0x1] %v2630
    %2632 = vst [vmem:[#allocation2 + $0x28] sm:$0xf] 0
    %v2633 = vld [vmem:[#allocation2 + $0x2c] sm:$0x1]
    %v2634 = vsel %vm2628, 0, %v2633
    %2635 = vst [vmem:[#allocation2 + $0x2c] sm:$0x1] %v2634
    %2636 = vst [vmem:[#allocation2 + $0x50] sm:$0xf] 0
    %v2637 = vld [vmem:[#allocation2 + $0x54] sm:$0x1]
    %v2638 = vsel %vm2628, 0, %v2637
    %2639 = vst [vmem:[#allocation2 + $0x54] sm:$0x1] %v2638
    %2640 = vst [vmem:[#allocation2 + $0x78] sm:$0xf] 0
    %v2641 = vld [vmem:[#allocation2 + $0x7c] sm:$0x1]
    %v2642 = vsel %vm2628, 0, %v2641
    %2643 = vst [vmem:[#allocation2 + $0x7c] sm:$0x1] %v2642
    %2644 = vst [vmem:[#allocation2 + $0xa0] sm:$0xf] 0
    %v2645 = vld [vmem:[#allocation2 + $0xa4] sm:$0x1]
    %v2646 = vsel %vm2628, 0, %v2645
    %2647 = vst [vmem:[#allocation2 + $0xa4] sm:$0x1] %v2646
    %2648 = vst [vmem:[#allocation2 + $0xc8] sm:$0xf] 0
    %v2649 = vld [vmem:[#allocation2 + $0xcc] sm:$0x1]
    %v2650 = vsel %vm2628, 0, %v2649
    %2651 = vst [vmem:[#allocation2 + $0xcc] sm:$0x1] %v2650
    %vm2652 = vcmask 1043459
    %vm2653 = vsmask.f32 7950
    %vm2654 = vmand %vm2652, %vm2653
    %v2655 = vld [vmem:[#allocation2 + $0x20] sm:$0x8]
    %v2656 = vsel %vm2654, 0, %v2655
    %2657 = vst [vmem:[#allocation2 + $0x20] sm:$0x8] %v2656
    %2658 = vst [vmem:[#allocation2 + $0x24] sm:$0xf] 0
    %v2659 = vld [vmem:[#allocation2 + $0x48] sm:$0x8]
    %v2660 = vsel %vm2654, 0, %v2659
    %2661 = vst [vmem:[#allocation2 + $0x48] sm:$0x8] %v2660
    %2662 = vst [vmem:[#allocation2 + $0x4c] sm:$0xf] 0
    %v2663 = vld [vmem:[#allocation2 + $0x70] sm:$0x8]
    %v2664 = vsel %vm2654, 0, %v2663
    %2665 = vst [vmem:[#allocation2 + $0x70] sm:$0x8] %v2664
    %2666 = vst [vmem:[#allocation2 + $0x74] sm:$0xf] 0
    %v2667 = vld [vmem:[#allocation2 + $0x98] sm:$0x8]
    %v2668 = vsel %vm2654, 0, %v2667
    %2669 = vst [vmem:[#allocation2 + $0x98] sm:$0x8] %v2668
    %2670 = vst [vmem:[#allocation2 + $0x9c] sm:$0xf] 0
    %v2671 = vld [vmem:[#allocation2 + $0xc0] sm:$0x8]
    %v2672 = vsel %vm2654, 0, %v2671
    %2673 = vst [vmem:[#allocation2 + $0xc0] sm:$0x8] %v2672
    %2674 = vst [vmem:[#allocation2 + $0xc4] sm:$0xf] 0
    %v2675 = vld [vmem:[#allocation2 + $0xe8] sm:$0x8]
    %v2676 = vsel %vm2654, 0, %v2675
    %2677 = vst [vmem:[#allocation2 + $0xe8] sm:$0x8] %v2676
    %2678 = vst [vmem:[#allocation2 + $0xec] sm:$0xf] 0
    %v2679 = vlaneseq
    %v2680 = vshrl.u32 %v2679, 7
    %v2681 = vadd.s32 %v2680, 8
    %v2682 = vadd.s32 %v2680, 16
    %v2683 = vadd.s32 %v2680, 24
    %v2684 = vadd.s32 %v2680, 32
    %v2685 = vadd.s32 %v2680, 40
    %v2686 = vadd.s32 %v2680, 48
    %v2687 = vadd.s32 %v2680, 56
    %vm2688 = vcmp.lt.s32.totalorder %v2680, 0
    %v2689 = vsub.s32 0, %v2680
    %v2690 = vsel %vm2688, %v2689, %v2680
    %v2691 = vshrl.u32 %v2690, 3
    %v2692 = vand.u32 %v2690, 7
    %v2693 = vsub.s32 0, %v2692
    %v2694 = vsel %vm2688, %v2693, %v2692
    %vm2695 = vcmp.lt.s32.totalorder %v2681, 0
    %v2696 = vsub.s32 0, %v2681
    %v2697 = vsel %vm2695, %v2696, %v2681
    %v2698 = vshrl.u32 %v2697, 3
    %v2699 = vand.u32 %v2697, 7
    %v2700 = vsub.s32 0, %v2699
    %v2701 = vsel %vm2695, %v2700, %v2699
    %vm2702 = vcmp.lt.s32.totalorder %v2682, 0
    %v2703 = vsub.s32 0, %v2682
    %v2704 = vsel %vm2702, %v2703, %v2682
    %v2705 = vshrl.u32 %v2704, 3
    %v2706 = vand.u32 %v2704, 7
    %v2707 = vsub.s32 0, %v2706
    %v2708 = vsel %vm2702, %v2707, %v2706
    %vm2709 = vcmp.lt.s32.totalorder %v2683, 0
    %v2710 = vsub.s32 0, %v2683
    %v2711 = vsel %vm2709, %v2710, %v2683
    %v2712 = vshrl.u32 %v2711, 3
    %v2713 = vand.u32 %v2711, 7
    %v2714 = vsub.s32 0, %v2713
    %v2715 = vsel %vm2709, %v2714, %v2713
    %vm2716 = vcmp.lt.s32.totalorder %v2684, 0
    %v2717 = vsub.s32 0, %v2684
    %v2718 = vsel %vm2716, %v2717, %v2684
    %v2719 = vshrl.u32 %v2718, 3
    %v2720 = vand.u32 %v2718, 7
    %v2721 = vsub.s32 0, %v2720
    %v2722 = vsel %vm2716, %v2721, %v2720
    %vm2723 = vcmp.lt.s32.totalorder %v2685, 0
    %v2724 = vsub.s32 0, %v2685
    %v2725 = vsel %vm2723, %v2724, %v2685
    %v2726 = vshrl.u32 %v2725, 3
    %v2727 = vand.u32 %v2725, 7
    %v2728 = vsub.s32 0, %v2727
    %v2729 = vsel %vm2723, %v2728, %v2727
    %vm2730 = vcmp.lt.s32.totalorder %v2686, 0
    %v2731 = vsub.s32 0, %v2686
    %v2732 = vsel %vm2730, %v2731, %v2686
    %v2733 = vshrl.u32 %v2732, 3
    %v2734 = vand.u32 %v2732, 7
    %v2735 = vsub.s32 0, %v2734
    %v2736 = vsel %vm2730, %v2735, %v2734
    %vm2737 = vcmp.lt.s32.totalorder %v2687, 0
    %v2738 = vsub.s32 0, %v2687
    %v2739 = vsel %vm2737, %v2738, %v2687
    %v2740 = vshrl.u32 %v2739, 3
    %v2741 = vand.u32 %v2739, 7
    %v2742 = vsub.s32 0, %v2741
    %v2743 = vsel %vm2737, %v2742, %v2741
    %vm2744 = vcmp.ne.s32.totalorder %v2694, 0
    %vm2745 = vcmp.ne.s32.totalorder %v2701, 0
    %vm2746 = vcmp.ne.s32.totalorder %v2708, 0
    %vm2747 = vcmp.ne.s32.totalorder %v2715, 0
    %vm2748 = vcmp.ne.s32.totalorder %v2722, 0
    %vm2749 = vcmp.ne.s32.totalorder %v2729, 0
    %vm2750 = vcmp.ne.s32.totalorder %v2736, 0
    %vm2751 = vcmp.ne.s32.totalorder %v2743, 0
    %vm2752 = vcmp.lt.s32.totalorder %v2694, 0
    %vm2753 = vcmp.lt.s32.totalorder %v2701, 0
    %vm2754 = vcmp.lt.s32.totalorder %v2708, 0
    %vm2755 = vcmp.lt.s32.totalorder %v2715, 0
    %vm2756 = vcmp.lt.s32.totalorder %v2722, 0
    %vm2757 = vcmp.lt.s32.totalorder %v2729, 0
    %vm2758 = vcmp.lt.s32.totalorder %v2736, 0
    %vm2759 = vcmp.lt.s32.totalorder %v2743, 0
    %vm2760 = vmand %vm2752, %vm2744
    %vm2761 = vmand %vm2753, %vm2745
    %vm2762 = vmand %vm2754, %vm2746
    %vm2763 = vmand %vm2755, %vm2747
    %vm2764 = vmand %vm2756, %vm2748
    %vm2765 = vmand %vm2757, %vm2749
    %vm2766 = vmand %vm2758, %vm2750
    %vm2767 = vmand %vm2759, %vm2751
    %v2768 = vadd.s32 %v2694, 8
    %v2769 = vadd.s32 %v2701, 8
    %v2770 = vadd.s32 %v2708, 8
    %v2771 = vadd.s32 %v2715, 8
    %v2772 = vadd.s32 %v2722, 8
    %v2773 = vadd.s32 %v2729, 8
    %v2774 = vadd.s32 %v2736, 8
    %v2775 = vadd.s32 %v2743, 8
    %v2776 = vsel %vm2760, %v2768, %v2694
    %v2777 = vsel %vm2761, %v2769, %v2701
    %v2778 = vsel %vm2762, %v2770, %v2708
    %v2779 = vsel %vm2763, %v2771, %v2715
    %v2780 = vsel %vm2764, %v2772, %v2722
    %v2781 = vsel %vm2765, %v2773, %v2729
    %v2782 = vsel %vm2766, %v2774, %v2736
    %v2783 = vsel %vm2767, %v2775, %v2743
    %vm2784 = vcmp.ne.s32.totalorder %v2776, 7
    %vm2785 = vcmp.ne.s32.totalorder %v2777, 7
    %vm2786 = vcmp.ne.s32.totalorder %v2778, 7
    %vm2787 = vcmp.ne.s32.totalorder %v2779, 7
    %vm2788 = vcmp.ne.s32.totalorder %v2780, 7
    %vm2789 = vcmp.ne.s32.totalorder %v2781, 7
    %vm2790 = vcmp.ne.s32.totalorder %v2782, 7
    %vm2791 = vcmp.ne.s32.totalorder %v2783, 7
    %v2792 = vsel %vm2784, 1, 0
    %v2793 = vsel %vm2785, 1, 0
    %v2794 = vsel %vm2786, 1, 0
    %v2795 = vsel %vm2787, 1, 0
    %v2796 = vsel %vm2788, 1, 0
    %v2797 = vsel %vm2789, 1, 0
    %v2798 = vsel %vm2790, 1, 0
    %v2799 = vsel %vm2791, 1, 0
    %v2800 = vcvt.s32.f32 %v2792
    %v2801 = vcvt.s32.f32 %v2793
    %v2802 = vcvt.s32.f32 %v2794
    %v2803 = vcvt.s32.f32 %v2795
    %v2804 = vcvt.s32.f32 %v2796
    %v2805 = vcvt.s32.f32 %v2797
    %v2806 = vcvt.s32.f32 %v2798
    %v2807 = vcvt.s32.f32 %v2799
    %v2808 = vpack.c.bf16 %v2801, %v2800
    %v2809 = vpack.c.bf16 %v2803, %v2802
    %v2810 = vpack.c.bf16 %v2805, %v2804
    %v2811 = vpack.c.bf16 %v2807, %v2806
    %v2817 = vunpack.c.l.s4 839922192
    %v2818 = vunpack.c.0.s8 %v2817
    %v2819 = vlaneseq
    %v2820 = vshrl.u32 %v2819, 7
    %v2821 = vsub.s32 %v2818, %v2820
    %v2822 = vrot.slane %v2808, %v2821
    %v2824 = vunpack.c.l.s4 1985246804
    %v2825 = vunpack.c.0.s8 %v2824
    %v2826 = vlaneseq
    %v2827 = vshrl.u32 %v2826, 7
    %v2828 = vsub.s32 %v2825, %v2827
    %v2829 = vrot.slane %v2808, %v2828
    %v2831 = vunpack.c.l.s4 839922192
    %v2832 = vunpack.c.0.s8 %v2831
    %v2833 = vlaneseq
    %v2834 = vshrl.u32 %v2833, 7
    %v2835 = vsub.s32 %v2832, %v2834
    %v2836 = vrot.slane %v2809, %v2835
    %v2838 = vunpack.c.l.s4 1985246804
    %v2839 = vunpack.c.0.s8 %v2838
    %v2840 = vlaneseq
    %v2841 = vshrl.u32 %v2840, 7
    %v2842 = vsub.s32 %v2839, %v2841
    %v2843 = vrot.slane %v2809, %v2842
    %v2845 = vunpack.c.l.s4 839922192
    %v2846 = vunpack.c.0.s8 %v2845
    %v2847 = vlaneseq
    %v2848 = vshrl.u32 %v2847, 7
    %v2849 = vsub.s32 %v2846, %v2848
    %v2850 = vrot.slane %v2810, %v2849
    %v2852 = vunpack.c.l.s4 1985246804
    %v2853 = vunpack.c.0.s8 %v2852
    %v2854 = vlaneseq
    %v2855 = vshrl.u32 %v2854, 7
    %v2856 = vsub.s32 %v2853, %v2855
    %v2857 = vrot.slane %v2810, %v2856
    %v2859 = vunpack.c.l.s4 839922192
    %v2860 = vunpack.c.0.s8 %v2859
    %v2861 = vlaneseq
    %v2862 = vshrl.u32 %v2861, 7
    %v2863 = vsub.s32 %v2860, %v2862
    %v2864 = vrot.slane %v2811, %v2863
    %v2866 = vunpack.c.l.s4 1985246804
    %v2867 = vunpack.c.0.s8 %v2866
    %v2868 = vlaneseq
    %v2869 = vshrl.u32 %v2868, 7
    %v2870 = vsub.s32 %v2867, %v2869
    %v2871 = vrot.slane %v2811, %v2870
    %v2880 = vmul.bf16 %v2609, %v2822
    %v2881 = vmul.bf16 %v2610, %v2829
    %v2882 = vmul.bf16 %v2611, %v2836
    %v2883 = vmul.bf16 %v2612, %v2843
    %v2884 = vmul.bf16 %v2613, %v2850
    %v2885 = vmul.bf16 %v2614, %v2857
    %v2886 = vmul.bf16 %v2615, %v2864
    %v2887 = vmul.bf16 %v2616, %v2871
    %v2888 = vmul.bf16 %v2617, %v2822
    %v2889 = vmul.bf16 %v2618, %v2829
    %v2890 = vmul.bf16 %v2619, %v2836
    %v2891 = vmul.bf16 %v2620, %v2843
    %v2892 = vmul.bf16 %v2621, %v2850
    %v2893 = vmul.bf16 %v2622, %v2857
    %v2894 = vmul.bf16 %v2623, %v2864
    %v2895 = vmul.bf16 %v2624, %v2871
    %vm2896 = vcmp.ne.s32.totalorder %v2776, 0
    %vm2897 = vcmp.ne.s32.totalorder %v2777, 0
    %vm2898 = vcmp.ne.s32.totalorder %v2778, 0
    %vm2899 = vcmp.ne.s32.totalorder %v2779, 0
    %vm2900 = vcmp.ne.s32.totalorder %v2780, 0
    %vm2901 = vcmp.ne.s32.totalorder %v2781, 0
    %vm2902 = vcmp.ne.s32.totalorder %v2782, 0
    %vm2903 = vcmp.ne.s32.totalorder %v2783, 0
    %v2904 = vsel %vm2896, 1, 0
    %v2905 = vsel %vm2897, 1, 0
    %v2906 = vsel %vm2898, 1, 0
    %v2907 = vsel %vm2899, 1, 0
    %v2908 = vsel %vm2900, 1, 0
    %v2909 = vsel %vm2901, 1, 0
    %v2910 = vsel %vm2902, 1, 0
    %v2911 = vsel %vm2903, 1, 0
    %v2912 = vcvt.s32.f32 %v2904
    %v2913 = vcvt.s32.f32 %v2905
    %v2914 = vcvt.s32.f32 %v2906
    %v2915 = vcvt.s32.f32 %v2907
    %v2916 = vcvt.s32.f32 %v2908
    %v2917 = vcvt.s32.f32 %v2909
    %v2918 = vcvt.s32.f32 %v2910
    %v2919 = vcvt.s32.f32 %v2911
    %v2920 = vpack.c.bf16 %v2913, %v2912
    %v2921 = vpack.c.bf16 %v2915, %v2914
    %v2922 = vpack.c.bf16 %v2917, %v2916
    %v2923 = vpack.c.bf16 %v2919, %v2918
    %v2929 = vunpack.c.l.s4 839922192
    %v2930 = vunpack.c.0.s8 %v2929
    %v2931 = vlaneseq
    %v2932 = vshrl.u32 %v2931, 7
    %v2933 = vsub.s32 %v2930, %v2932
    %v2934 = vrot.slane %v2920, %v2933
    %v2936 = vunpack.c.l.s4 1985246804
    %v2937 = vunpack.c.0.s8 %v2936
    %v2938 = vlaneseq
    %v2939 = vshrl.u32 %v2938, 7
    %v2940 = vsub.s32 %v2937, %v2939
    %v2941 = vrot.slane %v2920, %v2940
    %v2943 = vunpack.c.l.s4 839922192
    %v2944 = vunpack.c.0.s8 %v2943
    %v2945 = vlaneseq
    %v2946 = vshrl.u32 %v2945, 7
    %v2947 = vsub.s32 %v2944, %v2946
    %v2948 = vrot.slane %v2921, %v2947
    %v2950 = vunpack.c.l.s4 1985246804
    %v2951 = vunpack.c.0.s8 %v2950
    %v2952 = vlaneseq
    %v2953 = vshrl.u32 %v2952, 7
    %v2954 = vsub.s32 %v2951, %v2953
    %v2955 = vrot.slane %v2921, %v2954
    %v2957 = vunpack.c.l.s4 839922192
    %v2958 = vunpack.c.0.s8 %v2957
    %v2959 = vlaneseq
    %v2960 = vshrl.u32 %v2959, 7
    %v2961 = vsub.s32 %v2958, %v2960
    %v2962 = vrot.slane %v2922, %v2961
    %v2964 = vunpack.c.l.s4 1985246804
    %v2965 = vunpack.c.0.s8 %v2964
    %v2966 = vlaneseq
    %v2967 = vshrl.u32 %v2966, 7
    %v2968 = vsub.s32 %v2965, %v2967
    %v2969 = vrot.slane %v2922, %v2968
    %v2971 = vunpack.c.l.s4 839922192
    %v2972 = vunpack.c.0.s8 %v2971
    %v2973 = vlaneseq
    %v2974 = vshrl.u32 %v2973, 7
    %v2975 = vsub.s32 %v2972, %v2974
    %v2976 = vrot.slane %v2923, %v2975
    %v2978 = vunpack.c.l.s4 1985246804
    %v2979 = vunpack.c.0.s8 %v2978
    %v2980 = vlaneseq
    %v2981 = vshrl.u32 %v2980, 7
    %v2982 = vsub.s32 %v2979, %v2981
    %v2983 = vrot.slane %v2923, %v2982
    %v2992 = vmul.bf16 %v2609, %v2934
    %v2993 = vmul.bf16 %v2610, %v2941
    %v2994 = vmul.bf16 %v2611, %v2948
    %v2995 = vmul.bf16 %v2612, %v2955
    %v2996 = vmul.bf16 %v2613, %v2962
    %v2997 = vmul.bf16 %v2614, %v2969
    %v2998 = vmul.bf16 %v2615, %v2976
    %v2999 = vmul.bf16 %v2616, %v2983
    %v3000 = vmul.bf16 %v2617, %v2934
    %v3001 = vmul.bf16 %v2618, %v2941
    %v3002 = vmul.bf16 %v2619, %v2948
    %v3003 = vmul.bf16 %v2620, %v2955
    %v3004 = vmul.bf16 %v2621, %v2962
    %v3005 = vmul.bf16 %v2622, %v2969
    %v3006 = vmul.bf16 %v2623, %v2976
    %v3007 = vmul.bf16 %v2624, %v2983
    %s3008 = scalar_lea.vmem [#allocation2], 80
    %3009 = vst [vmem:[%s3008 + $0x4] sm:$0xf] %v2609
    %3010 = vst [vmem:[%s3008 + $0x8] sm:$0xf] %v2610
    %3011 = vst [vmem:[%s3008 + $0xc] sm:$0xf] %v2611
    %3012 = vst [vmem:[%s3008 + $0x10] sm:$0xf] %v2612
    %3013 = vst [vmem:[%s3008 + $0x14] sm:$0xf] %v2613
    %3014 = vst [vmem:[%s3008 + $0x18] sm:$0xf] %v2614
    %3015 = vst [vmem:[%s3008 + $0x1c] sm:$0xf] %v2615
    %3016 = vst [vmem:[%s3008 + $0x20] sm:$0xf] %v2616
    %3017 = vst [vmem:[%s3008 + $0x2c] sm:$0xf] %v2617
    %3018 = vst [vmem:[%s3008 + $0x30] sm:$0xf] %v2618
    %3019 = vst [vmem:[%s3008 + $0x34] sm:$0xf] %v2619
    %3020 = vst [vmem:[%s3008 + $0x38] sm:$0xf] %v2620
    %3021 = vst [vmem:[%s3008 + $0x3c] sm:$0xf] %v2621
    %3022 = vst [vmem:[%s3008 + $0x40] sm:$0xf] %v2622
    %3023 = vst [vmem:[%s3008 + $0x44] sm:$0xf] %v2623
    %3024 = vst [vmem:[%s3008 + $0x48] sm:$0xf] %v2624
    %vm3025 = vsmask.f32 4368
    %vm3026 = vmor %vm2627, %vm3025
    %v3028 = vshrl.u32 %v2880, 16
    %v3030 = vrot.slane %v3028, 7
    %v3031 = vshll.u32 %v2880, 16
    %v3033 = vor.u32 %v3030, %v3031
    %v3034 = vrot.slane %v3030, 4
    %v3036 = vshrl.u32 %v2881, 16
    %v3038 = vrot.slane %v3036, 7
    %v3039 = vshll.u32 %v2881, 16
    %v3041 = vor.u32 %v3038, %v3039
    %v3042 = vsel %vm3026, %v3034, %v3041
    %v3043 = vrot.slane %v3038, 4
    %v3045 = vshrl.u32 %v2882, 16
    %v3047 = vrot.slane %v3045, 7
    %v3048 = vshll.u32 %v2882, 16
    %v3050 = vor.u32 %v3047, %v3048
    %v3051 = vsel %vm3026, %v3043, %v3050
    %v3052 = vrot.slane %v3047, 4
    %v3054 = vshrl.u32 %v2883, 16
    %v3056 = vrot.slane %v3054, 7
    %v3057 = vshll.u32 %v2883, 16
    %v3059 = vor.u32 %v3056, %v3057
    %v3060 = vsel %vm3026, %v3052, %v3059
    %v3061 = vrot.slane %v3056, 4
    %v3063 = vshrl.u32 %v2884, 16
    %v3065 = vrot.slane %v3063, 7
    %v3066 = vshll.u32 %v2884, 16
    %v3068 = vor.u32 %v3065, %v3066
    %v3069 = vsel %vm3026, %v3061, %v3068
    %v3070 = vrot.slane %v3065, 4
    %v3072 = vshrl.u32 %v2885, 16
    %v3074 = vrot.slane %v3072, 7
    %v3075 = vshll.u32 %v2885, 16
    %v3077 = vor.u32 %v3074, %v3075
    %v3078 = vsel %vm3026, %v3070, %v3077
    %v3079 = vrot.slane %v3074, 4
    %v3081 = vshrl.u32 %v2886, 16
    %v3083 = vrot.slane %v3081, 7
    %v3084 = vshll.u32 %v2886, 16
    %v3086 = vor.u32 %v3083, %v3084
    %v3087 = vsel %vm3026, %v3079, %v3086
    %v3088 = vrot.slane %v3083, 4
    %v3090 = vshrl.u32 %v2887, 16
    %v3092 = vrot.slane %v3090, 7
    %v3093 = vshll.u32 %v2887, 16
    %v3095 = vor.u32 %v3092, %v3093
    %v3096 = vsel %vm3026, %v3088, %v3095
    %v3097 = vrot.slane %v3092, 4
    %v3099 = vshrl.u32 %v2888, 16
    %v3101 = vrot.slane %v3099, 7
    %v3102 = vshll.u32 %v2888, 16
    %v3104 = vor.u32 %v3101, %v3102
    %v3105 = vrot.slane %v3101, 4
    %v3107 = vshrl.u32 %v2889, 16
    %v3109 = vrot.slane %v3107, 7
    %v3110 = vshll.u32 %v2889, 16
    %v3112 = vor.u32 %v3109, %v3110
    %v3113 = vsel %vm3026, %v3105, %v3112
    %v3114 = vrot.slane %v3109, 4
    %v3116 = vshrl.u32 %v2890, 16
    %v3118 = vrot.slane %v3116, 7
    %v3119 = vshll.u32 %v2890, 16
    %v3121 = vor.u32 %v3118, %v3119
    %v3122 = vsel %vm3026, %v3114, %v3121
    %v3123 = vrot.slane %v3118, 4
    %v3125 = vshrl.u32 %v2891, 16
    %v3127 = vrot.slane %v3125, 7
    %v3128 = vshll.u32 %v2891, 16
    %v3130 = vor.u32 %v3127, %v3128
    %v3131 = vsel %vm3026, %v3123, %v3130
    %v3132 = vrot.slane %v3127, 4
    %v3134 = vshrl.u32 %v2892, 16
    %v3136 = vrot.slane %v3134, 7
    %v3137 = vshll.u32 %v2892, 16
    %v3139 = vor.u32 %v3136, %v3137
    %v3140 = vsel %vm3026, %v3132, %v3139
    %v3141 = vrot.slane %v3136, 4
    %v3143 = vshrl.u32 %v2893, 16
    %v3145 = vrot.slane %v3143, 7
    %v3146 = vshll.u32 %v2893, 16
    %v3148 = vor.u32 %v3145, %v3146
    %v3149 = vsel %vm3026, %v3141, %v3148
    %v3150 = vrot.slane %v3145, 4
    %v3152 = vshrl.u32 %v2894, 16
    %v3154 = vrot.slane %v3152, 7
    %v3155 = vshll.u32 %v2894, 16
    %v3157 = vor.u32 %v3154, %v3155
    %v3158 = vsel %vm3026, %v3150, %v3157
    %v3159 = vrot.slane %v3154, 4
    %v3161 = vshrl.u32 %v2895, 16
    %v3163 = vrot.slane %v3161, 7
    %v3164 = vshll.u32 %v2895, 16
    %v3166 = vor.u32 %v3163, %v3164
    %v3167 = vsel %vm3026, %v3159, %v3166
    %v3168 = vrot.slane %v3163, 4
    %vm3187 = vcmask 1043456
    %vm3188 = vsmask.f32 7938
    %vm3189 = vmand %vm3187, %vm3188
    %v3190 = vld [vmem:[#allocation2 + $0x4] sm:$0xf]
    %v3191 = vsel %vm3189, %v3033, %v3190
    %3192 = vst [vmem:[#allocation2 + $0x4] sm:$0xf] %v3191
    %3193 = vst [vmem:[#allocation2 + $0x8] sm:$0xf] %v3042
    %3194 = vst [vmem:[#allocation2 + $0xc] sm:$0xf] %v3051
    %3195 = vst [vmem:[#allocation2 + $0x10] sm:$0xf] %v3060
    %3196 = vst [vmem:[#allocation2 + $0x14] sm:$0xf] %v3069
    %3197 = vst [vmem:[#allocation2 + $0x18] sm:$0xf] %v3078
    %3198 = vst [vmem:[#allocation2 + $0x1c] sm:$0xf] %v3087
    %3199 = vst [vmem:[#allocation2 + $0x20] sm:$0xf] %v3096
    %v3200 = vld [vmem:[#allocation2 + $0x24] sm:$0x1]
    %v3201 = vsel %vm2628, %v3097, %v3200
    %3202 = vst [vmem:[#allocation2 + $0x24] sm:$0x1] %v3201
    %v3203 = vld [vmem:[#allocation2 + $0x2c] sm:$0xf]
    %v3204 = vsel %vm3189, %v3104, %v3203
    %3205 = vst [vmem:[#allocation2 + $0x2c] sm:$0xf] %v3204
    %3206 = vst [vmem:[#allocation2 + $0x30] sm:$0xf] %v3113
    %3207 = vst [vmem:[#allocation2 + $0x34] sm:$0xf] %v3122
    %3208 = vst [vmem:[#allocation2 + $0x38] sm:$0xf] %v3131
    %3209 = vst [vmem:[#allocation2 + $0x3c] sm:$0xf] %v3140
    %3210 = vst [vmem:[#allocation2 + $0x40] sm:$0xf] %v3149
    %3211 = vst [vmem:[#allocation2 + $0x44] sm:$0xf] %v3158
    %3212 = vst [vmem:[#allocation2 + $0x48] sm:$0xf] %v3167
    %v3213 = vld [vmem:[#allocation2 + $0x4c] sm:$0x1]
    %v3214 = vsel %vm2628, %v3168, %v3213
    %3215 = vst [vmem:[#allocation2 + $0x4c] sm:$0x1] %v3214
    %vm3216 = vsmask.f32 3328
    %vm3217 = vsmask.f32 7440
    %vm3218 = vmor %vm3216, %vm3217
    %v3220 = vshll.u32 %v2992, 16
    %v3222 = vrot.slane %v3220, 5
    %v3223 = vshrl.u32 %v2992, 16
    %v3225 = vrot.slane %v3223, 4
    %v3226 = vor.u32 %v3225, %v3222
    %v3227 = vrot.slane %v3226, 4
    %v3229 = vshll.u32 %v2993, 16
    %v3231 = vrot.slane %v3229, 5
    %v3232 = vsel %vm3218, %v3227, %v3231
    %v3233 = vshrl.u32 %v2993, 16
    %v3235 = vrot.slane %v3233, 4
    %v3236 = vor.u32 %v3235, %v3231
    %v3237 = vrot.slane %v3236, 4
    %v3239 = vshll.u32 %v2994, 16
    %v3241 = vrot.slane %v3239, 5
    %v3242 = vsel %vm3218, %v3237, %v3241
    %v3243 = vshrl.u32 %v2994, 16
    %v3245 = vrot.slane %v3243, 4
    %v3246 = vor.u32 %v3245, %v3241
    %v3247 = vrot.slane %v3246, 4
    %v3249 = vshll.u32 %v2995, 16
    %v3251 = vrot.slane %v3249, 5
    %v3252 = vsel %vm3218, %v3247, %v3251
    %v3253 = vshrl.u32 %v2995, 16
    %v3255 = vrot.slane %v3253, 4
    %v3256 = vor.u32 %v3255, %v3251
    %v3257 = vrot.slane %v3256, 4
    %v3259 = vshll.u32 %v2996, 16
    %v3261 = vrot.slane %v3259, 5
    %v3262 = vsel %vm3218, %v3257, %v3261
    %v3263 = vshrl.u32 %v2996, 16
    %v3265 = vrot.slane %v3263, 4
    %v3266 = vor.u32 %v3265, %v3261
    %v3267 = vrot.slane %v3266, 4
    %v3269 = vshll.u32 %v2997, 16
    %v3271 = vrot.slane %v3269, 5
    %v3272 = vsel %vm3218, %v3267, %v3271
    %v3273 = vshrl.u32 %v2997, 16
    %v3275 = vrot.slane %v3273, 4
    %v3276 = vor.u32 %v3275, %v3271
    %v3277 = vrot.slane %v3276, 4
    %v3279 = vshll.u32 %v2998, 16
    %v3281 = vrot.slane %v3279, 5
    %v3282 = vsel %vm3218, %v3277, %v3281
    %v3283 = vshrl.u32 %v2998, 16
    %v3285 = vrot.slane %v3283, 4
    %v3286 = vor.u32 %v3285, %v3281
    %v3287 = vrot.slane %v3286, 4
    %v3289 = vshll.u32 %v2999, 16
    %v3291 = vrot.slane %v3289, 5
    %v3292 = vsel %vm3218, %v3287, %v3291
    %v3293 = vshrl.u32 %v2999, 16
    %v3295 = vrot.slane %v3293, 4
    %v3296 = vor.u32 %v3295, %v3291
    %v3297 = vrot.slane %v3296, 4
    %v3299 = vshll.u32 %v3000, 16
    %v3301 = vrot.slane %v3299, 5
    %v3302 = vshrl.u32 %v3000, 16
    %v3304 = vrot.slane %v3302, 4
    %v3305 = vor.u32 %v3304, %v3301
    %v3306 = vrot.slane %v3305, 4
    %v3308 = vshll.u32 %v3001, 16
    %v3310 = vrot.slane %v3308, 5
    %v3311 = vsel %vm3218, %v3306, %v3310
    %v3312 = vshrl.u32 %v3001, 16
    %v3314 = vrot.slane %v3312, 4
    %v3315 = vor.u32 %v3314, %v3310
    %v3316 = vrot.slane %v3315, 4
    %v3318 = vshll.u32 %v3002, 16
    %v3320 = vrot.slane %v3318, 5
    %v3321 = vsel %vm3218, %v3316, %v3320
    %v3322 = vshrl.u32 %v3002, 16
    %v3324 = vrot.slane %v3322, 4
    %v3325 = vor.u32 %v3324, %v3320
    %v3326 = vrot.slane %v3325, 4
    %v3328 = vshll.u32 %v3003, 16
    %v3330 = vrot.slane %v3328, 5
    %v3331 = vsel %vm3218, %v3326, %v3330
    %v3332 = vshrl.u32 %v3003, 16
    %v3334 = vrot.slane %v3332, 4
    %v3335 = vor.u32 %v3334, %v3330
    %v3336 = vrot.slane %v3335, 4
    %v3338 = vshll.u32 %v3004, 16
    %v3340 = vrot.slane %v3338, 5
    %v3341 = vsel %vm3218, %v3336, %v3340
    %v3342 = vshrl.u32 %v3004, 16
    %v3344 = vrot.slane %v3342, 4
    %v3345 = vor.u32 %v3344, %v3340
    %v3346 = vrot.slane %v3345, 4
    %v3348 = vshll.u32 %v3005, 16
    %v3350 = vrot.slane %v3348, 5
    %v3351 = vsel %vm3218, %v3346, %v3350
    %v3352 = vshrl.u32 %v3005, 16
    %v3354 = vrot.slane %v3352, 4
    %v3355 = vor.u32 %v3354, %v3350
    %v3356 = vrot.slane %v3355, 4
    %v3358 = vshll.u32 %v3006, 16
    %v3360 = vrot.slane %v3358, 5
    %v3361 = vsel %vm3218, %v3356, %v3360
    %v3362 = vshrl.u32 %v3006, 16
    %v3364 = vrot.slane %v3362, 4
    %v3365 = vor.u32 %v3364, %v3360
    %v3366 = vrot.slane %v3365, 4
    %v3368 = vshll.u32 %v3007, 16
    %v3370 = vrot.slane %v3368, 5
    %v3371 = vsel %vm3218, %v3366, %v3370
    %v3372 = vshrl.u32 %v3007, 16
    %v3374 = vrot.slane %v3372, 4
    %v3375 = vor.u32 %v3374, %v3370
    %v3376 = vrot.slane %v3375, 4
    %s3395 = scalar_lea.vmem [#allocation2], 160
    %v3396 = vld [vmem:[%s3395] sm:$0x8]
    %v3397 = vsel %vm2654, %v3222, %v3396
    %3398 = vst [vmem:[%s3395] sm:$0x8] %v3397
    %3399 = vst [vmem:[%s3395 + $0x4] sm:$0xf] %v3232
    %3400 = vst [vmem:[%s3395 + $0x8] sm:$0xf] %v3242
    %3401 = vst [vmem:[%s3395 + $0xc] sm:$0xf] %v3252
    %3402 = vst [vmem:[%s3395 + $0x10] sm:$0xf] %v3262
    %3403 = vst [vmem:[%s3395 + $0x14] sm:$0xf] %v3272
    %3404 = vst [vmem:[%s3395 + $0x18] sm:$0xf] %v3282
    %3405 = vst [vmem:[%s3395 + $0x1c] sm:$0xf] %v3292
    %vm3406 = vmand %vm3187, %vm3216
    %v3407 = vld [vmem:[%s3395 + $0x20] sm:$0xf]
    %v3408 = vsel %vm3406, %v3297, %v3407
    %3409 = vst [vmem:[%s3395 + $0x20] sm:$0xf] %v3408
    %v3410 = vld [vmem:[%s3395 + $0x28] sm:$0x8]
    %v3411 = vsel %vm2654, %v3301, %v3410
    %3412 = vst [vmem:[%s3395 + $0x28] sm:$0x8] %v3411
    %3413 = vst [vmem:[%s3395 + $0x2c] sm:$0xf] %v3311
    %3414 = vst [vmem:[%s3395 + $0x30] sm:$0xf] %v3321
    %3415 = vst [vmem:[%s3395 + $0x34] sm:$0xf] %v3331
    %3416 = vst [vmem:[%s3395 + $0x38] sm:$0xf] %v3341
    %3417 = vst [vmem:[%s3395 + $0x3c] sm:$0xf] %v3351
    %3418 = vst [vmem:[%s3395 + $0x40] sm:$0xf] %v3361
    %3419 = vst [vmem:[%s3395 + $0x44] sm:$0xf] %v3371
    %v3420 = vld [vmem:[%s3395 + $0x48] sm:$0xf]
    %v3421 = vsel %vm3406, %v3376, %v3420
    %3422 = vst [vmem:[%s3395 + $0x48] sm:$0xf] %v3421
    %v3423 = vld [vmem:[#allocation2] sm:$0xf]
    %v3424 = vld [vmem:[#allocation2 + $0x4] sm:$0xf]
    %v3425 = vld [vmem:[#allocation2 + $0x8] sm:$0xf]
    %v3426 = vld [vmem:[#allocation2 + $0xc] sm:$0xf]
    %v3427 = vld [vmem:[#allocation2 + $0x10] sm:$0xf]
    %v3428 = vld [vmem:[#allocation2 + $0x14] sm:$0xf]
    %v3429 = vld [vmem:[#allocation2 + $0x18] sm:$0xf]
    %v3430 = vld [vmem:[#allocation2 + $0x1c] sm:$0xf]
    %v3431 = vld [vmem:[#allocation2 + $0x20] sm:$0xf]
    %v3432 = vld [vmem:[#allocation2 + $0x24] sm:$0xf]
    %v3433 = vld [vmem:[#allocation2 + $0x28] sm:$0xf]
    %v3434 = vld [vmem:[#allocation2 + $0x2c] sm:$0xf]
    %v3435 = vld [vmem:[#allocation2 + $0x30] sm:$0xf]
    %v3436 = vld [vmem:[#allocation2 + $0x34] sm:$0xf]
    %v3437 = vld [vmem:[#allocation2 + $0x38] sm:$0xf]
    %v3438 = vld [vmem:[#allocation2 + $0x3c] sm:$0xf]
    %v3439 = vld [vmem:[#allocation2 + $0x40] sm:$0xf]
    %v3440 = vld [vmem:[#allocation2 + $0x44] sm:$0xf]
    %v3441 = vld [vmem:[#allocation2 + $0x48] sm:$0xf]
    %v3442 = vld [vmem:[#allocation2 + $0x4c] sm:$0xf]
    %v3443 = vld [vmem:[#allocation8] sm:$0xf]
    %v3444 = vld [vmem:[#allocation8 + $0x4] sm:$0xf]
    %v3445 = vld [vmem:[#allocation8 + $0x8] sm:$0xf]
    %v3446 = vld [vmem:[#allocation8 + $0xc] sm:$0xf]
    %v3447 = vld [vmem:[#allocation8 + $0x10] sm:$0xf]
    %v3448 = vld [vmem:[#allocation8 + $0x14] sm:$0xf]
    %v3449 = vld [vmem:[#allocation8 + $0x18] sm:$0xf]
    %v3450 = vld [vmem:[#allocation8 + $0x1c] sm:$0xf]
    %v3451 = vld [vmem:[#allocation8 + $0x20] sm:$0xf]
    %v3452 = vld [vmem:[#allocation8 + $0x24] sm:$0xf]
    %v3453 = vld [vmem:[#allocation8 + $0x28] sm:$0xf]
    %v3454 = vld [vmem:[#allocation8 + $0x2c] sm:$0xf]
    %v3455 = vld [vmem:[#allocation8 + $0x30] sm:$0xf]
    %v3456 = vld [vmem:[#allocation8 + $0x34] sm:$0xf]
    %v3457 = vld [vmem:[#allocation8 + $0x38] sm:$0xf]
    %v3458 = vld [vmem:[#allocation8 + $0x3c] sm:$0xf]
    %v3479 = vunpack.c.l.b16 %v3423
    %v3480 = vunpack.c.l.b16 %v3424
    %v3481 = vunpack.c.l.b16 %v3425
    %v3482 = vunpack.c.l.b16 %v3426
    %v3483 = vunpack.c.l.b16 %v3427
    %v3484 = vunpack.c.l.b16 %v3428
    %v3485 = vunpack.c.l.b16 %v3429
    %v3486 = vunpack.c.l.b16 %v3430
    %v3487 = vunpack.c.l.b16 %v3431
    %v3488 = vunpack.c.l.b16 %v3432
    %v3489 = vunpack.c.l.b16 %v3433
    %v3490 = vunpack.c.l.b16 %v3434
    %v3491 = vunpack.c.l.b16 %v3435
    %v3492 = vunpack.c.l.b16 %v3436
    %v3493 = vunpack.c.l.b16 %v3437
    %v3494 = vunpack.c.l.b16 %v3438
    %v3495 = vunpack.c.l.b16 %v3439
    %v3496 = vunpack.c.l.b16 %v3440
    %v3497 = vunpack.c.l.b16 %v3441
    %v3498 = vunpack.c.l.b16 %v3442
    %v3499 = vpack.c.b16 %v3480, %v3479
    %v3500 = vpack.c.b16 %v3482, %v3481
    %v3501 = vpack.c.b16 %v3484, %v3483
    %v3502 = vpack.c.b16 %v3486, %v3485
    %v3503 = vpack.c.b16 %v3488, %v3487
    %v3504 = vpack.c.b16 %v3490, %v3489
    %v3505 = vpack.c.b16 %v3492, %v3491
    %v3506 = vpack.c.b16 %v3494, %v3493
    %v3507 = vpack.c.b16 %v3496, %v3495
    %v3508 = vpack.c.b16 %v3498, %v3497
    %v3535 = vunpack.c.l.b16 %v3443
    %v3536 = vunpack.c.l.b16 %v3444
    %v3537 = vunpack.c.l.b16 %v3445
    %v3538 = vunpack.c.l.b16 %v3446
    %v3539 = vunpack.c.l.b16 %v3447
    %v3540 = vunpack.c.l.b16 %v3448
    %v3541 = vunpack.c.l.b16 %v3449
    %v3542 = vunpack.c.l.b16 %v3450
    %v3543 = vunpack.c.l.b16 %v3451
    %v3544 = vunpack.c.l.b16 %v3452
    %v3545 = vunpack.c.l.b16 %v3453
    %v3546 = vunpack.c.l.b16 %v3454
    %v3547 = vunpack.c.l.b16 %v3455
    %v3548 = vunpack.c.l.b16 %v3456
    %v3549 = vunpack.c.l.b16 %v3457
    %v3550 = vunpack.c.l.b16 %v3458
    %v3551 = vpack.c.b16 %v3536, %v3535
    %v3552 = vpack.c.b16 %v3538, %v3537
    %v3553 = vpack.c.b16 %v3540, %v3539
    %v3554 = vpack.c.b16 %v3542, %v3541
    %v3555 = vpack.c.b16 %v3544, %v3543
    %v3556 = vpack.c.b16 %v3546, %v3545
    %v3557 = vpack.c.b16 %v3548, %v3547
    %v3558 = vpack.c.b16 %v3550, %v3549
    %3567 = vmatprep.subr.bf16.mxu0 0
    %3568 = vmatpush1.bf16.msra.mxu0 %v3558
    %3569 = vmatprep.subr.bf16.mxu0 0
    %3570 = vmatpush1.bf16.msra.mxu0 %v3557
    %3571 = vmatprep.subr.bf16.mxu0 0
    %3572 = vmatpush1.bf16.msra.mxu0 %v3556
    %3573 = vmatprep.subr.bf16.mxu0 0
    %3574 = vmatpush1.bf16.msra.mxu0 %v3555
    %3575 = vmatprep.subr.bf16.mxu0 0
    %3576 = vmatpush1.bf16.msra.mxu0 %v3554
    %3577 = vmatprep.subr.bf16.mxu0 0
    %3578 = vmatpush1.bf16.msra.mxu0 %v3553
    %3579 = vmatprep.subr.bf16.mxu0 0
    %3580 = vmatpush1.bf16.msra.mxu0 %v3552
    %3581 = vmatprep.subr.bf16.mxu0 0
    %3582 = vmatpush1.bf16.msra.mxu0 %v3551
    %3583 = vmatprep.subr.bf16.mxu0 0
    %3584 = vmatpush2.bf16.msra.mxu0 0
    %3585 = vmatprep.subr.bf16.mxu0 0
    %3586 = vmatpush2.bf16.msra.mxu0 0
    %3587 = vmatprep.subr.bf16.mxu0 0
    %3588 = vmatpush2.bf16.msra.mxu0 0
    %3589 = vmatprep.subr.bf16.mxu0 0
    %3590 = vmatpush2.bf16.msra.mxu0 0
    %3591 = vmatprep.subr.bf16.mxu0 0
    %3592 = vmatpush2.bf16.msra.mxu0 0
    %3593 = vmatprep.subr.bf16.mxu0 0
    %3594 = vmatpush2.bf16.msra.mxu0 0
    %3595 = vmatprep.subr.bf16.mxu0 0
    %3596 = vmatpush2.bf16.msra.mxu0 0
    %3597 = vmatprep.subr.bf16.mxu0 0
    %3598 = vmatpush2.bf16.msra.mxu0 0
    %3599 = vmatprep.mubr.bf16.mxu0 0
    %3600 = vmatmul.mubr.bf16.gmra.mxu0 %v3499
    %v3601 = vpop.f32.mrf.mxu0
    %v3602 = vadd.f32 0.0, %v3601
    %v3603 = vpop.f32.mrf.mxu0
    %v3604 = vpop.f32.mrf.mxu0
    %v3605 = vadd.f32 0.0, %v3604
    %v3606 = vpop.f32.mrf.mxu0
    %3607 = vmatprep.mubr.bf16.mxu0 0
    %3608 = vmatmul.mubr.bf16.gmra.mxu0 %v3500
    %v3609 = vpop.f32.mrf.mxu0
    %v3610 = vadd.f32 0.0, %v3609
    %v3611 = vpop.f32.mrf.mxu0
    %v3612 = vpop.f32.mrf.mxu0
    %v3613 = vadd.f32 0.0, %v3612
    %v3614 = vpop.f32.mrf.mxu0
    %3615 = vmatprep.mubr.bf16.mxu0 0
    %3616 = vmatmul.mubr.bf16.gmra.mxu0 %v3501
    %v3617 = vpop.f32.mrf.mxu0
    %v3618 = vadd.f32 0.0, %v3617
    %v3619 = vpop.f32.mrf.mxu0
    %v3620 = vpop.f32.mrf.mxu0
    %v3621 = vadd.f32 0.0, %v3620
    %v3622 = vpop.f32.mrf.mxu0
    %3623 = vmatprep.mubr.bf16.mxu0 0
    %3624 = vmatmul.mubr.bf16.gmra.mxu0 %v3502
    %v3625 = vpop.f32.mrf.mxu0
    %v3626 = vadd.f32 0.0, %v3625
    %v3627 = vpop.f32.mrf.mxu0
    %v3628 = vpop.f32.mrf.mxu0
    %v3629 = vadd.f32 0.0, %v3628
    %v3630 = vpop.f32.mrf.mxu0
    %3631 = vmatprep.mubr.bf16.mxu0 0
    %3632 = vmatmul.mubr.bf16.gmra.mxu0 %v3503
    %v3633 = vpop.f32.mrf.mxu0
    %v3634 = vpop.f32.mrf.mxu0
    %v3635 = vpop.f32.mrf.mxu0
    %v3636 = vpop.f32.mrf.mxu0
    %3637 = vmatprep.mubr.bf16.mxu0 0
    %3638 = vmatmul.mubr.bf16.gmra.mxu0 %v3504
    %v3639 = vpop.f32.mrf.mxu0
    %v3640 = vadd.f32 0.0, %v3639
    %v3641 = vpop.f32.mrf.mxu0
    %v3642 = vpop.f32.mrf.mxu0
    %v3643 = vadd.f32 0.0, %v3642
    %v3644 = vpop.f32.mrf.mxu0
    %3645 = vmatprep.mubr.bf16.mxu0 0
    %3646 = vmatmul.mubr.bf16.gmra.mxu0 %v3505
    %v3647 = vpop.f32.mrf.mxu0
    %v3648 = vadd.f32 0.0, %v3647
    %v3649 = vpop.f32.mrf.mxu0
    %v3650 = vpop.f32.mrf.mxu0
    %v3651 = vadd.f32 0.0, %v3650
    %v3652 = vpop.f32.mrf.mxu0
    %3653 = vmatprep.mubr.bf16.mxu0 0
    %3654 = vmatmul.mubr.bf16.gmra.mxu0 %v3506
    %v3655 = vpop.f32.mrf.mxu0
    %v3656 = vadd.f32 0.0, %v3655
    %v3657 = vpop.f32.mrf.mxu0
    %v3658 = vpop.f32.mrf.mxu0
    %v3659 = vadd.f32 0.0, %v3658
    %v3660 = vpop.f32.mrf.mxu0
    %3661 = vmatprep.mubr.bf16.mxu0 0
    %3662 = vmatmul.mubr.bf16.gmra.mxu0 %v3507
    %v3663 = vpop.f32.mrf.mxu0
    %v3664 = vadd.f32 0.0, %v3663
    %v3665 = vpop.f32.mrf.mxu0
    %v3666 = vpop.f32.mrf.mxu0
    %v3667 = vadd.f32 0.0, %v3666
    %v3668 = vpop.f32.mrf.mxu0
    %3669 = vmatprep.mubr.bf16.mxu0 0
    %3670 = vmatmul.mubr.bf16.gmra.mxu0 %v3508
    %v3671 = vpop.f32.mrf.mxu0
    %v3672 = vpop.f32.mrf.mxu0
    %v3673 = vpop.f32.mrf.mxu0
    %v3674 = vpop.f32.mrf.mxu0
    %3675 = vdwg.mxu0
    %s3676 = scalar_lea.vmem [#allocation8], 192
    %v3677 = vld [vmem:[%s3676] sm:$0xf]
    %v3678 = vld [vmem:[%s3676 + $0x4] sm:$0xf]
    %v3679 = vld [vmem:[%s3676 + $0x8] sm:$0xf]
    %v3680 = vld [vmem:[%s3676 + $0xc] sm:$0xf]
    %v3681 = vld [vmem:[%s3676 + $0x10] sm:$0xf]
    %v3682 = vld [vmem:[%s3676 + $0x14] sm:$0xf]
    %v3683 = vld [vmem:[%s3676 + $0x18] sm:$0xf]
    %v3684 = vld [vmem:[%s3676 + $0x1c] sm:$0xf]
    %v3685 = vld [vmem:[%s3676 + $0x20] sm:$0xf]
    %v3686 = vld [vmem:[%s3676 + $0x24] sm:$0xf]
    %v3687 = vld [vmem:[%s3676 + $0x28] sm:$0xf]
    %v3688 = vld [vmem:[%s3676 + $0x2c] sm:$0xf]
    %v3689 = vld [vmem:[%s3676 + $0x30] sm:$0xf]
    %v3690 = vld [vmem:[%s3676 + $0x34] sm:$0xf]
    %v3691 = vld [vmem:[%s3676 + $0x38] sm:$0xf]
    %v3692 = vld [vmem:[%s3676 + $0x3c] sm:$0xf]
    %v3709 = vunpack.c.l.b16 %v3677
    %v3710 = vunpack.c.l.b16 %v3678
    %v3711 = vunpack.c.l.b16 %v3679
    %v3712 = vunpack.c.l.b16 %v3680
    %v3713 = vunpack.c.l.b16 %v3681
    %v3714 = vunpack.c.l.b16 %v3682
    %v3715 = vunpack.c.l.b16 %v3683
    %v3716 = vunpack.c.l.b16 %v3684
    %v3717 = vunpack.c.l.b16 %v3685
    %v3718 = vunpack.c.l.b16 %v3686
    %v3719 = vunpack.c.l.b16 %v3687
    %v3720 = vunpack.c.l.b16 %v3688
    %v3721 = vunpack.c.l.b16 %v3689
    %v3722 = vunpack.c.l.b16 %v3690
    %v3723 = vunpack.c.l.b16 %v3691
    %v3724 = vunpack.c.l.b16 %v3692
    %v3725 = vpack.c.b16 %v3710, %v3709
    %v3726 = vpack.c.b16 %v3712, %v3711
    %v3727 = vpack.c.b16 %v3714, %v3713
    %v3728 = vpack.c.b16 %v3716, %v3715
    %v3729 = vpack.c.b16 %v3718, %v3717
    %v3730 = vpack.c.b16 %v3720, %v3719
    %v3731 = vpack.c.b16 %v3722, %v3721
    %v3732 = vpack.c.b16 %v3724, %v3723
    %3741 = vmatprep.subr.bf16.mxu0 0
    %3742 = vmatpush1.bf16.msra.mxu0 %v3732
    %3743 = vmatprep.subr.bf16.mxu0 0
    %3744 = vmatpush1.bf16.msra.mxu0 %v3731
    %3745 = vmatprep.subr.bf16.mxu0 0
    %3746 = vmatpush1.bf16.msra.mxu0 %v3730
    %3747 = vmatprep.subr.bf16.mxu0 0
    %3748 = vmatpush1.bf16.msra.mxu0 %v3729
    %3749 = vmatprep.subr.bf16.mxu0 0
    %3750 = vmatpush1.bf16.msra.mxu0 %v3728
    %3751 = vmatprep.subr.bf16.mxu0 0
    %3752 = vmatpush1.bf16.msra.mxu0 %v3727
    %3753 = vmatprep.subr.bf16.mxu0 0
    %3754 = vmatpush1.bf16.msra.mxu0 %v3726
    %3755 = vmatprep.subr.bf16.mxu0 0
    %3756 = vmatpush1.bf16.msra.mxu0 %v3725
    %3757 = vmatprep.subr.bf16.mxu0 0
    %3758 = vmatpush2.bf16.msra.mxu0 0
    %3759 = vmatprep.subr.bf16.mxu0 0
    %3760 = vmatpush2.bf16.msra.mxu0 0
    %3761 = vmatprep.subr.bf16.mxu0 0
    %3762 = vmatpush2.bf16.msra.mxu0 0
    %3763 = vmatprep.subr.bf16.mxu0 0
    %3764 = vmatpush2.bf16.msra.mxu0 0
    %3765 = vmatprep.subr.bf16.mxu0 0
    %3766 = vmatpush2.bf16.msra.mxu0 0
    %3767 = vmatprep.subr.bf16.mxu0 0
    %3768 = vmatpush2.bf16.msra.mxu0 0
    %3769 = vmatprep.subr.bf16.mxu0 0
    %3770 = vmatpush2.bf16.msra.mxu0 0
    %3771 = vmatprep.subr.bf16.mxu0 0
    %3772 = vmatpush2.bf16.msra.mxu0 0
    %3773 = vmatprep.mubr.bf16.mxu0 0
    %3774 = vmatmul.mubr.bf16.gmra.mxu0 %v3499
    %v3775 = vpop.f32.mrf.mxu0
    %v3776 = vpop.f32.mrf.mxu0
    %v3777 = vpop.f32.mrf.mxu0
    %v3778 = vadd.f32 0.0, %v3777
    %v3779 = vpop.f32.mrf.mxu0
    %3780 = vmatprep.mubr.bf16.mxu0 0
    %3781 = vmatmul.mubr.bf16.gmra.mxu0 %v3500
    %v3782 = vpop.f32.mrf.mxu0
    %v3783 = vadd.f32 0.0, %v3782
    %v3784 = vpop.f32.mrf.mxu0
    %v3785 = vpop.f32.mrf.mxu0
    %v3786 = vadd.f32 0.0, %v3785
    %v3787 = vpop.f32.mrf.mxu0
    %3788 = vmatprep.mubr.bf16.mxu0 0
    %3789 = vmatmul.mubr.bf16.gmra.mxu0 %v3501
    %v3790 = vpop.f32.mrf.mxu0
    %v3791 = vadd.f32 0.0, %v3790
    %v3792 = vpop.f32.mrf.mxu0
    %v3793 = vpop.f32.mrf.mxu0
    %v3794 = vadd.f32 0.0, %v3793
    %v3795 = vpop.f32.mrf.mxu0
    %3796 = vmatprep.mubr.bf16.mxu0 0
    %3797 = vmatmul.mubr.bf16.gmra.mxu0 %v3502
    %v3798 = vpop.f32.mrf.mxu0
    %v3799 = vadd.f32 0.0, %v3798
    %v3800 = vpop.f32.mrf.mxu0
    %v3801 = vpop.f32.mrf.mxu0
    %v3802 = vadd.f32 0.0, %v3801
    %v3803 = vpop.f32.mrf.mxu0
    %3804 = vmatprep.mubr.bf16.mxu0 0
    %3805 = vmatmul.mubr.bf16.gmra.mxu0 %v3503
    %v3806 = vpop.f32.mrf.mxu0
    %v3807 = vadd.f32 0.0, %v3806
    %v3808 = vpop.f32.mrf.mxu0
    %v3809 = vpop.f32.mrf.mxu0
    %v3810 = vpop.f32.mrf.mxu0
    %3811 = vmatprep.mubr.bf16.mxu0 0
    %3812 = vmatmul.mubr.bf16.gmra.mxu0 %v3504
    %v3813 = vpop.f32.mrf.mxu0
    %v3814 = vpop.f32.mrf.mxu0
    %v3815 = vpop.f32.mrf.mxu0
    %v3816 = vadd.f32 0.0, %v3815
    %v3817 = vpop.f32.mrf.mxu0
    %3818 = vmatprep.mubr.bf16.mxu0 0
    %3819 = vmatmul.mubr.bf16.gmra.mxu0 %v3505
    %v3820 = vpop.f32.mrf.mxu0
    %v3821 = vadd.f32 0.0, %v3820
    %v3822 = vpop.f32.mrf.mxu0
    %v3823 = vpop.f32.mrf.mxu0
    %v3824 = vadd.f32 0.0, %v3823
    %v3825 = vpop.f32.mrf.mxu0
    %3826 = vmatprep.mubr.bf16.mxu0 0
    %3827 = vmatmul.mubr.bf16.gmra.mxu0 %v3506
    %v3828 = vpop.f32.mrf.mxu0
    %v3829 = vadd.f32 0.0, %v3828
    %v3830 = vpop.f32.mrf.mxu0
    %v3831 = vpop.f32.mrf.mxu0
    %v3832 = vadd.f32 0.0, %v3831
    %v3833 = vpop.f32.mrf.mxu0
    %3834 = vmatprep.mubr.bf16.mxu0 0
    %3835 = vmatmul.mubr.bf16.gmra.mxu0 %v3507
    %v3836 = vpop.f32.mrf.mxu0
    %v3837 = vadd.f32 0.0, %v3836
    %v3838 = vpop.f32.mrf.mxu0
    %v3839 = vpop.f32.mrf.mxu0
    %v3840 = vadd.f32 0.0, %v3839
    %v3841 = vpop.f32.mrf.mxu0
    %3842 = vmatprep.mubr.bf16.mxu0 0
    %3843 = vmatmul.mubr.bf16.gmra.mxu0 %v3508
    %v3844 = vpop.f32.mrf.mxu0
    %v3845 = vadd.f32 0.0, %v3844
    %v3846 = vpop.f32.mrf.mxu0
    %v3847 = vpop.f32.mrf.mxu0
    %v3848 = vpop.f32.mrf.mxu0
    %3849 = vdwg.mxu0
    %v3850 = vadd.f32 %v3602, %v3778
    %v3851 = vadd.f32 %v3605, %v3783
    %v3852 = vadd.f32 %v3610, %v3786
    %v3853 = vadd.f32 %v3613, %v3791
    %v3854 = vadd.f32 %v3618, %v3794
    %v3855 = vadd.f32 %v3621, %v3799
    %v3856 = vadd.f32 %v3626, %v3802
    %v3857 = vadd.f32 %v3629, %v3807
    %v3858 = vadd.f32 %v3640, %v3816
    %v3859 = vadd.f32 %v3643, %v3821
    %v3860 = vadd.f32 %v3648, %v3824
    %v3861 = vadd.f32 %v3651, %v3829
    %v3862 = vadd.f32 %v3656, %v3832
    %v3863 = vadd.f32 %v3659, %v3837
    %v3864 = vadd.f32 %v3664, %v3840
    %v3865 = vadd.f32 %v3667, %v3845
    %s3866 = scalar_lea.vmem [#allocation8], 384
    %v3867 = vld [vmem:[%s3866] sm:$0xf]
    %v3868 = vld [vmem:[%s3866 + $0x4] sm:$0xf]
    %v3869 = vld [vmem:[%s3866 + $0x8] sm:$0xf]
    %v3870 = vld [vmem:[%s3866 + $0xc] sm:$0xf]
    %v3871 = vld [vmem:[%s3866 + $0x10] sm:$0xf]
    %v3872 = vld [vmem:[%s3866 + $0x14] sm:$0xf]
    %v3873 = vld [vmem:[%s3866 + $0x18] sm:$0xf]
    %v3874 = vld [vmem:[%s3866 + $0x1c] sm:$0xf]
    %v3875 = vld [vmem:[%s3866 + $0x20] sm:$0xf]
    %v3876 = vld [vmem:[%s3866 + $0x24] sm:$0xf]
    %v3877 = vld [vmem:[%s3866 + $0x28] sm:$0xf]
    %v3878 = vld [vmem:[%s3866 + $0x2c] sm:$0xf]
    %v3879 = vld [vmem:[%s3866 + $0x30] sm:$0xf]
    %v3880 = vld [vmem:[%s3866 + $0x34] sm:$0xf]
    %v3881 = vld [vmem:[%s3866 + $0x38] sm:$0xf]
    %v3882 = vld [vmem:[%s3866 + $0x3c] sm:$0xf]
    %v3899 = vunpack.c.l.b16 %v3867
    %v3900 = vunpack.c.l.b16 %v3868
    %v3901 = vunpack.c.l.b16 %v3869
    %v3902 = vunpack.c.l.b16 %v3870
    %v3903 = vunpack.c.l.b16 %v3871
    %v3904 = vunpack.c.l.b16 %v3872
    %v3905 = vunpack.c.l.b16 %v3873
    %v3906 = vunpack.c.l.b16 %v3874
    %v3907 = vunpack.c.l.b16 %v3875
    %v3908 = vunpack.c.l.b16 %v3876
    %v3909 = vunpack.c.l.b16 %v3877
    %v3910 = vunpack.c.l.b16 %v3878
    %v3911 = vunpack.c.l.b16 %v3879
    %v3912 = vunpack.c.l.b16 %v3880
    %v3913 = vunpack.c.l.b16 %v3881
    %v3914 = vunpack.c.l.b16 %v3882
    %v3915 = vpack.c.b16 %v3900, %v3899
    %v3916 = vpack.c.b16 %v3902, %v3901
    %v3917 = vpack.c.b16 %v3904, %v3903
    %v3918 = vpack.c.b16 %v3906, %v3905
    %v3919 = vpack.c.b16 %v3908, %v3907
    %v3920 = vpack.c.b16 %v3910, %v3909
    %v3921 = vpack.c.b16 %v3912, %v3911
    %v3922 = vpack.c.b16 %v3914, %v3913
    %3931 = vmatprep.subr.bf16.mxu0 0
    %3932 = vmatpush1.bf16.msra.mxu0 %v3922
    %3933 = vmatprep.subr.bf16.mxu0 0
    %3934 = vmatpush1.bf16.msra.mxu0 %v3921
    %3935 = vmatprep.subr.bf16.mxu0 0
    %3936 = vmatpush1.bf16.msra.mxu0 %v3920
    %3937 = vmatprep.subr.bf16.mxu0 0
    %3938 = vmatpush1.bf16.msra.mxu0 %v3919
    %3939 = vmatprep.subr.bf16.mxu0 0
    %3940 = vmatpush1.bf16.msra.mxu0 %v3918
    %3941 = vmatprep.subr.bf16.mxu0 0
    %3942 = vmatpush1.bf16.msra.mxu0 %v3917
    %3943 = vmatprep.subr.bf16.mxu0 0
    %3944 = vmatpush1.bf16.msra.mxu0 %v3916
    %3945 = vmatprep.subr.bf16.mxu0 0
    %3946 = vmatpush1.bf16.msra.mxu0 %v3915
    %3947 = vmatprep.subr.bf16.mxu0 0
    %3948 = vmatpush2.bf16.msra.mxu0 0
    %3949 = vmatprep.subr.bf16.mxu0 0
    %3950 = vmatpush2.bf16.msra.mxu0 0
    %3951 = vmatprep.subr.bf16.mxu0 0
    %3952 = vmatpush2.bf16.msra.mxu0 0
    %3953 = vmatprep.subr.bf16.mxu0 0
    %3954 = vmatpush2.bf16.msra.mxu0 0
    %3955 = vmatprep.subr.bf16.mxu0 0
    %3956 = vmatpush2.bf16.msra.mxu0 0
    %3957 = vmatprep.subr.bf16.mxu0 0
    %3958 = vmatpush2.bf16.msra.mxu0 0
    %3959 = vmatprep.subr.bf16.mxu0 0
    %3960 = vmatpush2.bf16.msra.mxu0 0
    %3961 = vmatprep.subr.bf16.mxu0 0
    %3962 = vmatpush2.bf16.msra.mxu0 0
    %3963 = vmatprep.mubr.bf16.mxu0 0
    %3964 = vmatmul.mubr.bf16.gmra.mxu0 %v3499
    %v3965 = vpop.f32.mrf.mxu0
    %v3966 = vpop.f32.mrf.mxu0
    %v3967 = vpop.f32.mrf.mxu0
    %v3968 = vpop.f32.mrf.mxu0
    %3969 = vmatprep.mubr.bf16.mxu0 0
    %3970 = vmatmul.mubr.bf16.gmra.mxu0 %v3500
    %v3971 = vpop.f32.mrf.mxu0
    %v3972 = vadd.f32 0.0, %v3971
    %v3973 = vpop.f32.mrf.mxu0
    %v3974 = vpop.f32.mrf.mxu0
    %v3975 = vadd.f32 0.0, %v3974
    %v3976 = vpop.f32.mrf.mxu0
    %3977 = vmatprep.mubr.bf16.mxu0 0
    %3978 = vmatmul.mubr.bf16.gmra.mxu0 %v3501
    %v3979 = vpop.f32.mrf.mxu0
    %v3980 = vadd.f32 0.0, %v3979
    %v3981 = vpop.f32.mrf.mxu0
    %v3982 = vpop.f32.mrf.mxu0
    %v3983 = vadd.f32 0.0, %v3982
    %v3984 = vpop.f32.mrf.mxu0
    %3985 = vmatprep.mubr.bf16.mxu0 0
    %3986 = vmatmul.mubr.bf16.gmra.mxu0 %v3502
    %v3987 = vpop.f32.mrf.mxu0
    %v3988 = vadd.f32 0.0, %v3987
    %v3989 = vpop.f32.mrf.mxu0
    %v3990 = vpop.f32.mrf.mxu0
    %v3991 = vadd.f32 0.0, %v3990
    %v3992 = vpop.f32.mrf.mxu0
    %3993 = vmatprep.mubr.bf16.mxu0 0
    %3994 = vmatmul.mubr.bf16.gmra.mxu0 %v3503
    %v3995 = vpop.f32.mrf.mxu0
    %v3996 = vadd.f32 0.0, %v3995
    %v3997 = vpop.f32.mrf.mxu0
    %v3998 = vpop.f32.mrf.mxu0
    %v3999 = vadd.f32 0.0, %v3998
    %v4000 = vpop.f32.mrf.mxu0
    %4001 = vmatprep.mubr.bf16.mxu0 0
    %4002 = vmatmul.mubr.bf16.gmra.mxu0 %v3504
    %v4003 = vpop.f32.mrf.mxu0
    %v4004 = vpop.f32.mrf.mxu0
    %v4005 = vpop.f32.mrf.mxu0
    %v4006 = vpop.f32.mrf.mxu0
    %4007 = vmatprep.mubr.bf16.mxu0 0
    %4008 = vmatmul.mubr.bf16.gmra.mxu0 %v3505
    %v4009 = vpop.f32.mrf.mxu0
    %v4010 = vadd.f32 0.0, %v4009
    %v4011 = vpop.f32.mrf.mxu0
    %v4012 = vpop.f32.mrf.mxu0
    %v4013 = vadd.f32 0.0, %v4012
    %v4014 = vpop.f32.mrf.mxu0
    %4015 = vmatprep.mubr.bf16.mxu0 0
    %4016 = vmatmul.mubr.bf16.gmra.mxu0 %v3506
    %v4017 = vpop.f32.mrf.mxu0
    %v4018 = vadd.f32 0.0, %v4017
    %v4019 = vpop.f32.mrf.mxu0
    %v4020 = vpop.f32.mrf.mxu0
    %v4021 = vadd.f32 0.0, %v4020
    %v4022 = vpop.f32.mrf.mxu0
    %4023 = vmatprep.mubr.bf16.mxu0 0
    %4024 = vmatmul.mubr.bf16.gmra.mxu0 %v3507
    %v4025 = vpop.f32.mrf.mxu0
    %v4026 = vadd.f32 0.0, %v4025
    %v4027 = vpop.f32.mrf.mxu0
    %v4028 = vpop.f32.mrf.mxu0
    %v4029 = vadd.f32 0.0, %v4028
    %v4030 = vpop.f32.mrf.mxu0
    %4031 = vmatprep.mubr.bf16.mxu0 0
    %4032 = vmatmul.mubr.bf16.gmra.mxu0 %v3508
    %v4033 = vpop.f32.mrf.mxu0
    %v4034 = vadd.f32 0.0, %v4033
    %v4035 = vpop.f32.mrf.mxu0
    %v4036 = vpop.f32.mrf.mxu0
    %v4037 = vadd.f32 0.0, %v4036
    %v4038 = vpop.f32.mrf.mxu0
    %4039 = vdwg.mxu0
    %v4040 = vadd.f32 %v3850, %v3972
    %v4041 = vadd.f32 %v3851, %v3975
    %v4042 = vadd.f32 %v3852, %v3980
    %v4043 = vadd.f32 %v3853, %v3983
    %v4044 = vadd.f32 %v3854, %v3988
    %v4045 = vadd.f32 %v3855, %v3991
    %v4046 = vadd.f32 %v3856, %v3996
    %v4047 = vadd.f32 %v3857, %v3999
    %v4048 = vadd.f32 %v3858, %v4010
    %v4049 = vadd.f32 %v3859, %v4013
    %v4050 = vadd.f32 %v3860, %v4018
    %v4051 = vadd.f32 %v3861, %v4021
    %v4052 = vadd.f32 %v3862, %v4026
    %v4053 = vadd.f32 %v3863, %v4029
    %v4054 = vadd.f32 %v3864, %v4034
    %v4055 = vadd.f32 %v3865, %v4037
    %v4056 = vld [vmem:[%s3008] sm:$0xf]
    %v4057 = vld [vmem:[%s3008 + $0x4] sm:$0xf]
    %v4058 = vld [vmem:[%s3008 + $0x8] sm:$0xf]
    %v4059 = vld [vmem:[%s3008 + $0xc] sm:$0xf]
    %v4060 = vld [vmem:[%s3008 + $0x10] sm:$0xf]
    %v4061 = vld [vmem:[%s3008 + $0x14] sm:$0xf]
    %v4062 = vld [vmem:[%s3008 + $0x18] sm:$0xf]
    %v4063 = vld [vmem:[%s3008 + $0x1c] sm:$0xf]
    %v4064 = vld [vmem:[%s3008 + $0x20] sm:$0xf]
    %v4065 = vld [vmem:[%s3008 + $0x24] sm:$0xf]
    %v4066 = vld [vmem:[%s3008 + $0x28] sm:$0xf]
    %v4067 = vld [vmem:[%s3008 + $0x2c] sm:$0xf]
    %v4068 = vld [vmem:[%s3008 + $0x30] sm:$0xf]
    %v4069 = vld [vmem:[%s3008 + $0x34] sm:$0xf]
    %v4070 = vld [vmem:[%s3008 + $0x38] sm:$0xf]
    %v4071 = vld [vmem:[%s3008 + $0x3c] sm:$0xf]
    %v4072 = vld [vmem:[%s3008 + $0x40] sm:$0xf]
    %v4073 = vld [vmem:[%s3008 + $0x44] sm:$0xf]
    %v4074 = vld [vmem:[%s3008 + $0x48] sm:$0xf]
    %v4075 = vld [vmem:[%s3008 + $0x4c] sm:$0xf]
    %s4076 = scalar_lea.vmem [#allocation8], 64
    %v4077 = vld [vmem:[%s4076] sm:$0xf]
    %v4078 = vld [vmem:[%s4076 + $0x4] sm:$0xf]
    %v4079 = vld [vmem:[%s4076 + $0x8] sm:$0xf]
    %v4080 = vld [vmem:[%s4076 + $0xc] sm:$0xf]
    %v4081 = vld [vmem:[%s4076 + $0x10] sm:$0xf]
    %v4082 = vld [vmem:[%s4076 + $0x14] sm:$0xf]
    %v4083 = vld [vmem:[%s4076 + $0x18] sm:$0xf]
    %v4084 = vld [vmem:[%s4076 + $0x1c] sm:$0xf]
    %v4085 = vld [vmem:[%s4076 + $0x20] sm:$0xf]
    %v4086 = vld [vmem:[%s4076 + $0x24] sm:$0xf]
    %v4087 = vld [vmem:[%s4076 + $0x28] sm:$0xf]
    %v4088 = vld [vmem:[%s4076 + $0x2c] sm:$0xf]
    %v4089 = vld [vmem:[%s4076 + $0x30] sm:$0xf]
    %v4090 = vld [vmem:[%s4076 + $0x34] sm:$0xf]
    %v4091 = vld [vmem:[%s4076 + $0x38] sm:$0xf]
    %v4092 = vld [vmem:[%s4076 + $0x3c] sm:$0xf]
    %v4113 = vunpack.c.l.b16 %v4056
    %v4114 = vunpack.c.l.b16 %v4057
    %v4115 = vunpack.c.l.b16 %v4058
    %v4116 = vunpack.c.l.b16 %v4059
    %v4117 = vunpack.c.l.b16 %v4060
    %v4118 = vunpack.c.l.b16 %v4061
    %v4119 = vunpack.c.l.b16 %v4062
    %v4120 = vunpack.c.l.b16 %v4063
    %v4121 = vunpack.c.l.b16 %v4064
    %v4122 = vunpack.c.l.b16 %v4065
    %v4123 = vunpack.c.l.b16 %v4066
    %v4124 = vunpack.c.l.b16 %v4067
    %v4125 = vunpack.c.l.b16 %v4068
    %v4126 = vunpack.c.l.b16 %v4069
    %v4127 = vunpack.c.l.b16 %v4070
    %v4128 = vunpack.c.l.b16 %v4071
    %v4129 = vunpack.c.l.b16 %v4072
    %v4130 = vunpack.c.l.b16 %v4073
    %v4131 = vunpack.c.l.b16 %v4074
    %v4132 = vunpack.c.l.b16 %v4075
    %v4133 = vpack.c.b16 %v4114, %v4113
    %v4134 = vpack.c.b16 %v4116, %v4115
    %v4135 = vpack.c.b16 %v4118, %v4117
    %v4136 = vpack.c.b16 %v4120, %v4119
    %v4137 = vpack.c.b16 %v4122, %v4121
    %v4138 = vpack.c.b16 %v4124, %v4123
    %v4139 = vpack.c.b16 %v4126, %v4125
    %v4140 = vpack.c.b16 %v4128, %v4127
    %v4141 = vpack.c.b16 %v4130, %v4129
    %v4142 = vpack.c.b16 %v4132, %v4131
    %v4169 = vunpack.c.l.b16 %v4077
    %v4170 = vunpack.c.l.b16 %v4078
    %v4171 = vunpack.c.l.b16 %v4079
    %v4172 = vunpack.c.l.b16 %v4080
    %v4173 = vunpack.c.l.b16 %v4081
    %v4174 = vunpack.c.l.b16 %v4082
    %v4175 = vunpack.c.l.b16 %v4083
    %v4176 = vunpack.c.l.b16 %v4084
    %v4177 = vunpack.c.l.b16 %v4085
    %v4178 = vunpack.c.l.b16 %v4086
    %v4179 = vunpack.c.l.b16 %v4087
    %v4180 = vunpack.c.l.b16 %v4088
    %v4181 = vunpack.c.l.b16 %v4089
    %v4182 = vunpack.c.l.b16 %v4090
    %v4183 = vunpack.c.l.b16 %v4091
    %v4184 = vunpack.c.l.b16 %v4092
    %v4185 = vpack.c.b16 %v4170, %v4169
    %v4186 = vpack.c.b16 %v4172, %v4171
    %v4187 = vpack.c.b16 %v4174, %v4173
    %v4188 = vpack.c.b16 %v4176, %v4175
    %v4189 = vpack.c.b16 %v4178, %v4177
    %v4190 = vpack.c.b16 %v4180, %v4179
    %v4191 = vpack.c.b16 %v4182, %v4181
    %v4192 = vpack.c.b16 %v4184, %v4183
    %4201 = vmatprep.subr.bf16.mxu0 0
    %4202 = vmatpush1.bf16.msra.mxu0 %v4192
    %4203 = vmatprep.subr.bf16.mxu0 0
    %4204 = vmatpush1.bf16.msra.mxu0 %v4191
    %4205 = vmatprep.subr.bf16.mxu0 0
    %4206 = vmatpush1.bf16.msra.mxu0 %v4190
    %4207 = vmatprep.subr.bf16.mxu0 0
    %4208 = vmatpush1.bf16.msra.mxu0 %v4189
    %4209 = vmatprep.subr.bf16.mxu0 0
    %4210 = vmatpush1.bf16.msra.mxu0 %v4188
    %4211 = vmatprep.subr.bf16.mxu0 0
    %4212 = vmatpush1.bf16.msra.mxu0 %v4187
    %4213 = vmatprep.subr.bf16.mxu0 0
    %4214 = vmatpush1.bf16.msra.mxu0 %v4186
    %4215 = vmatprep.subr.bf16.mxu0 0
    %4216 = vmatpush1.bf16.msra.mxu0 %v4185
    %4217 = vmatprep.subr.bf16.mxu0 0
    %4218 = vmatpush2.bf16.msra.mxu0 0
    %4219 = vmatprep.subr.bf16.mxu0 0
    %4220 = vmatpush2.bf16.msra.mxu0 0
    %4221 = vmatprep.subr.bf16.mxu0 0
    %4222 = vmatpush2.bf16.msra.mxu0 0
    %4223 = vmatprep.subr.bf16.mxu0 0
    %4224 = vmatpush2.bf16.msra.mxu0 0
    %4225 = vmatprep.subr.bf16.mxu0 0
    %4226 = vmatpush2.bf16.msra.mxu0 0
    %4227 = vmatprep.subr.bf16.mxu0 0
    %4228 = vmatpush2.bf16.msra.mxu0 0
    %4229 = vmatprep.subr.bf16.mxu0 0
    %4230 = vmatpush2.bf16.msra.mxu0 0
    %4231 = vmatprep.subr.bf16.mxu0 0
    %4232 = vmatpush2.bf16.msra.mxu0 0
    %4233 = vmatprep.mubr.bf16.mxu0 0
    %4234 = vmatmul.mubr.bf16.gmra.mxu0 %v4133
    %v4235 = vpop.f32.mrf.mxu0
    %v4236 = vadd.f32 0.0, %v4235
    %v4237 = vpop.f32.mrf.mxu0
    %v4238 = vpop.f32.mrf.mxu0
    %v4239 = vadd.f32 0.0, %v4238
    %v4240 = vpop.f32.mrf.mxu0
    %4241 = vmatprep.mubr.bf16.mxu0 0
    %4242 = vmatmul.mubr.bf16.gmra.mxu0 %v4134
    %v4243 = vpop.f32.mrf.mxu0
    %v4244 = vadd.f32 0.0, %v4243
    %v4245 = vpop.f32.mrf.mxu0
    %v4246 = vpop.f32.mrf.mxu0
    %v4247 = vadd.f32 0.0, %v4246
    %v4248 = vpop.f32.mrf.mxu0
    %4249 = vmatprep.mubr.bf16.mxu0 0
    %4250 = vmatmul.mubr.bf16.gmra.mxu0 %v4135
    %v4251 = vpop.f32.mrf.mxu0
    %v4252 = vadd.f32 0.0, %v4251
    %v4253 = vpop.f32.mrf.mxu0
    %v4254 = vpop.f32.mrf.mxu0
    %v4255 = vadd.f32 0.0, %v4254
    %v4256 = vpop.f32.mrf.mxu0
    %4257 = vmatprep.mubr.bf16.mxu0 0
    %4258 = vmatmul.mubr.bf16.gmra.mxu0 %v4136
    %v4259 = vpop.f32.mrf.mxu0
    %v4260 = vadd.f32 0.0, %v4259
    %v4261 = vpop.f32.mrf.mxu0
    %v4262 = vpop.f32.mrf.mxu0
    %v4263 = vadd.f32 0.0, %v4262
    %v4264 = vpop.f32.mrf.mxu0
    %4265 = vmatprep.mubr.bf16.mxu0 0
    %4266 = vmatmul.mubr.bf16.gmra.mxu0 %v4137
    %v4267 = vpop.f32.mrf.mxu0
    %v4268 = vpop.f32.mrf.mxu0
    %v4269 = vpop.f32.mrf.mxu0
    %v4270 = vpop.f32.mrf.mxu0
    %4271 = vmatprep.mubr.bf16.mxu0 0
    %4272 = vmatmul.mubr.bf16.gmra.mxu0 %v4138
    %v4273 = vpop.f32.mrf.mxu0
    %v4274 = vadd.f32 0.0, %v4273
    %v4275 = vpop.f32.mrf.mxu0
    %v4276 = vpop.f32.mrf.mxu0
    %v4277 = vadd.f32 0.0, %v4276
    %v4278 = vpop.f32.mrf.mxu0
    %4279 = vmatprep.mubr.bf16.mxu0 0
    %4280 = vmatmul.mubr.bf16.gmra.mxu0 %v4139
    %v4281 = vpop.f32.mrf.mxu0
    %v4282 = vadd.f32 0.0, %v4281
    %v4283 = vpop.f32.mrf.mxu0
    %v4284 = vpop.f32.mrf.mxu0
    %v4285 = vadd.f32 0.0, %v4284
    %v4286 = vpop.f32.mrf.mxu0
    %4287 = vmatprep.mubr.bf16.mxu0 0
    %4288 = vmatmul.mubr.bf16.gmra.mxu0 %v4140
    %v4289 = vpop.f32.mrf.mxu0
    %v4290 = vadd.f32 0.0, %v4289
    %v4291 = vpop.f32.mrf.mxu0
    %v4292 = vpop.f32.mrf.mxu0
    %v4293 = vadd.f32 0.0, %v4292
    %v4294 = vpop.f32.mrf.mxu0
    %4295 = vmatprep.mubr.bf16.mxu0 0
    %4296 = vmatmul.mubr.bf16.gmra.mxu0 %v4141
    %v4297 = vpop.f32.mrf.mxu0
    %v4298 = vadd.f32 0.0, %v4297
    %v4299 = vpop.f32.mrf.mxu0
    %v4300 = vpop.f32.mrf.mxu0
    %v4301 = vadd.f32 0.0, %v4300
    %v4302 = vpop.f32.mrf.mxu0
    %4303 = vmatprep.mubr.bf16.mxu0 0
    %4304 = vmatmul.mubr.bf16.gmra.mxu0 %v4142
    %v4305 = vpop.f32.mrf.mxu0
    %v4306 = vpop.f32.mrf.mxu0
    %v4307 = vpop.f32.mrf.mxu0
    %v4308 = vpop.f32.mrf.mxu0
    %4309 = vdwg.mxu0
    %v4310 = vadd.f32 %v4040, %v4236
    %v4311 = vadd.f32 %v4041, %v4239
    %v4312 = vadd.f32 %v4042, %v4244
    %v4313 = vadd.f32 %v4043, %v4247
    %v4314 = vadd.f32 %v4044, %v4252
    %v4315 = vadd.f32 %v4045, %v4255
    %v4316 = vadd.f32 %v4046, %v4260
    %v4317 = vadd.f32 %v4047, %v4263
    %v4318 = vadd.f32 %v4048, %v4274
    %v4319 = vadd.f32 %v4049, %v4277
    %v4320 = vadd.f32 %v4050, %v4282
    %v4321 = vadd.f32 %v4051, %v4285
    %v4322 = vadd.f32 %v4052, %v4290
    %v4323 = vadd.f32 %v4053, %v4293
    %v4324 = vadd.f32 %v4054, %v4298
    %v4325 = vadd.f32 %v4055, %v4301
    %s4326 = scalar_lea.vmem [#allocation8], 256
    %v4327 = vld [vmem:[%s4326] sm:$0xf]
    %v4328 = vld [vmem:[%s4326 + $0x4] sm:$0xf]
    %v4329 = vld [vmem:[%s4326 + $0x8] sm:$0xf]
    %v4330 = vld [vmem:[%s4326 + $0xc] sm:$0xf]
    %v4331 = vld [vmem:[%s4326 + $0x10] sm:$0xf]
    %v4332 = vld [vmem:[%s4326 + $0x14] sm:$0xf]
    %v4333 = vld [vmem:[%s4326 + $0x18] sm:$0xf]
    %v4334 = vld [vmem:[%s4326 + $0x1c] sm:$0xf]
    %v4335 = vld [vmem:[%s4326 + $0x20] sm:$0xf]
    %v4336 = vld [vmem:[%s4326 + $0x24] sm:$0xf]
    %v4337 = vld [vmem:[%s4326 + $0x28] sm:$0xf]
    %v4338 = vld [vmem:[%s4326 + $0x2c] sm:$0xf]
    %v4339 = vld [vmem:[%s4326 + $0x30] sm:$0xf]
    %v4340 = vld [vmem:[%s4326 + $0x34] sm:$0xf]
    %v4341 = vld [vmem:[%s4326 + $0x38] sm:$0xf]
    %v4342 = vld [vmem:[%s4326 + $0x3c] sm:$0xf]
    %v4359 = vunpack.c.l.b16 %v4327
    %v4360 = vunpack.c.l.b16 %v4328
    %v4361 = vunpack.c.l.b16 %v4329
    %v4362 = vunpack.c.l.b16 %v4330
    %v4363 = vunpack.c.l.b16 %v4331
    %v4364 = vunpack.c.l.b16 %v4332
    %v4365 = vunpack.c.l.b16 %v4333
    %v4366 = vunpack.c.l.b16 %v4334
    %v4367 = vunpack.c.l.b16 %v4335
    %v4368 = vunpack.c.l.b16 %v4336
    %v4369 = vunpack.c.l.b16 %v4337
    %v4370 = vunpack.c.l.b16 %v4338
    %v4371 = vunpack.c.l.b16 %v4339
    %v4372 = vunpack.c.l.b16 %v4340
    %v4373 = vunpack.c.l.b16 %v4341
    %v4374 = vunpack.c.l.b16 %v4342
    %v4375 = vpack.c.b16 %v4360, %v4359
    %v4376 = vpack.c.b16 %v4362, %v4361
    %v4377 = vpack.c.b16 %v4364, %v4363
    %v4378 = vpack.c.b16 %v4366, %v4365
    %v4379 = vpack.c.b16 %v4368, %v4367
    %v4380 = vpack.c.b16 %v4370, %v4369
    %v4381 = vpack.c.b16 %v4372, %v4371
    %v4382 = vpack.c.b16 %v4374, %v4373
    %4391 = vmatprep.subr.bf16.mxu0 0
    %4392 = vmatpush1.bf16.msra.mxu0 %v4382
    %4393 = vmatprep.subr.bf16.mxu0 0
    %4394 = vmatpush1.bf16.msra.mxu0 %v4381
    %4395 = vmatprep.subr.bf16.mxu0 0
    %4396 = vmatpush1.bf16.msra.mxu0 %v4380
    %4397 = vmatprep.subr.bf16.mxu0 0
    %4398 = vmatpush1.bf16.msra.mxu0 %v4379
    %4399 = vmatprep.subr.bf16.mxu0 0
    %4400 = vmatpush1.bf16.msra.mxu0 %v4378
    %4401 = vmatprep.subr.bf16.mxu0 0
    %4402 = vmatpush1.bf16.msra.mxu0 %v4377
    %4403 = vmatprep.subr.bf16.mxu0 0
    %4404 = vmatpush1.bf16.msra.mxu0 %v4376
    %4405 = vmatprep.subr.bf16.mxu0 0
    %4406 = vmatpush1.bf16.msra.mxu0 %v4375
    %4407 = vmatprep.subr.bf16.mxu0 0
    %4408 = vmatpush2.bf16.msra.mxu0 0
    %4409 = vmatprep.subr.bf16.mxu0 0
    %4410 = vmatpush2.bf16.msra.mxu0 0
    %4411 = vmatprep.subr.bf16.mxu0 0
    %4412 = vmatpush2.bf16.msra.mxu0 0
    %4413 = vmatprep.subr.bf16.mxu0 0
    %4414 = vmatpush2.bf16.msra.mxu0 0
    %4415 = vmatprep.subr.bf16.mxu0 0
    %4416 = vmatpush2.bf16.msra.mxu0 0
    %4417 = vmatprep.subr.bf16.mxu0 0
    %4418 = vmatpush2.bf16.msra.mxu0 0
    %4419 = vmatprep.subr.bf16.mxu0 0
    %4420 = vmatpush2.bf16.msra.mxu0 0
    %4421 = vmatprep.subr.bf16.mxu0 0
    %4422 = vmatpush2.bf16.msra.mxu0 0
    %4423 = vmatprep.mubr.bf16.mxu0 0
    %4424 = vmatmul.mubr.bf16.gmra.mxu0 %v4133
    %v4425 = vpop.f32.mrf.mxu0
    %v4426 = vpop.f32.mrf.mxu0
    %v4427 = vpop.f32.mrf.mxu0
    %v4428 = vadd.f32 0.0, %v4427
    %v4429 = vpop.f32.mrf.mxu0
    %4430 = vmatprep.mubr.bf16.mxu0 0
    %4431 = vmatmul.mubr.bf16.gmra.mxu0 %v4134
    %v4432 = vpop.f32.mrf.mxu0
    %v4433 = vadd.f32 0.0, %v4432
    %v4434 = vpop.f32.mrf.mxu0
    %v4435 = vpop.f32.mrf.mxu0
    %v4436 = vadd.f32 0.0, %v4435
    %v4437 = vpop.f32.mrf.mxu0
    %4438 = vmatprep.mubr.bf16.mxu0 0
    %4439 = vmatmul.mubr.bf16.gmra.mxu0 %v4135
    %v4440 = vpop.f32.mrf.mxu0
    %v4441 = vadd.f32 0.0, %v4440
    %v4442 = vpop.f32.mrf.mxu0
    %v4443 = vpop.f32.mrf.mxu0
    %v4444 = vadd.f32 0.0, %v4443
    %v4445 = vpop.f32.mrf.mxu0
    %4446 = vmatprep.mubr.bf16.mxu0 0
    %4447 = vmatmul.mubr.bf16.gmra.mxu0 %v4136
    %v4448 = vpop.f32.mrf.mxu0
    %v4449 = vadd.f32 0.0, %v4448
    %v4450 = vpop.f32.mrf.mxu0
    %v4451 = vpop.f32.mrf.mxu0
    %v4452 = vadd.f32 0.0, %v4451
    %v4453 = vpop.f32.mrf.mxu0
    %4454 = vmatprep.mubr.bf16.mxu0 0
    %4455 = vmatmul.mubr.bf16.gmra.mxu0 %v4137
    %v4456 = vpop.f32.mrf.mxu0
    %v4457 = vadd.f32 0.0, %v4456
    %v4458 = vpop.f32.mrf.mxu0
    %v4459 = vpop.f32.mrf.mxu0
    %v4460 = vpop.f32.mrf.mxu0
    %4461 = vmatprep.mubr.bf16.mxu0 0
    %4462 = vmatmul.mubr.bf16.gmra.mxu0 %v4138
    %v4463 = vpop.f32.mrf.mxu0
    %v4464 = vpop.f32.mrf.mxu0
    %v4465 = vpop.f32.mrf.mxu0
    %v4466 = vadd.f32 0.0, %v4465
    %v4467 = vpop.f32.mrf.mxu0
    %4468 = vmatprep.mubr.bf16.mxu0 0
    %4469 = vmatmul.mubr.bf16.gmra.mxu0 %v4139
    %v4470 = vpop.f32.mrf.mxu0
    %v4471 = vadd.f32 0.0, %v4470
    %v4472 = vpop.f32.mrf.mxu0
    %v4473 = vpop.f32.mrf.mxu0
    %v4474 = vadd.f32 0.0, %v4473
    %v4475 = vpop.f32.mrf.mxu0
    %4476 = vmatprep.mubr.bf16.mxu0 0
    %4477 = vmatmul.mubr.bf16.gmra.mxu0 %v4140
    %v4478 = vpop.f32.mrf.mxu0
    %v4479 = vadd.f32 0.0, %v4478
    %v4480 = vpop.f32.mrf.mxu0
    %v4481 = vpop.f32.mrf.mxu0
    %v4482 = vadd.f32 0.0, %v4481
    %v4483 = vpop.f32.mrf.mxu0
    %4484 = vmatprep.mubr.bf16.mxu0 0
    %4485 = vmatmul.mubr.bf16.gmra.mxu0 %v4141
    %v4486 = vpop.f32.mrf.mxu0
    %v4487 = vadd.f32 0.0, %v4486
    %v4488 = vpop.f32.mrf.mxu0
    %v4489 = vpop.f32.mrf.mxu0
    %v4490 = vadd.f32 0.0, %v4489
    %v4491 = vpop.f32.mrf.mxu0
    %4492 = vmatprep.mubr.bf16.mxu0 0
    %4493 = vmatmul.mubr.bf16.gmra.mxu0 %v4142
    %v4494 = vpop.f32.mrf.mxu0
    %v4495 = vadd.f32 0.0, %v4494
    %v4496 = vpop.f32.mrf.mxu0
    %v4497 = vpop.f32.mrf.mxu0
    %v4498 = vpop.f32.mrf.mxu0
    %4499 = vdwg.mxu0
    %v4500 = vadd.f32 %v4310, %v4428
    %v4501 = vadd.f32 %v4311, %v4433
    %v4502 = vadd.f32 %v4312, %v4436
    %v4503 = vadd.f32 %v4313, %v4441
    %v4504 = vadd.f32 %v4314, %v4444
    %v4505 = vadd.f32 %v4315, %v4449
    %v4506 = vadd.f32 %v4316, %v4452
    %v4507 = vadd.f32 %v4317, %v4457
    %v4508 = vadd.f32 %v4318, %v4466
    %v4509 = vadd.f32 %v4319, %v4471
    %v4510 = vadd.f32 %v4320, %v4474
    %v4511 = vadd.f32 %v4321, %v4479
    %v4512 = vadd.f32 %v4322, %v4482
    %v4513 = vadd.f32 %v4323, %v4487
    %v4514 = vadd.f32 %v4324, %v4490
    %v4515 = vadd.f32 %v4325, %v4495
    %s4516 = scalar_lea.vmem [#allocation8], 448
    %v4517 = vld [vmem:[%s4516] sm:$0xf]
    %v4518 = vld [vmem:[%s4516 + $0x4] sm:$0xf]
    %v4519 = vld [vmem:[%s4516 + $0x8] sm:$0xf]
    %v4520 = vld [vmem:[%s4516 + $0xc] sm:$0xf]
    %v4521 = vld [vmem:[%s4516 + $0x10] sm:$0xf]
    %v4522 = vld [vmem:[%s4516 + $0x14] sm:$0xf]
    %v4523 = vld [vmem:[%s4516 + $0x18] sm:$0xf]
    %v4524 = vld [vmem:[%s4516 + $0x1c] sm:$0xf]
    %v4525 = vld [vmem:[%s4516 + $0x20] sm:$0xf]
    %v4526 = vld [vmem:[%s4516 + $0x24] sm:$0xf]
    %v4527 = vld [vmem:[%s4516 + $0x28] sm:$0xf]
    %v4528 = vld [vmem:[%s4516 + $0x2c] sm:$0xf]
    %v4529 = vld [vmem:[%s4516 + $0x30] sm:$0xf]
    %v4530 = vld [vmem:[%s4516 + $0x34] sm:$0xf]
    %v4531 = vld [vmem:[%s4516 + $0x38] sm:$0xf]
    %v4532 = vld [vmem:[%s4516 + $0x3c] sm:$0xf]
    %v4549 = vunpack.c.l.b16 %v4517
    %v4550 = vunpack.c.l.b16 %v4518
    %v4551 = vunpack.c.l.b16 %v4519
    %v4552 = vunpack.c.l.b16 %v4520
    %v4553 = vunpack.c.l.b16 %v4521
    %v4554 = vunpack.c.l.b16 %v4522
    %v4555 = vunpack.c.l.b16 %v4523
    %v4556 = vunpack.c.l.b16 %v4524
    %v4557 = vunpack.c.l.b16 %v4525
    %v4558 = vunpack.c.l.b16 %v4526
    %v4559 = vunpack.c.l.b16 %v4527
    %v4560 = vunpack.c.l.b16 %v4528
    %v4561 = vunpack.c.l.b16 %v4529
    %v4562 = vunpack.c.l.b16 %v4530
    %v4563 = vunpack.c.l.b16 %v4531
    %v4564 = vunpack.c.l.b16 %v4532
    %v4565 = vpack.c.b16 %v4550, %v4549
    %v4566 = vpack.c.b16 %v4552, %v4551
    %v4567 = vpack.c.b16 %v4554, %v4553
    %v4568 = vpack.c.b16 %v4556, %v4555
    %v4569 = vpack.c.b16 %v4558, %v4557
    %v4570 = vpack.c.b16 %v4560, %v4559
    %v4571 = vpack.c.b16 %v4562, %v4561
    %v4572 = vpack.c.b16 %v4564, %v4563
    %4581 = vmatprep.subr.bf16.mxu0 0
    %4582 = vmatpush1.bf16.msra.mxu0 %v4572
    %4583 = vmatprep.subr.bf16.mxu0 0
    %4584 = vmatpush1.bf16.msra.mxu0 %v4571
    %4585 = vmatprep.subr.bf16.mxu0 0
    %4586 = vmatpush1.bf16.msra.mxu0 %v4570
    %4587 = vmatprep.subr.bf16.mxu0 0
    %4588 = vmatpush1.bf16.msra.mxu0 %v4569
    %4589 = vmatprep.subr.bf16.mxu0 0
    %4590 = vmatpush1.bf16.msra.mxu0 %v4568
    %4591 = vmatprep.subr.bf16.mxu0 0
    %4592 = vmatpush1.bf16.msra.mxu0 %v4567
    %4593 = vmatprep.subr.bf16.mxu0 0
    %4594 = vmatpush1.bf16.msra.mxu0 %v4566
    %4595 = vmatprep.subr.bf16.mxu0 0
    %4596 = vmatpush1.bf16.msra.mxu0 %v4565
    %4597 = vmatprep.subr.bf16.mxu0 0
    %4598 = vmatpush2.bf16.msra.mxu0 0
    %4599 = vmatprep.subr.bf16.mxu0 0
    %4600 = vmatpush2.bf16.msra.mxu0 0
    %4601 = vmatprep.subr.bf16.mxu0 0
    %4602 = vmatpush2.bf16.msra.mxu0 0
    %4603 = vmatprep.subr.bf16.mxu0 0
    %4604 = vmatpush2.bf16.msra.mxu0 0
    %4605 = vmatprep.subr.bf16.mxu0 0
    %4606 = vmatpush2.bf16.msra.mxu0 0
    %4607 = vmatprep.subr.bf16.mxu0 0
    %4608 = vmatpush2.bf16.msra.mxu0 0
    %4609 = vmatprep.subr.bf16.mxu0 0
    %4610 = vmatpush2.bf16.msra.mxu0 0
    %4611 = vmatprep.subr.bf16.mxu0 0
    %4612 = vmatpush2.bf16.msra.mxu0 0
    %4613 = vmatprep.mubr.bf16.mxu0 0
    %4614 = vmatmul.mubr.bf16.gmra.mxu0 %v4133
    %v4615 = vpop.f32.mrf.mxu0
    %v4616 = vpop.f32.mrf.mxu0
    %v4617 = vpop.f32.mrf.mxu0
    %v4618 = vpop.f32.mrf.mxu0
    %4619 = vmatprep.mubr.bf16.mxu0 0
    %4620 = vmatmul.mubr.bf16.gmra.mxu0 %v4134
    %v4621 = vpop.f32.mrf.mxu0
    %v4622 = vadd.f32 0.0, %v4621
    %v4623 = vpop.f32.mrf.mxu0
    %v4624 = vpop.f32.mrf.mxu0
    %v4625 = vadd.f32 0.0, %v4624
    %v4626 = vpop.f32.mrf.mxu0
    %4627 = vmatprep.mubr.bf16.mxu0 0
    %4628 = vmatmul.mubr.bf16.gmra.mxu0 %v4135
    %v4629 = vpop.f32.mrf.mxu0
    %v4630 = vadd.f32 0.0, %v4629
    %v4631 = vpop.f32.mrf.mxu0
    %v4632 = vpop.f32.mrf.mxu0
    %v4633 = vadd.f32 0.0, %v4632
    %v4634 = vpop.f32.mrf.mxu0
    %4635 = vmatprep.mubr.bf16.mxu0 0
    %4636 = vmatmul.mubr.bf16.gmra.mxu0 %v4136
    %v4637 = vpop.f32.mrf.mxu0
    %v4638 = vadd.f32 0.0, %v4637
    %v4639 = vpop.f32.mrf.mxu0
    %v4640 = vpop.f32.mrf.mxu0
    %v4641 = vadd.f32 0.0, %v4640
    %v4642 = vpop.f32.mrf.mxu0
    %4643 = vmatprep.mubr.bf16.mxu0 0
    %4644 = vmatmul.mubr.bf16.gmra.mxu0 %v4137
    %v4645 = vpop.f32.mrf.mxu0
    %v4646 = vadd.f32 0.0, %v4645
    %v4647 = vpop.f32.mrf.mxu0
    %v4648 = vpop.f32.mrf.mxu0
    %v4649 = vadd.f32 0.0, %v4648
    %v4650 = vpop.f32.mrf.mxu0
    %4651 = vmatprep.mubr.bf16.mxu0 0
    %4652 = vmatmul.mubr.bf16.gmra.mxu0 %v4138
    %v4653 = vpop.f32.mrf.mxu0
    %v4654 = vpop.f32.mrf.mxu0
    %v4655 = vpop.f32.mrf.mxu0
    %v4656 = vpop.f32.mrf.mxu0
    %4657 = vmatprep.mubr.bf16.mxu0 0
    %4658 = vmatmul.mubr.bf16.gmra.mxu0 %v4139
    %v4659 = vpop.f32.mrf.mxu0
    %v4660 = vadd.f32 0.0, %v4659
    %v4661 = vpop.f32.mrf.mxu0
    %v4662 = vpop.f32.mrf.mxu0
    %v4663 = vadd.f32 0.0, %v4662
    %v4664 = vpop.f32.mrf.mxu0
    %4665 = vmatprep.mubr.bf16.mxu0 0
    %4666 = vmatmul.mubr.bf16.gmra.mxu0 %v4140
    %v4667 = vpop.f32.mrf.mxu0
    %v4668 = vadd.f32 0.0, %v4667
    %v4669 = vpop.f32.mrf.mxu0
    %v4670 = vpop.f32.mrf.mxu0
    %v4671 = vadd.f32 0.0, %v4670
    %v4672 = vpop.f32.mrf.mxu0
    %4673 = vmatprep.mubr.bf16.mxu0 0
    %4674 = vmatmul.mubr.bf16.gmra.mxu0 %v4141
    %v4675 = vpop.f32.mrf.mxu0
    %v4676 = vadd.f32 0.0, %v4675
    %v4677 = vpop.f32.mrf.mxu0
    %v4678 = vpop.f32.mrf.mxu0
    %v4679 = vadd.f32 0.0, %v4678
    %v4680 = vpop.f32.mrf.mxu0
    %4681 = vmatprep.mubr.bf16.mxu0 0
    %4682 = vmatmul.mubr.bf16.gmra.mxu0 %v4142
    %v4683 = vpop.f32.mrf.mxu0
    %v4684 = vadd.f32 0.0, %v4683
    %v4685 = vpop.f32.mrf.mxu0
    %v4686 = vpop.f32.mrf.mxu0
    %v4687 = vadd.f32 0.0, %v4686
    %v4688 = vpop.f32.mrf.mxu0
    %4689 = vdwg.mxu0
    %v4690 = vadd.f32 %v4500, %v4622
    %v4691 = vadd.f32 %v4501, %v4625
    %v4692 = vadd.f32 %v4502, %v4630
    %v4693 = vadd.f32 %v4503, %v4633
    %v4694 = vadd.f32 %v4504, %v4638
    %v4695 = vadd.f32 %v4505, %v4641
    %v4696 = vadd.f32 %v4506, %v4646
    %v4697 = vadd.f32 %v4507, %v4649
    %v4698 = vadd.f32 %v4508, %v4660
    %v4699 = vadd.f32 %v4509, %v4663
    %v4700 = vadd.f32 %v4510, %v4668
    %v4701 = vadd.f32 %v4511, %v4671
    %v4702 = vadd.f32 %v4512, %v4676
    %v4703 = vadd.f32 %v4513, %v4679
    %v4704 = vadd.f32 %v4514, %v4684
    %v4705 = vadd.f32 %v4515, %v4687
    %v4706 = vld [vmem:[%s3395] sm:$0xf]
    %v4707 = vld [vmem:[%s3395 + $0x4] sm:$0xf]
    %v4708 = vld [vmem:[%s3395 + $0x8] sm:$0xf]
    %v4709 = vld [vmem:[%s3395 + $0xc] sm:$0xf]
    %v4710 = vld [vmem:[%s3395 + $0x10] sm:$0xf]
    %v4711 = vld [vmem:[%s3395 + $0x14] sm:$0xf]
    %v4712 = vld [vmem:[%s3395 + $0x18] sm:$0xf]
    %v4713 = vld [vmem:[%s3395 + $0x1c] sm:$0xf]
    %v4714 = vld [vmem:[%s3395 + $0x20] sm:$0xf]
    %v4715 = vld [vmem:[%s3395 + $0x24] sm:$0xf]
    %v4716 = vld [vmem:[%s3395 + $0x28] sm:$0xf]
    %v4717 = vld [vmem:[%s3395 + $0x2c] sm:$0xf]
    %v4718 = vld [vmem:[%s3395 + $0x30] sm:$0xf]
    %v4719 = vld [vmem:[%s3395 + $0x34] sm:$0xf]
    %v4720 = vld [vmem:[%s3395 + $0x38] sm:$0xf]
    %v4721 = vld [vmem:[%s3395 + $0x3c] sm:$0xf]
    %v4722 = vld [vmem:[%s3395 + $0x40] sm:$0xf]
    %v4723 = vld [vmem:[%s3395 + $0x44] sm:$0xf]
    %v4724 = vld [vmem:[%s3395 + $0x48] sm:$0xf]
    %v4725 = vld [vmem:[%s3395 + $0x4c] sm:$0xf]
    %s4726 = scalar_lea.vmem [#allocation8], 128
    %v4727 = vld [vmem:[%s4726] sm:$0xf]
    %v4728 = vld [vmem:[%s4726 + $0x4] sm:$0xf]
    %v4729 = vld [vmem:[%s4726 + $0x8] sm:$0xf]
    %v4730 = vld [vmem:[%s4726 + $0xc] sm:$0xf]
    %v4731 = vld [vmem:[%s4726 + $0x10] sm:$0xf]
    %v4732 = vld [vmem:[%s4726 + $0x14] sm:$0xf]
    %v4733 = vld [vmem:[%s4726 + $0x18] sm:$0xf]
    %v4734 = vld [vmem:[%s4726 + $0x1c] sm:$0xf]
    %v4735 = vld [vmem:[%s4726 + $0x20] sm:$0xf]
    %v4736 = vld [vmem:[%s4726 + $0x24] sm:$0xf]
    %v4737 = vld [vmem:[%s4726 + $0x28] sm:$0xf]
    %v4738 = vld [vmem:[%s4726 + $0x2c] sm:$0xf]
    %v4739 = vld [vmem:[%s4726 + $0x30] sm:$0xf]
    %v4740 = vld [vmem:[%s4726 + $0x34] sm:$0xf]
    %v4741 = vld [vmem:[%s4726 + $0x38] sm:$0xf]
    %v4742 = vld [vmem:[%s4726 + $0x3c] sm:$0xf]
    %v4763 = vunpack.c.l.b16 %v4706
    %v4764 = vunpack.c.l.b16 %v4707
    %v4765 = vunpack.c.l.b16 %v4708
    %v4766 = vunpack.c.l.b16 %v4709
    %v4767 = vunpack.c.l.b16 %v4710
    %v4768 = vunpack.c.l.b16 %v4711
    %v4769 = vunpack.c.l.b16 %v4712
    %v4770 = vunpack.c.l.b16 %v4713
    %v4771 = vunpack.c.l.b16 %v4714
    %v4772 = vunpack.c.l.b16 %v4715
    %v4773 = vunpack.c.l.b16 %v4716
    %v4774 = vunpack.c.l.b16 %v4717
    %v4775 = vunpack.c.l.b16 %v4718
    %v4776 = vunpack.c.l.b16 %v4719
    %v4777 = vunpack.c.l.b16 %v4720
    %v4778 = vunpack.c.l.b16 %v4721
    %v4779 = vunpack.c.l.b16 %v4722
    %v4780 = vunpack.c.l.b16 %v4723
    %v4781 = vunpack.c.l.b16 %v4724
    %v4782 = vunpack.c.l.b16 %v4725
    %v4783 = vpack.c.b16 %v4764, %v4763
    %v4784 = vpack.c.b16 %v4766, %v4765
    %v4785 = vpack.c.b16 %v4768, %v4767
    %v4786 = vpack.c.b16 %v4770, %v4769
    %v4787 = vpack.c.b16 %v4772, %v4771
    %v4788 = vpack.c.b16 %v4774, %v4773
    %v4789 = vpack.c.b16 %v4776, %v4775
    %v4790 = vpack.c.b16 %v4778, %v4777
    %v4791 = vpack.c.b16 %v4780, %v4779
    %v4792 = vpack.c.b16 %v4782, %v4781
    %v4819 = vunpack.c.l.b16 %v4727
    %v4820 = vunpack.c.l.b16 %v4728
    %v4821 = vunpack.c.l.b16 %v4729
    %v4822 = vunpack.c.l.b16 %v4730
    %v4823 = vunpack.c.l.b16 %v4731
    %v4824 = vunpack.c.l.b16 %v4732
    %v4825 = vunpack.c.l.b16 %v4733
    %v4826 = vunpack.c.l.b16 %v4734
    %v4827 = vunpack.c.l.b16 %v4735
    %v4828 = vunpack.c.l.b16 %v4736
    %v4829 = vunpack.c.l.b16 %v4737
    %v4830 = vunpack.c.l.b16 %v4738
    %v4831 = vunpack.c.l.b16 %v4739
    %v4832 = vunpack.c.l.b16 %v4740
    %v4833 = vunpack.c.l.b16 %v4741
    %v4834 = vunpack.c.l.b16 %v4742
    %v4835 = vpack.c.b16 %v4820, %v4819
    %v4836 = vpack.c.b16 %v4822, %v4821
    %v4837 = vpack.c.b16 %v4824, %v4823
    %v4838 = vpack.c.b16 %v4826, %v4825
    %v4839 = vpack.c.b16 %v4828, %v4827
    %v4840 = vpack.c.b16 %v4830, %v4829
    %v4841 = vpack.c.b16 %v4832, %v4831
    %v4842 = vpack.c.b16 %v4834, %v4833
    %4851 = vmatprep.subr.bf16.mxu0 0
    %4852 = vmatpush1.bf16.msra.mxu0 %v4842
    %4853 = vmatprep.subr.bf16.mxu0 0
    %4854 = vmatpush1.bf16.msra.mxu0 %v4841
    %4855 = vmatprep.subr.bf16.mxu0 0
    %4856 = vmatpush1.bf16.msra.mxu0 %v4840
    %4857 = vmatprep.subr.bf16.mxu0 0
    %4858 = vmatpush1.bf16.msra.mxu0 %v4839
    %4859 = vmatprep.subr.bf16.mxu0 0
    %4860 = vmatpush1.bf16.msra.mxu0 %v4838
    %4861 = vmatprep.subr.bf16.mxu0 0
    %4862 = vmatpush1.bf16.msra.mxu0 %v4837
    %4863 = vmatprep.subr.bf16.mxu0 0
    %4864 = vmatpush1.bf16.msra.mxu0 %v4836
    %4865 = vmatprep.subr.bf16.mxu0 0
    %4866 = vmatpush1.bf16.msra.mxu0 %v4835
    %4867 = vmatprep.subr.bf16.mxu0 0
    %4868 = vmatpush2.bf16.msra.mxu0 0
    %4869 = vmatprep.subr.bf16.mxu0 0
    %4870 = vmatpush2.bf16.msra.mxu0 0
    %4871 = vmatprep.subr.bf16.mxu0 0
    %4872 = vmatpush2.bf16.msra.mxu0 0
    %4873 = vmatprep.subr.bf16.mxu0 0
    %4874 = vmatpush2.bf16.msra.mxu0 0
    %4875 = vmatprep.subr.bf16.mxu0 0
    %4876 = vmatpush2.bf16.msra.mxu0 0
    %4877 = vmatprep.subr.bf16.mxu0 0
    %4878 = vmatpush2.bf16.msra.mxu0 0
    %4879 = vmatprep.subr.bf16.mxu0 0
    %4880 = vmatpush2.bf16.msra.mxu0 0
    %4881 = vmatprep.subr.bf16.mxu0 0
    %4882 = vmatpush2.bf16.msra.mxu0 0
    %4883 = vmatprep.mubr.bf16.mxu0 0
    %4884 = vmatmul.mubr.bf16.gmra.mxu0 %v4783
    %v4885 = vpop.f32.mrf.mxu0
    %v4886 = vadd.f32 0.0, %v4885
    %v4887 = vpop.f32.mrf.mxu0
    %v4888 = vpop.f32.mrf.mxu0
    %v4889 = vadd.f32 0.0, %v4888
    %v4890 = vpop.f32.mrf.mxu0
    %4891 = vmatprep.mubr.bf16.mxu0 0
    %4892 = vmatmul.mubr.bf16.gmra.mxu0 %v4784
    %v4893 = vpop.f32.mrf.mxu0
    %v4894 = vadd.f32 0.0, %v4893
    %v4895 = vpop.f32.mrf.mxu0
    %v4896 = vpop.f32.mrf.mxu0
    %v4897 = vadd.f32 0.0, %v4896
    %v4898 = vpop.f32.mrf.mxu0
    %4899 = vmatprep.mubr.bf16.mxu0 0
    %4900 = vmatmul.mubr.bf16.gmra.mxu0 %v4785
    %v4901 = vpop.f32.mrf.mxu0
    %v4902 = vadd.f32 0.0, %v4901
    %v4903 = vpop.f32.mrf.mxu0
    %v4904 = vpop.f32.mrf.mxu0
    %v4905 = vadd.f32 0.0, %v4904
    %v4906 = vpop.f32.mrf.mxu0
    %4907 = vmatprep.mubr.bf16.mxu0 0
    %4908 = vmatmul.mubr.bf16.gmra.mxu0 %v4786
    %v4909 = vpop.f32.mrf.mxu0
    %v4910 = vadd.f32 0.0, %v4909
    %v4911 = vpop.f32.mrf.mxu0
    %v4912 = vpop.f32.mrf.mxu0
    %v4913 = vadd.f32 0.0, %v4912
    %v4914 = vpop.f32.mrf.mxu0
    %4915 = vmatprep.mubr.bf16.mxu0 0
    %4916 = vmatmul.mubr.bf16.gmra.mxu0 %v4787
    %v4917 = vpop.f32.mrf.mxu0
    %v4918 = vpop.f32.mrf.mxu0
    %v4919 = vpop.f32.mrf.mxu0
    %v4920 = vpop.f32.mrf.mxu0
    %4921 = vmatprep.mubr.bf16.mxu0 0
    %4922 = vmatmul.mubr.bf16.gmra.mxu0 %v4788
    %v4923 = vpop.f32.mrf.mxu0
    %v4924 = vadd.f32 0.0, %v4923
    %v4925 = vpop.f32.mrf.mxu0
    %v4926 = vpop.f32.mrf.mxu0
    %v4927 = vadd.f32 0.0, %v4926
    %v4928 = vpop.f32.mrf.mxu0
    %4929 = vmatprep.mubr.bf16.mxu0 0
    %4930 = vmatmul.mubr.bf16.gmra.mxu0 %v4789
    %v4931 = vpop.f32.mrf.mxu0
    %v4932 = vadd.f32 0.0, %v4931
    %v4933 = vpop.f32.mrf.mxu0
    %v4934 = vpop.f32.mrf.mxu0
    %v4935 = vadd.f32 0.0, %v4934
    %v4936 = vpop.f32.mrf.mxu0
    %4937 = vmatprep.mubr.bf16.mxu0 0
    %4938 = vmatmul.mubr.bf16.gmra.mxu0 %v4790
    %v4939 = vpop.f32.mrf.mxu0
    %v4940 = vadd.f32 0.0, %v4939
    %v4941 = vpop.f32.mrf.mxu0
    %v4942 = vpop.f32.mrf.mxu0
    %v4943 = vadd.f32 0.0, %v4942
    %v4944 = vpop.f32.mrf.mxu0
    %4945 = vmatprep.mubr.bf16.mxu0 0
    %4946 = vmatmul.mubr.bf16.gmra.mxu0 %v4791
    %v4947 = vpop.f32.mrf.mxu0
    %v4948 = vadd.f32 0.0, %v4947
    %v4949 = vpop.f32.mrf.mxu0
    %v4950 = vpop.f32.mrf.mxu0
    %v4951 = vadd.f32 0.0, %v4950
    %v4952 = vpop.f32.mrf.mxu0
    %4953 = vmatprep.mubr.bf16.mxu0 0
    %4954 = vmatmul.mubr.bf16.gmra.mxu0 %v4792
    %v4955 = vpop.f32.mrf.mxu0
    %v4956 = vpop.f32.mrf.mxu0
    %v4957 = vpop.f32.mrf.mxu0
    %v4958 = vpop.f32.mrf.mxu0
    %4959 = vdwg.mxu0
    %v4960 = vadd.f32 %v4690, %v4886
    %v4961 = vadd.f32 %v4691, %v4889
    %v4962 = vadd.f32 %v4692, %v4894
    %v4963 = vadd.f32 %v4693, %v4897
    %v4964 = vadd.f32 %v4694, %v4902
    %v4965 = vadd.f32 %v4695, %v4905
    %v4966 = vadd.f32 %v4696, %v4910
    %v4967 = vadd.f32 %v4697, %v4913
    %v4968 = vadd.f32 %v4698, %v4924
    %v4969 = vadd.f32 %v4699, %v4927
    %v4970 = vadd.f32 %v4700, %v4932
    %v4971 = vadd.f32 %v4701, %v4935
    %v4972 = vadd.f32 %v4702, %v4940
    %v4973 = vadd.f32 %v4703, %v4943
    %v4974 = vadd.f32 %v4704, %v4948
    %v4975 = vadd.f32 %v4705, %v4951
    %s4976 = scalar_lea.vmem [#allocation8], 320
    %v4977 = vld [vmem:[%s4976] sm:$0xf]
    %v4978 = vld [vmem:[%s4976 + $0x4] sm:$0xf]
    %v4979 = vld [vmem:[%s4976 + $0x8] sm:$0xf]
    %v4980 = vld [vmem:[%s4976 + $0xc] sm:$0xf]
    %v4981 = vld [vmem:[%s4976 + $0x10] sm:$0xf]
    %v4982 = vld [vmem:[%s4976 + $0x14] sm:$0xf]
    %v4983 = vld [vmem:[%s4976 + $0x18] sm:$0xf]
    %v4984 = vld [vmem:[%s4976 + $0x1c] sm:$0xf]
    %v4985 = vld [vmem:[%s4976 + $0x20] sm:$0xf]
    %v4986 = vld [vmem:[%s4976 + $0x24] sm:$0xf]
    %v4987 = vld [vmem:[%s4976 + $0x28] sm:$0xf]
    %v4988 = vld [vmem:[%s4976 + $0x2c] sm:$0xf]
    %v4989 = vld [vmem:[%s4976 + $0x30] sm:$0xf]
    %v4990 = vld [vmem:[%s4976 + $0x34] sm:$0xf]
    %v4991 = vld [vmem:[%s4976 + $0x38] sm:$0xf]
    %v4992 = vld [vmem:[%s4976 + $0x3c] sm:$0xf]
    %v5009 = vunpack.c.l.b16 %v4977
    %v5010 = vunpack.c.l.b16 %v4978
    %v5011 = vunpack.c.l.b16 %v4979
    %v5012 = vunpack.c.l.b16 %v4980
    %v5013 = vunpack.c.l.b16 %v4981
    %v5014 = vunpack.c.l.b16 %v4982
    %v5015 = vunpack.c.l.b16 %v4983
    %v5016 = vunpack.c.l.b16 %v4984
    %v5017 = vunpack.c.l.b16 %v4985
    %v5018 = vunpack.c.l.b16 %v4986
    %v5019 = vunpack.c.l.b16 %v4987
    %v5020 = vunpack.c.l.b16 %v4988
    %v5021 = vunpack.c.l.b16 %v4989
    %v5022 = vunpack.c.l.b16 %v4990
    %v5023 = vunpack.c.l.b16 %v4991
    %v5024 = vunpack.c.l.b16 %v4992
    %v5025 = vpack.c.b16 %v5010, %v5009
    %v5026 = vpack.c.b16 %v5012, %v5011
    %v5027 = vpack.c.b16 %v5014, %v5013
    %v5028 = vpack.c.b16 %v5016, %v5015
    %v5029 = vpack.c.b16 %v5018, %v5017
    %v5030 = vpack.c.b16 %v5020, %v5019
    %v5031 = vpack.c.b16 %v5022, %v5021
    %v5032 = vpack.c.b16 %v5024, %v5023
    %5041 = vmatprep.subr.bf16.mxu0 0
    %5042 = vmatpush1.bf16.msra.mxu0 %v5032
    %5043 = vmatprep.subr.bf16.mxu0 0
    %5044 = vmatpush1.bf16.msra.mxu0 %v5031
    %5045 = vmatprep.subr.bf16.mxu0 0
    %5046 = vmatpush1.bf16.msra.mxu0 %v5030
    %5047 = vmatprep.subr.bf16.mxu0 0
    %5048 = vmatpush1.bf16.msra.mxu0 %v5029
    %5049 = vmatprep.subr.bf16.mxu0 0
    %5050 = vmatpush1.bf16.msra.mxu0 %v5028
    %5051 = vmatprep.subr.bf16.mxu0 0
    %5052 = vmatpush1.bf16.msra.mxu0 %v5027
    %5053 = vmatprep.subr.bf16.mxu0 0
    %5054 = vmatpush1.bf16.msra.mxu0 %v5026
    %5055 = vmatprep.subr.bf16.mxu0 0
    %5056 = vmatpush1.bf16.msra.mxu0 %v5025
    %5057 = vmatprep.subr.bf16.mxu0 0
    %5058 = vmatpush2.bf16.msra.mxu0 0
    %5059 = vmatprep.subr.bf16.mxu0 0
    %5060 = vmatpush2.bf16.msra.mxu0 0
    %5061 = vmatprep.subr.bf16.mxu0 0
    %5062 = vmatpush2.bf16.msra.mxu0 0
    %5063 = vmatprep.subr.bf16.mxu0 0
    %5064 = vmatpush2.bf16.msra.mxu0 0
    %5065 = vmatprep.subr.bf16.mxu0 0
    %5066 = vmatpush2.bf16.msra.mxu0 0
    %5067 = vmatprep.subr.bf16.mxu0 0
    %5068 = vmatpush2.bf16.msra.mxu0 0
    %5069 = vmatprep.subr.bf16.mxu0 0
    %5070 = vmatpush2.bf16.msra.mxu0 0
    %5071 = vmatprep.subr.bf16.mxu0 0
    %5072 = vmatpush2.bf16.msra.mxu0 0
    %5073 = vmatprep.mubr.bf16.mxu0 0
    %5074 = vmatmul.mubr.bf16.gmra.mxu0 %v4783
    %v5075 = vpop.f32.mrf.mxu0
    %v5076 = vpop.f32.mrf.mxu0
    %v5077 = vpop.f32.mrf.mxu0
    %v5078 = vadd.f32 0.0, %v5077
    %v5079 = vpop.f32.mrf.mxu0
    %5080 = vmatprep.mubr.bf16.mxu0 0
    %5081 = vmatmul.mubr.bf16.gmra.mxu0 %v4784
    %v5082 = vpop.f32.mrf.mxu0
    %v5083 = vadd.f32 0.0, %v5082
    %v5084 = vpop.f32.mrf.mxu0
    %v5085 = vpop.f32.mrf.mxu0
    %v5086 = vadd.f32 0.0, %v5085
    %v5087 = vpop.f32.mrf.mxu0
    %5088 = vmatprep.mubr.bf16.mxu0 0
    %5089 = vmatmul.mubr.bf16.gmra.mxu0 %v4785
    %v5090 = vpop.f32.mrf.mxu0
    %v5091 = vadd.f32 0.0, %v5090
    %v5092 = vpop.f32.mrf.mxu0
    %v5093 = vpop.f32.mrf.mxu0
    %v5094 = vadd.f32 0.0, %v5093
    %v5095 = vpop.f32.mrf.mxu0
    %5096 = vmatprep.mubr.bf16.mxu0 0
    %5097 = vmatmul.mubr.bf16.gmra.mxu0 %v4786
    %v5098 = vpop.f32.mrf.mxu0
    %v5099 = vadd.f32 0.0, %v5098
    %v5100 = vpop.f32.mrf.mxu0
    %v5101 = vpop.f32.mrf.mxu0
    %v5102 = vadd.f32 0.0, %v5101
    %v5103 = vpop.f32.mrf.mxu0
    %5104 = vmatprep.mubr.bf16.mxu0 0
    %5105 = vmatmul.mubr.bf16.gmra.mxu0 %v4787
    %v5106 = vpop.f32.mrf.mxu0
    %v5107 = vadd.f32 0.0, %v5106
    %v5108 = vpop.f32.mrf.mxu0
    %v5109 = vpop.f32.mrf.mxu0
    %v5110 = vpop.f32.mrf.mxu0
    %5111 = vmatprep.mubr.bf16.mxu0 0
    %5112 = vmatmul.mubr.bf16.gmra.mxu0 %v4788
    %v5113 = vpop.f32.mrf.mxu0
    %v5114 = vpop.f32.mrf.mxu0
    %v5115 = vpop.f32.mrf.mxu0
    %v5116 = vadd.f32 0.0, %v5115
    %v5117 = vpop.f32.mrf.mxu0
    %5118 = vmatprep.mubr.bf16.mxu0 0
    %5119 = vmatmul.mubr.bf16.gmra.mxu0 %v4789
    %v5120 = vpop.f32.mrf.mxu0
    %v5121 = vadd.f32 0.0, %v5120
    %v5122 = vpop.f32.mrf.mxu0
    %v5123 = vpop.f32.mrf.mxu0
    %v5124 = vadd.f32 0.0, %v5123
    %v5125 = vpop.f32.mrf.mxu0
    %5126 = vmatprep.mubr.bf16.mxu0 0
    %5127 = vmatmul.mubr.bf16.gmra.mxu0 %v4790
    %v5128 = vpop.f32.mrf.mxu0
    %v5129 = vadd.f32 0.0, %v5128
    %v5130 = vpop.f32.mrf.mxu0
    %v5131 = vpop.f32.mrf.mxu0
    %v5132 = vadd.f32 0.0, %v5131
    %v5133 = vpop.f32.mrf.mxu0
    %5134 = vmatprep.mubr.bf16.mxu0 0
    %5135 = vmatmul.mubr.bf16.gmra.mxu0 %v4791
    %v5136 = vpop.f32.mrf.mxu0
    %v5137 = vadd.f32 0.0, %v5136
    %v5138 = vpop.f32.mrf.mxu0
    %v5139 = vpop.f32.mrf.mxu0
    %v5140 = vadd.f32 0.0, %v5139
    %v5141 = vpop.f32.mrf.mxu0
    %5142 = vmatprep.mubr.bf16.mxu0 0
    %5143 = vmatmul.mubr.bf16.gmra.mxu0 %v4792
    %v5144 = vpop.f32.mrf.mxu0
    %v5145 = vadd.f32 0.0, %v5144
    %v5146 = vpop.f32.mrf.mxu0
    %v5147 = vpop.f32.mrf.mxu0
    %v5148 = vpop.f32.mrf.mxu0
    %5149 = vdwg.mxu0
    %v5150 = vadd.f32 %v4960, %v5078
    %v5151 = vadd.f32 %v4961, %v5083
    %v5152 = vadd.f32 %v4962, %v5086
    %v5153 = vadd.f32 %v4963, %v5091
    %v5154 = vadd.f32 %v4964, %v5094
    %v5155 = vadd.f32 %v4965, %v5099
    %v5156 = vadd.f32 %v4966, %v5102
    %v5157 = vadd.f32 %v4967, %v5107
    %v5158 = vadd.f32 %v4968, %v5116
    %v5159 = vadd.f32 %v4969, %v5121
    %v5160 = vadd.f32 %v4970, %v5124
    %v5161 = vadd.f32 %v4971, %v5129
    %v5162 = vadd.f32 %v4972, %v5132
    %v5163 = vadd.f32 %v4973, %v5137
    %v5164 = vadd.f32 %v4974, %v5140
    %v5165 = vadd.f32 %v4975, %v5145
    %s5166 = scalar_lea.vmem [#allocation8], 512
    %v5167 = vld [vmem:[%s5166] sm:$0xf]
    %v5168 = vld [vmem:[%s5166 + $0x4] sm:$0xf]
    %v5169 = vld [vmem:[%s5166 + $0x8] sm:$0xf]
    %v5170 = vld [vmem:[%s5166 + $0xc] sm:$0xf]
    %v5171 = vld [vmem:[%s5166 + $0x10] sm:$0xf]
    %v5172 = vld [vmem:[%s5166 + $0x14] sm:$0xf]
    %v5173 = vld [vmem:[%s5166 + $0x18] sm:$0xf]
    %v5174 = vld [vmem:[%s5166 + $0x1c] sm:$0xf]
    %v5175 = vld [vmem:[%s5166 + $0x20] sm:$0xf]
    %v5176 = vld [vmem:[%s5166 + $0x24] sm:$0xf]
    %v5177 = vld [vmem:[%s5166 + $0x28] sm:$0xf]
    %v5178 = vld [vmem:[%s5166 + $0x2c] sm:$0xf]
    %v5179 = vld [vmem:[%s5166 + $0x30] sm:$0xf]
    %v5180 = vld [vmem:[%s5166 + $0x34] sm:$0xf]
    %v5181 = vld [vmem:[%s5166 + $0x38] sm:$0xf]
    %v5182 = vld [vmem:[%s5166 + $0x3c] sm:$0xf]
    %v5199 = vunpack.c.l.b16 %v5167
    %v5200 = vunpack.c.l.b16 %v5168
    %v5201 = vunpack.c.l.b16 %v5169
    %v5202 = vunpack.c.l.b16 %v5170
    %v5203 = vunpack.c.l.b16 %v5171
    %v5204 = vunpack.c.l.b16 %v5172
    %v5205 = vunpack.c.l.b16 %v5173
    %v5206 = vunpack.c.l.b16 %v5174
    %v5207 = vunpack.c.l.b16 %v5175
    %v5208 = vunpack.c.l.b16 %v5176
    %v5209 = vunpack.c.l.b16 %v5177
    %v5210 = vunpack.c.l.b16 %v5178
    %v5211 = vunpack.c.l.b16 %v5179
    %v5212 = vunpack.c.l.b16 %v5180
    %v5213 = vunpack.c.l.b16 %v5181
    %v5214 = vunpack.c.l.b16 %v5182
    %v5215 = vpack.c.b16 %v5200, %v5199
    %v5216 = vpack.c.b16 %v5202, %v5201
    %v5217 = vpack.c.b16 %v5204, %v5203
    %v5218 = vpack.c.b16 %v5206, %v5205
    %v5219 = vpack.c.b16 %v5208, %v5207
    %v5220 = vpack.c.b16 %v5210, %v5209
    %v5221 = vpack.c.b16 %v5212, %v5211
    %v5222 = vpack.c.b16 %v5214, %v5213
    %5231 = vmatprep.subr.bf16.mxu0 0
    %5232 = vmatpush1.bf16.msra.mxu0 %v5222
    %5233 = vmatprep.subr.bf16.mxu0 0
    %5234 = vmatpush1.bf16.msra.mxu0 %v5221
    %5235 = vmatprep.subr.bf16.mxu0 0
    %5236 = vmatpush1.bf16.msra.mxu0 %v5220
    %5237 = vmatprep.subr.bf16.mxu0 0
    %5238 = vmatpush1.bf16.msra.mxu0 %v5219
    %5239 = vmatprep.subr.bf16.mxu0 0
    %5240 = vmatpush1.bf16.msra.mxu0 %v5218
    %5241 = vmatprep.subr.bf16.mxu0 0
    %5242 = vmatpush1.bf16.msra.mxu0 %v5217
    %5243 = vmatprep.subr.bf16.mxu0 0
    %5244 = vmatpush1.bf16.msra.mxu0 %v5216
    %5245 = vmatprep.subr.bf16.mxu0 0
    %5246 = vmatpush1.bf16.msra.mxu0 %v5215
    %5247 = vmatprep.subr.bf16.mxu0 0
    %5248 = vmatpush2.bf16.msra.mxu0 0
    %5249 = vmatprep.subr.bf16.mxu0 0
    %5250 = vmatpush2.bf16.msra.mxu0 0
    %5251 = vmatprep.subr.bf16.mxu0 0
    %5252 = vmatpush2.bf16.msra.mxu0 0
    %5253 = vmatprep.subr.bf16.mxu0 0
    %5254 = vmatpush2.bf16.msra.mxu0 0
    %5255 = vmatprep.subr.bf16.mxu0 0
    %5256 = vmatpush2.bf16.msra.mxu0 0
    %5257 = vmatprep.subr.bf16.mxu0 0
    %5258 = vmatpush2.bf16.msra.mxu0 0
    %5259 = vmatprep.subr.bf16.mxu0 0
    %5260 = vmatpush2.bf16.msra.mxu0 0
    %5261 = vmatprep.subr.bf16.mxu0 0
    %5262 = vmatpush2.bf16.msra.mxu0 0
    %5263 = vmatprep.mubr.bf16.mxu0 0
    %5264 = vmatmul.mubr.bf16.gmra.mxu0 %v4783
    %v5265 = vpop.f32.mrf.mxu0
    %v5266 = vpop.f32.mrf.mxu0
    %v5267 = vpop.f32.mrf.mxu0
    %v5268 = vpop.f32.mrf.mxu0
    %5269 = vmatprep.mubr.bf16.mxu0 0
    %5270 = vmatmul.mubr.bf16.gmra.mxu0 %v4784
    %v5271 = vpop.f32.mrf.mxu0
    %v5272 = vadd.f32 0.0, %v5271
    %v5273 = vpop.f32.mrf.mxu0
    %v5274 = vpop.f32.mrf.mxu0
    %v5275 = vadd.f32 0.0, %v5274
    %v5276 = vpop.f32.mrf.mxu0
    %5277 = vmatprep.mubr.bf16.mxu0 0
    %5278 = vmatmul.mubr.bf16.gmra.mxu0 %v4785
    %v5279 = vpop.f32.mrf.mxu0
    %v5280 = vadd.f32 0.0, %v5279
    %v5281 = vpop.f32.mrf.mxu0
    %v5282 = vpop.f32.mrf.mxu0
    %v5283 = vadd.f32 0.0, %v5282
    %v5284 = vpop.f32.mrf.mxu0
    %5285 = vmatprep.mubr.bf16.mxu0 0
    %5286 = vmatmul.mubr.bf16.gmra.mxu0 %v4786
    %v5287 = vpop.f32.mrf.mxu0
    %v5288 = vadd.f32 0.0, %v5287
    %v5289 = vpop.f32.mrf.mxu0
    %v5290 = vpop.f32.mrf.mxu0
    %v5291 = vadd.f32 0.0, %v5290
    %v5292 = vpop.f32.mrf.mxu0
    %5293 = vmatprep.mubr.bf16.mxu0 0
    %5294 = vmatmul.mubr.bf16.gmra.mxu0 %v4787
    %v5295 = vpop.f32.mrf.mxu0
    %v5296 = vadd.f32 0.0, %v5295
    %v5297 = vpop.f32.mrf.mxu0
    %v5298 = vpop.f32.mrf.mxu0
    %v5299 = vadd.f32 0.0, %v5298
    %v5300 = vpop.f32.mrf.mxu0
    %5301 = vmatprep.mubr.bf16.mxu0 0
    %5302 = vmatmul.mubr.bf16.gmra.mxu0 %v4788
    %v5303 = vpop.f32.mrf.mxu0
    %v5304 = vpop.f32.mrf.mxu0
    %v5305 = vpop.f32.mrf.mxu0
    %v5306 = vpop.f32.mrf.mxu0
    %5307 = vmatprep.mubr.bf16.mxu0 0
    %5308 = vmatmul.mubr.bf16.gmra.mxu0 %v4789
    %v5309 = vpop.f32.mrf.mxu0
    %v5310 = vadd.f32 0.0, %v5309
    %v5311 = vpop.f32.mrf.mxu0
    %v5312 = vpop.f32.mrf.mxu0
    %v5313 = vadd.f32 0.0, %v5312
    %v5314 = vpop.f32.mrf.mxu0
    %5315 = vmatprep.mubr.bf16.mxu0 0
    %5316 = vmatmul.mubr.bf16.gmra.mxu0 %v4790
    %v5317 = vpop.f32.mrf.mxu0
    %v5318 = vadd.f32 0.0, %v5317
    %v5319 = vpop.f32.mrf.mxu0
    %v5320 = vpop.f32.mrf.mxu0
    %v5321 = vadd.f32 0.0, %v5320
    %v5322 = vpop.f32.mrf.mxu0
    %5323 = vmatprep.mubr.bf16.mxu0 0
    %5324 = vmatmul.mubr.bf16.gmra.mxu0 %v4791
    %v5325 = vpop.f32.mrf.mxu0
    %v5326 = vadd.f32 0.0, %v5325
    %v5327 = vpop.f32.mrf.mxu0
    %v5328 = vpop.f32.mrf.mxu0
    %v5329 = vadd.f32 0.0, %v5328
    %v5330 = vpop.f32.mrf.mxu0
    %5331 = vmatprep.mubr.bf16.mxu0 0
    %5332 = vmatmul.mubr.bf16.gmra.mxu0 %v4792
    %v5333 = vpop.f32.mrf.mxu0
    %v5334 = vadd.f32 0.0, %v5333
    %v5335 = vpop.f32.mrf.mxu0
    %v5336 = vpop.f32.mrf.mxu0
    %v5337 = vadd.f32 0.0, %v5336
    %v5338 = vpop.f32.mrf.mxu0
    %5339 = vdwg.mxu0
    %v5340 = vadd.f32 %v5150, %v5272
    %v5341 = vadd.f32 %v5151, %v5275
    %v5342 = vadd.f32 %v5152, %v5280
    %v5343 = vadd.f32 %v5153, %v5283
    %v5344 = vadd.f32 %v5154, %v5288
    %v5345 = vadd.f32 %v5155, %v5291
    %v5346 = vadd.f32 %v5156, %v5296
    %v5347 = vadd.f32 %v5157, %v5299
    %v5348 = vadd.f32 %v5158, %v5310
    %v5349 = vadd.f32 %v5159, %v5313
    %v5350 = vadd.f32 %v5160, %v5318
    %v5351 = vadd.f32 %v5161, %v5321
    %v5352 = vadd.f32 %v5162, %v5326
    %v5353 = vadd.f32 %v5163, %v5329
    %v5354 = vadd.f32 %v5164, %v5334
    %v5355 = vadd.f32 %v5165, %v5337
    %v5356 = vld [vmem:[%s1707] sm:$0xf]
    %v5357 = vld [vmem:[%s1707 + $0x4] sm:$0xf]
    %v5358 = vld [vmem:[%s1707 + $0x8] sm:$0xf]
    %v5359 = vld [vmem:[%s1707 + $0xc] sm:$0xf]
    %v5360 = vld [vmem:[%s1707 + $0x10] sm:$0xf]
    %v5361 = vld [vmem:[%s1707 + $0x14] sm:$0xf]
    %v5362 = vld [vmem:[%s1707 + $0x18] sm:$0xf]
    %v5363 = vld [vmem:[%s1707 + $0x1c] sm:$0xf]
    %v5364 = vld [vmem:[%s1707 + $0x20] sm:$0xf]
    %v5365 = vld [vmem:[%s1707 + $0x24] sm:$0xf]
    %v5366 = vld [vmem:[%s1707 + $0x28] sm:$0xf]
    %v5367 = vld [vmem:[%s1707 + $0x2c] sm:$0xf]
    %v5368 = vld [vmem:[%s1707 + $0x30] sm:$0xf]
    %v5369 = vld [vmem:[%s1707 + $0x34] sm:$0xf]
    %v5370 = vld [vmem:[%s1707 + $0x38] sm:$0xf]
    %v5371 = vld [vmem:[%s1707 + $0x3c] sm:$0xf]
    %v5372 = vld [vmem:[%s1707 + $0x40] sm:$0xf]
    %v5373 = vld [vmem:[%s1707 + $0x44] sm:$0xf]
    %v5374 = vld [vmem:[%s4] sm:$0xf]
    %v5375 = vld [vmem:[%s4 + $0x4] sm:$0xf]
    %v5376 = vld [vmem:[%s4 + $0x8] sm:$0xf]
    %v5377 = vld [vmem:[%s4 + $0xc] sm:$0xf]
    %v5378 = vld [vmem:[%s4 + $0x10] sm:$0xf]
    %v5379 = vld [vmem:[%s4 + $0x14] sm:$0xf]
    %v5380 = vld [vmem:[%s4 + $0x18] sm:$0xf]
    %v5381 = vld [vmem:[%s4 + $0x1c] sm:$0xf]
    %v5382 = vld [vmem:[%s4 + $0x20] sm:$0xf]
    %v5383 = vld [vmem:[%s4 + $0x24] sm:$0xf]
    %v5384 = vld [vmem:[%s4 + $0x28] sm:$0xf]
    %v5385 = vld [vmem:[%s4 + $0x2c] sm:$0xf]
    %v5386 = vld [vmem:[%s4 + $0x30] sm:$0xf]
    %v5387 = vld [vmem:[%s4 + $0x34] sm:$0xf]
    %v5388 = vld [vmem:[%s4 + $0x38] sm:$0xf]
    %v5389 = vld [vmem:[%s4 + $0x3c] sm:$0xf]
    %v5408 = vunpack.c.l.b16 %v5356
    %v5409 = vunpack.c.l.b16 %v5357
    %v5410 = vunpack.c.l.b16 %v5358
    %v5411 = vunpack.c.l.b16 %v5359
    %v5412 = vunpack.c.l.b16 %v5360
    %v5413 = vunpack.c.l.b16 %v5361
    %v5414 = vunpack.c.l.b16 %v5362
    %v5415 = vunpack.c.l.b16 %v5363
    %v5416 = vunpack.c.l.b16 %v5364
    %v5417 = vunpack.c.l.b16 %v5365
    %v5418 = vunpack.c.l.b16 %v5366
    %v5419 = vunpack.c.l.b16 %v5367
    %v5420 = vunpack.c.l.b16 %v5368
    %v5421 = vunpack.c.l.b16 %v5369
    %v5422 = vunpack.c.l.b16 %v5370
    %v5423 = vunpack.c.l.b16 %v5371
    %v5424 = vunpack.c.l.b16 %v5372
    %v5425 = vunpack.c.l.b16 %v5373
    %v5426 = vpack.c.b16 %v5409, %v5408
    %v5427 = vpack.c.b16 %v5411, %v5410
    %v5428 = vpack.c.b16 %v5413, %v5412
    %v5429 = vpack.c.b16 %v5415, %v5414
    %v5430 = vpack.c.b16 %v5417, %v5416
    %v5431 = vpack.c.b16 %v5419, %v5418
    %v5432 = vpack.c.b16 %v5421, %v5420
    %v5433 = vpack.c.b16 %v5423, %v5422
    %v5434 = vpack.c.b16 %v5425, %v5424
    %v5460 = vunpack.c.l.b16 %v5374
    %v5461 = vunpack.c.l.b16 %v5375
    %v5462 = vunpack.c.l.b16 %v5376
    %v5463 = vunpack.c.l.b16 %v5377
    %v5464 = vunpack.c.l.b16 %v5378
    %v5465 = vunpack.c.l.b16 %v5379
    %v5466 = vunpack.c.l.b16 %v5380
    %v5467 = vunpack.c.l.b16 %v5381
    %v5468 = vunpack.c.l.b16 %v5382
    %v5469 = vunpack.c.l.b16 %v5383
    %v5470 = vunpack.c.l.b16 %v5384
    %v5471 = vunpack.c.l.b16 %v5385
    %v5472 = vunpack.c.l.b16 %v5386
    %v5473 = vunpack.c.l.b16 %v5387
    %v5474 = vunpack.c.l.b16 %v5388
    %v5475 = vunpack.c.l.b16 %v5389
    %v5476 = vpack.c.b16 %v5461, %v5460
    %v5477 = vpack.c.b16 %v5463, %v5462
    %v5478 = vpack.c.b16 %v5465, %v5464
    %v5479 = vpack.c.b16 %v5467, %v5466
    %v5480 = vpack.c.b16 %v5469, %v5468
    %v5481 = vpack.c.b16 %v5471, %v5470
    %v5482 = vpack.c.b16 %v5473, %v5472
    %v5483 = vpack.c.b16 %v5475, %v5474
    %5492 = vmatprep.subr.bf16.mxu0 0
    %5493 = vmatpush1.bf16.msra.mxu0 %v5483
    %5494 = vmatprep.subr.bf16.mxu0 0
    %5495 = vmatpush1.bf16.msra.mxu0 %v5482
    %5496 = vmatprep.subr.bf16.mxu0 0
    %5497 = vmatpush1.bf16.msra.mxu0 %v5481
    %5498 = vmatprep.subr.bf16.mxu0 0
    %5499 = vmatpush1.bf16.msra.mxu0 %v5480
    %5500 = vmatprep.subr.bf16.mxu0 0
    %5501 = vmatpush1.bf16.msra.mxu0 %v5479
    %5502 = vmatprep.subr.bf16.mxu0 0
    %5503 = vmatpush1.bf16.msra.mxu0 %v5478
    %5504 = vmatprep.subr.bf16.mxu0 0
    %5505 = vmatpush1.bf16.msra.mxu0 %v5477
    %5506 = vmatprep.subr.bf16.mxu0 0
    %5507 = vmatpush1.bf16.msra.mxu0 %v5476
    %5508 = vmatprep.subr.bf16.mxu0 0
    %5509 = vmatpush2.bf16.msra.mxu0 0
    %5510 = vmatprep.subr.bf16.mxu0 0
    %5511 = vmatpush2.bf16.msra.mxu0 0
    %5512 = vmatprep.subr.bf16.mxu0 0
    %5513 = vmatpush2.bf16.msra.mxu0 0
    %5514 = vmatprep.subr.bf16.mxu0 0
    %5515 = vmatpush2.bf16.msra.mxu0 0
    %5516 = vmatprep.subr.bf16.mxu0 0
    %5517 = vmatpush2.bf16.msra.mxu0 0
    %5518 = vmatprep.subr.bf16.mxu0 0
    %5519 = vmatpush2.bf16.msra.mxu0 0
    %5520 = vmatprep.subr.bf16.mxu0 0
    %5521 = vmatpush2.bf16.msra.mxu0 0
    %5522 = vmatprep.subr.bf16.mxu0 0
    %5523 = vmatpush2.bf16.msra.mxu0 0
    %5524 = vmatprep.mubr.bf16.mxu0 0
    %5525 = vmatmul.mubr.bf16.gmra.mxu0 %v5426
    %v5526 = vpop.f32.mrf.mxu0
    %v5527 = vadd.f32 0.0, %v5526
    %v5528 = vpop.f32.mrf.mxu0
    %v5529 = vpop.f32.mrf.mxu0
    %v5530 = vadd.f32 0.0, %v5529
    %v5531 = vpop.f32.mrf.mxu0
    %5532 = vmatprep.mubr.bf16.mxu0 0
    %5533 = vmatmul.mubr.bf16.gmra.mxu0 %v5427
    %v5534 = vpop.f32.mrf.mxu0
    %v5535 = vadd.f32 0.0, %v5534
    %v5536 = vpop.f32.mrf.mxu0
    %v5537 = vpop.f32.mrf.mxu0
    %v5538 = vadd.f32 0.0, %v5537
    %v5539 = vpop.f32.mrf.mxu0
    %5540 = vmatprep.mubr.bf16.mxu0 0
    %5541 = vmatmul.mubr.bf16.gmra.mxu0 %v5428
    %v5542 = vpop.f32.mrf.mxu0
    %v5543 = vadd.f32 0.0, %v5542
    %v5544 = vpop.f32.mrf.mxu0
    %v5545 = vpop.f32.mrf.mxu0
    %v5546 = vadd.f32 0.0, %v5545
    %v5547 = vpop.f32.mrf.mxu0
    %5548 = vmatprep.mubr.bf16.mxu0 0
    %5549 = vmatmul.mubr.bf16.gmra.mxu0 %v5429
    %v5550 = vpop.f32.mrf.mxu0
    %v5551 = vadd.f32 0.0, %v5550
    %v5552 = vpop.f32.mrf.mxu0
    %v5553 = vpop.f32.mrf.mxu0
    %v5554 = vadd.f32 0.0, %v5553
    %v5555 = vpop.f32.mrf.mxu0
    %5556 = vmatprep.mubr.bf16.mxu0 0
    %5557 = vmatmul.mubr.bf16.gmra.mxu0 %v5430
    %v5558 = vpop.f32.mrf.mxu0
    %v5559 = vpop.f32.mrf.mxu0
    %v5560 = vpop.f32.mrf.mxu0
    %v5561 = vadd.f32 0.0, %v5560
    %v5562 = vpop.f32.mrf.mxu0
    %5563 = vmatprep.mubr.bf16.mxu0 0
    %5564 = vmatmul.mubr.bf16.gmra.mxu0 %v5431
    %v5565 = vpop.f32.mrf.mxu0
    %v5566 = vadd.f32 0.0, %v5565
    %v5567 = vpop.f32.mrf.mxu0
    %v5568 = vpop.f32.mrf.mxu0
    %v5569 = vadd.f32 0.0, %v5568
    %v5570 = vpop.f32.mrf.mxu0
    %5571 = vmatprep.mubr.bf16.mxu0 0
    %5572 = vmatmul.mubr.bf16.gmra.mxu0 %v5432
    %v5573 = vpop.f32.mrf.mxu0
    %v5574 = vadd.f32 0.0, %v5573
    %v5575 = vpop.f32.mrf.mxu0
    %v5576 = vpop.f32.mrf.mxu0
    %v5577 = vadd.f32 0.0, %v5576
    %v5578 = vpop.f32.mrf.mxu0
    %5579 = vmatprep.mubr.bf16.mxu0 0
    %5580 = vmatmul.mubr.bf16.gmra.mxu0 %v5433
    %v5581 = vpop.f32.mrf.mxu0
    %v5582 = vadd.f32 0.0, %v5581
    %v5583 = vpop.f32.mrf.mxu0
    %v5584 = vpop.f32.mrf.mxu0
    %v5585 = vadd.f32 0.0, %v5584
    %v5586 = vpop.f32.mrf.mxu0
    %5587 = vmatprep.mubr.bf16.mxu0 0
    %5588 = vmatmul.mubr.bf16.gmra.mxu0 %v5434
    %v5589 = vpop.f32.mrf.mxu0
    %v5590 = vadd.f32 0.0, %v5589
    %v5591 = vpop.f32.mrf.mxu0
    %v5592 = vpop.f32.mrf.mxu0
    %v5593 = vpop.f32.mrf.mxu0
    %5594 = vdwg.mxu0
    %v5595 = vld [vmem:[#allocation13] sm:$0xff]
    %v5596 = vld [vmem:[#allocation13 + $0x8] sm:$0xff]
    %v5597 = vld [vmem:[#allocation13 + $0x10] sm:$0xff]
    %v5598 = vld [vmem:[#allocation13 + $0x18] sm:$0xff]
    %v5599 = vld [vmem:[#allocation13 + $0x20] sm:$0xff]
    %v5600 = vld [vmem:[#allocation13 + $0x28] sm:$0xff]
    %v5601 = vld [vmem:[#allocation13 + $0x30] sm:$0xff]
    %v5602 = vld [vmem:[#allocation13 + $0x38] sm:$0xff]
    %v5603 = vld [vmem:[#allocation13 + $0x40] sm:$0xff]
    %v5604 = vld [vmem:[#allocation13 + $0x48] sm:$0xff]
    %v5605 = vld [vmem:[#allocation13 + $0x50] sm:$0xff]
    %v5606 = vld [vmem:[#allocation13 + $0x58] sm:$0xff]
    %v5607 = vld [vmem:[#allocation13 + $0x60] sm:$0xff]
    %v5608 = vld [vmem:[#allocation13 + $0x68] sm:$0xff]
    %v5609 = vld [vmem:[#allocation13 + $0x70] sm:$0xff]
    %v5610 = vld [vmem:[#allocation13 + $0x78] sm:$0xff]
    %v5611 = vstv %s141
    %v5612 = vmul.f32 %v5611, %v5595
    %v5613 = vmul.f32 %v5611, %v5596
    %v5614 = vmul.f32 %v5611, %v5597
    %v5615 = vmul.f32 %v5611, %v5598
    %v5616 = vmul.f32 %v5611, %v5599
    %v5617 = vmul.f32 %v5611, %v5600
    %v5618 = vmul.f32 %v5611, %v5601
    %v5619 = vmul.f32 %v5611, %v5602
    %v5620 = vmul.f32 %v5611, %v5603
    %v5621 = vmul.f32 %v5611, %v5604
    %v5622 = vmul.f32 %v5611, %v5605
    %v5623 = vmul.f32 %v5611, %v5606
    %v5624 = vmul.f32 %v5611, %v5607
    %v5625 = vmul.f32 %v5611, %v5608
    %v5626 = vmul.f32 %v5611, %v5609
    %v5627 = vmul.f32 %v5611, %v5610
    %v5628 = vstv %s144
    %v5629 = vmul.f32 %v5628, %v5340
    %v5630 = vmul.f32 %v5628, %v5341
    %v5631 = vmul.f32 %v5628, %v5342
    %v5632 = vmul.f32 %v5628, %v5343
    %v5633 = vmul.f32 %v5628, %v5344
    %v5634 = vmul.f32 %v5628, %v5345
    %v5635 = vmul.f32 %v5628, %v5346
    %v5636 = vmul.f32 %v5628, %v5347
    %v5637 = vmul.f32 %v5628, %v5348
    %v5638 = vmul.f32 %v5628, %v5349
    %v5639 = vmul.f32 %v5628, %v5350
    %v5640 = vmul.f32 %v5628, %v5351
    %v5641 = vmul.f32 %v5628, %v5352
    %v5642 = vmul.f32 %v5628, %v5353
    %v5643 = vmul.f32 %v5628, %v5354
    %v5644 = vmul.f32 %v5628, %v5355
    %v5645 = vadd.f32 %v5612, %v5629
    %v5646 = vadd.f32 %v5613, %v5630
    %v5647 = vadd.f32 %v5614, %v5631
    %v5648 = vadd.f32 %v5615, %v5632
    %v5649 = vadd.f32 %v5616, %v5633
    %v5650 = vadd.f32 %v5617, %v5634
    %v5651 = vadd.f32 %v5618, %v5635
    %v5652 = vadd.f32 %v5619, %v5636
    %v5653 = vadd.f32 %v5620, %v5637
    %v5654 = vadd.f32 %v5621, %v5638
    %v5655 = vadd.f32 %v5622, %v5639
    %v5656 = vadd.f32 %v5623, %v5640
    %v5657 = vadd.f32 %v5624, %v5641
    %v5658 = vadd.f32 %v5625, %v5642
    %v5659 = vadd.f32 %v5626, %v5643
    %v5660 = vadd.f32 %v5627, %v5644
    %v5661 = vadd.f32 %v5645, %v5527
    %v5662 = vadd.f32 %v5646, %v5530
    %v5663 = vadd.f32 %v5647, %v5535
    %v5664 = vadd.f32 %v5648, %v5538
    %v5665 = vadd.f32 %v5649, %v5543
    %v5666 = vadd.f32 %v5650, %v5546
    %v5667 = vadd.f32 %v5651, %v5551
    %v5668 = vadd.f32 %v5652, %v5554
    %v5669 = vadd.f32 %v5653, %v5561
    %v5670 = vadd.f32 %v5654, %v5566
    %v5671 = vadd.f32 %v5655, %v5569
    %v5672 = vadd.f32 %v5656, %v5574
    %v5673 = vadd.f32 %v5657, %v5577
    %v5674 = vadd.f32 %v5658, %v5582
    %v5675 = vadd.f32 %v5659, %v5585
    %v5676 = vadd.f32 %v5660, %v5590
    %v5677 = vstv %s142
    %v5678 = vrcp.pop %v5677
    %v5679 = vmul.f32 %v5661, %v5678
    %v5680 = vmul.f32 %v5662, %v5678
    %v5681 = vmul.f32 %v5663, %v5678
    %v5682 = vmul.f32 %v5664, %v5678
    %v5683 = vmul.f32 %v5665, %v5678
    %v5684 = vmul.f32 %v5666, %v5678
    %v5685 = vmul.f32 %v5667, %v5678
    %v5686 = vmul.f32 %v5668, %v5678
    %v5687 = vmul.f32 %v5669, %v5678
    %v5688 = vmul.f32 %v5670, %v5678
    %v5689 = vmul.f32 %v5671, %v5678
    %v5690 = vmul.f32 %v5672, %v5678
    %v5691 = vmul.f32 %v5673, %v5678
    %v5692 = vmul.f32 %v5674, %v5678
    %v5693 = vmul.f32 %v5675, %v5678
    %v5694 = vmul.f32 %v5676, %v5678
    %v5695 = vsub.f32 %v5679, 1.0
    %v5696 = vsub.f32 %v5680, 1.0
    %v5697 = vsub.f32 %v5681, 1.0
    %v5698 = vsub.f32 %v5682, 1.0
    %v5699 = vsub.f32 %v5683, 1.0
    %v5700 = vsub.f32 %v5684, 1.0
    %v5701 = vsub.f32 %v5685, 1.0
    %v5702 = vsub.f32 %v5686, 1.0
    %v5703 = vsub.f32 %v5687, 1.0
    %v5704 = vsub.f32 %v5688, 1.0
    %v5705 = vsub.f32 %v5689, 1.0
    %v5706 = vsub.f32 %v5690, 1.0
    %v5707 = vsub.f32 %v5691, 1.0
    %v5708 = vsub.f32 %v5692, 1.0
    %v5709 = vsub.f32 %v5693, 1.0
    %v5710 = vsub.f32 %v5694, 1.0
    %vm5711 = vcmp.gt.f32.partialorder %v5695, 0.0
    %vm5712 = vcmp.gt.f32.partialorder %v5696, 0.0
    %vm5713 = vcmp.gt.f32.partialorder %v5697, 0.0
    %vm5714 = vcmp.gt.f32.partialorder %v5698, 0.0
    %vm5715 = vcmp.gt.f32.partialorder %v5699, 0.0
    %vm5716 = vcmp.gt.f32.partialorder %v5700, 0.0
    %vm5717 = vcmp.gt.f32.partialorder %v5701, 0.0
    %vm5718 = vcmp.gt.f32.partialorder %v5702, 0.0
    %vm5719 = vcmp.gt.f32.partialorder %v5703, 0.0
    %vm5720 = vcmp.gt.f32.partialorder %v5704, 0.0
    %vm5721 = vcmp.gt.f32.partialorder %v5705, 0.0
    %vm5722 = vcmp.gt.f32.partialorder %v5706, 0.0
    %vm5723 = vcmp.gt.f32.partialorder %v5707, 0.0
    %vm5724 = vcmp.gt.f32.partialorder %v5708, 0.0
    %vm5725 = vcmp.gt.f32.partialorder %v5709, 0.0
    %vm5726 = vcmp.gt.f32.partialorder %v5710, 0.0
    %v5727 = vsel %vm5711, 1, 0
    %v5728 = vsel %vm5712, 1, 0
    %v5729 = vsel %vm5713, 1, 0
    %v5730 = vsel %vm5714, 1, 0
    %v5731 = vsel %vm5715, 1, 0
    %v5732 = vsel %vm5716, 1, 0
    %v5733 = vsel %vm5717, 1, 0
    %v5734 = vsel %vm5718, 1, 0
    %v5735 = vsel %vm5719, 1, 0
    %v5736 = vsel %vm5720, 1, 0
    %v5737 = vsel %vm5721, 1, 0
    %v5738 = vsel %vm5722, 1, 0
    %v5739 = vsel %vm5723, 1, 0
    %v5740 = vsel %vm5724, 1, 0
    %v5741 = vsel %vm5725, 1, 0
    %v5742 = vsel %vm5726, 1, 0
    %v5743 = vcvt.s32.f32 %v5727
    %v5744 = vcvt.s32.f32 %v5728
    %v5745 = vcvt.s32.f32 %v5729
    %v5746 = vcvt.s32.f32 %v5730
    %v5747 = vcvt.s32.f32 %v5731
    %v5748 = vcvt.s32.f32 %v5732
    %v5749 = vcvt.s32.f32 %v5733
    %v5750 = vcvt.s32.f32 %v5734
    %v5751 = vcvt.s32.f32 %v5735
    %v5752 = vcvt.s32.f32 %v5736
    %v5753 = vcvt.s32.f32 %v5737
    %v5754 = vcvt.s32.f32 %v5738
    %v5755 = vcvt.s32.f32 %v5739
    %v5756 = vcvt.s32.f32 %v5740
    %v5757 = vcvt.s32.f32 %v5741
    %v5758 = vcvt.s32.f32 %v5742
    %v5759 = vmul.f32 %v5677, %v5743
    %v5760 = vmul.f32 %v5677, %v5744
    %v5761 = vmul.f32 %v5677, %v5745
    %v5762 = vmul.f32 %v5677, %v5746
    %v5763 = vmul.f32 %v5677, %v5747
    %v5764 = vmul.f32 %v5677, %v5748
    %v5765 = vmul.f32 %v5677, %v5749
    %v5766 = vmul.f32 %v5677, %v5750
    %v5767 = vmul.f32 %v5677, %v5751
    %v5768 = vmul.f32 %v5677, %v5752
    %v5769 = vmul.f32 %v5677, %v5753
    %v5770 = vmul.f32 %v5677, %v5754
    %v5771 = vmul.f32 %v5677, %v5755
    %v5772 = vmul.f32 %v5677, %v5756
    %v5773 = vmul.f32 %v5677, %v5757
    %v5774 = vmul.f32 %v5677, %v5758
    %v5775 = vsub.f32 %v5661, %v5759
    %v5776 = vsub.f32 %v5662, %v5760
    %v5777 = vsub.f32 %v5663, %v5761
    %v5778 = vsub.f32 %v5664, %v5762
    %v5779 = vsub.f32 %v5665, %v5763
    %v5780 = vsub.f32 %v5666, %v5764
    %v5781 = vsub.f32 %v5667, %v5765
    %v5782 = vsub.f32 %v5668, %v5766
    %v5783 = vsub.f32 %v5669, %v5767
    %v5784 = vsub.f32 %v5670, %v5768
    %v5785 = vsub.f32 %v5671, %v5769
    %v5786 = vsub.f32 %v5672, %v5770
    %v5787 = vsub.f32 %v5673, %v5771
    %v5788 = vsub.f32 %v5674, %v5772
    %v5789 = vsub.f32 %v5675, %v5773
    %v5790 = vsub.f32 %v5676, %v5774
    %5791 = vst [vmem:[#allocation20] sm:$0xff] %v5775
    %5792 = vst [vmem:[#allocation20 + $0x8] sm:$0xff] %v5776
    %5793 = vst [vmem:[#allocation20 + $0x10] sm:$0xff] %v5777
    %5794 = vst [vmem:[#allocation20 + $0x18] sm:$0xff] %v5778
    %5795 = vst [vmem:[#allocation20 + $0x20] sm:$0xff] %v5779
    %5796 = vst [vmem:[#allocation20 + $0x28] sm:$0xff] %v5780
    %5797 = vst [vmem:[#allocation20 + $0x30] sm:$0xff] %v5781
    %5798 = vst [vmem:[#allocation20 + $0x38] sm:$0xff] %v5782
    %5799 = vst [vmem:[#allocation20 + $0x40] sm:$0xff] %v5783
    %5800 = vst [vmem:[#allocation20 + $0x48] sm:$0xff] %v5784
    %5801 = vst [vmem:[#allocation20 + $0x50] sm:$0xff] %v5785
    %5802 = vst [vmem:[#allocation20 + $0x58] sm:$0xff] %v5786
    %5803 = vst [vmem:[#allocation20 + $0x60] sm:$0xff] %v5787
    %5804 = vst [vmem:[#allocation20 + $0x68] sm:$0xff] %v5788
    %5805 = vst [vmem:[#allocation20 + $0x70] sm:$0xff] %v5789
    %5806 = vst [vmem:[#allocation20 + $0x78] sm:$0xff] %v5790
    %v5807 = vld [vmem:[#allocation14] sm:$0xf]
    %v5808 = vld [vmem:[#allocation14 + $0x4] sm:$0xf]
    %v5809 = vld [vmem:[#allocation14 + $0x8] sm:$0xf]
    %v5810 = vld [vmem:[#allocation14 + $0xc] sm:$0xf]
    %v5811 = vld [vmem:[#allocation14 + $0x10] sm:$0xf]
    %v5812 = vld [vmem:[#allocation14 + $0x14] sm:$0xf]
    %v5813 = vld [vmem:[#allocation14 + $0x18] sm:$0xf]
    %v5814 = vld [vmem:[#allocation14 + $0x1c] sm:$0xf]
    %v5815 = vld [vmem:[#allocation14 + $0x20] sm:$0xf]
    %v5816 = vld [vmem:[#allocation14 + $0x24] sm:$0xf]
    %v5817 = vld [vmem:[#allocation14 + $0x28] sm:$0xf]
    %v5818 = vld [vmem:[#allocation14 + $0x2c] sm:$0xf]
    %v5819 = vld [vmem:[#allocation14 + $0x30] sm:$0xf]
    %v5820 = vld [vmem:[#allocation14 + $0x34] sm:$0xf]
    %v5821 = vld [vmem:[#allocation14 + $0x38] sm:$0xf]
    %v5822 = vld [vmem:[#allocation14 + $0x3c] sm:$0xf]
    %v5823 = vunpack.c.l.bf16 %v5807
    %v5824 = vunpack.c.l.bf16 %v5808
    %v5825 = vunpack.c.l.bf16 %v5809
    %v5826 = vunpack.c.l.bf16 %v5810
    %v5827 = vunpack.c.l.bf16 %v5811
    %v5828 = vunpack.c.l.bf16 %v5812
    %v5829 = vunpack.c.l.bf16 %v5813
    %v5830 = vunpack.c.l.bf16 %v5814
    %v5831 = vunpack.c.l.bf16 %v5815
    %v5832 = vunpack.c.l.bf16 %v5816
    %v5833 = vunpack.c.l.bf16 %v5817
    %v5834 = vunpack.c.l.bf16 %v5818
    %v5835 = vunpack.c.l.bf16 %v5819
    %v5836 = vunpack.c.l.bf16 %v5820
    %v5837 = vunpack.c.l.bf16 %v5821
    %v5838 = vunpack.c.l.bf16 %v5822
    %v5839 = vsel %vm5711, %v2432, %v5823
    %v5840 = vsel %vm5712, %v2432, %v5824
    %v5841 = vsel %vm5713, %v2432, %v5825
    %v5842 = vsel %vm5714, %v2432, %v5826
    %v5843 = vsel %vm5715, %v2432, %v5827
    %v5844 = vsel %vm5716, %v2432, %v5828
    %v5845 = vsel %vm5717, %v2432, %v5829
    %v5846 = vsel %vm5718, %v2432, %v5830
    %v5847 = vsel %vm5719, %v2432, %v5831
    %v5848 = vsel %vm5720, %v2432, %v5832
    %v5849 = vsel %vm5721, %v2432, %v5833
    %v5850 = vsel %vm5722, %v2432, %v5834
    %v5851 = vsel %vm5723, %v2432, %v5835
    %v5852 = vsel %vm5724, %v2432, %v5836
    %v5853 = vsel %vm5725, %v2432, %v5837
    %v5854 = vsel %vm5726, %v2432, %v5838
    %v5855 = vpack.c.bf16 %v5840, %v5839
    %v5856 = vpack.c.bf16 %v5842, %v5841
    %v5857 = vpack.c.bf16 %v5844, %v5843
    %v5858 = vpack.c.bf16 %v5846, %v5845
    %v5859 = vpack.c.bf16 %v5848, %v5847
    %v5860 = vpack.c.bf16 %v5850, %v5849
    %v5861 = vpack.c.bf16 %v5852, %v5851
    %v5862 = vpack.c.bf16 %v5854, %v5853
    %v5871 = vunpack.c.l.b16 %v5855
    %v5872 = vunpack.c.h.b16 %v5855
    %v5873 = vunpack.c.l.b16 %v5856
    %v5874 = vunpack.c.h.b16 %v5856
    %v5875 = vunpack.c.l.b16 %v5857
    %v5876 = vunpack.c.h.b16 %v5857
    %v5877 = vunpack.c.l.b16 %v5858
    %v5878 = vunpack.c.h.b16 %v5858
    %v5879 = vunpack.c.l.b16 %v5859
    %v5880 = vunpack.c.h.b16 %v5859
    %v5881 = vunpack.c.l.b16 %v5860
    %v5882 = vunpack.c.h.b16 %v5860
    %v5883 = vunpack.c.l.b16 %v5861
    %v5884 = vunpack.c.h.b16 %v5861
    %v5885 = vunpack.c.l.b16 %v5862
    %v5886 = vunpack.c.h.b16 %v5862
    %v5887 = vpack.c.b16 %v5871, %v5871
    %v5888 = vpack.c.b16 %v5872, %v5872
    %v5889 = vpack.c.b16 %v5873, %v5873
    %v5890 = vpack.c.b16 %v5874, %v5874
    %v5891 = vpack.c.b16 %v5875, %v5875
    %v5892 = vpack.c.b16 %v5876, %v5876
    %v5893 = vpack.c.b16 %v5877, %v5877
    %v5894 = vpack.c.b16 %v5878, %v5878
    %v5895 = vpack.c.b16 %v5879, %v5879
    %v5896 = vpack.c.b16 %v5880, %v5880
    %v5897 = vpack.c.b16 %v5881, %v5881
    %v5898 = vpack.c.b16 %v5882, %v5882
    %v5899 = vpack.c.b16 %v5883, %v5883
    %v5900 = vpack.c.b16 %v5884, %v5884
    %v5901 = vpack.c.b16 %v5885, %v5885
    %v5902 = vpack.c.b16 %v5886, %v5886
    %5919 = vst [vmem:[#allocation22] sm:$0xf] %v5887
    %5920 = vst [vmem:[#allocation22 + $0x4] sm:$0xf] %v5888
    %5921 = vst [vmem:[#allocation22 + $0x8] sm:$0xf] %v5889
    %5922 = vst [vmem:[#allocation22 + $0xc] sm:$0xf] %v5890
    %5923 = vst [vmem:[#allocation22 + $0x10] sm:$0xf] %v5891
    %5924 = vst [vmem:[#allocation22 + $0x14] sm:$0xf] %v5892
    %5925 = vst [vmem:[#allocation22 + $0x18] sm:$0xf] %v5893
    %5926 = vst [vmem:[#allocation22 + $0x1c] sm:$0xf] %v5894
    %5927 = vst [vmem:[#allocation22 + $0x20] sm:$0xf] %v5895
    %5928 = vst [vmem:[#allocation22 + $0x24] sm:$0xf] %v5896
    %5929 = vst [vmem:[#allocation22 + $0x28] sm:$0xf] %v5897
    %5930 = vst [vmem:[#allocation22 + $0x2c] sm:$0xf] %v5898
    %5931 = vst [vmem:[#allocation22 + $0x30] sm:$0xf] %v5899
    %5932 = vst [vmem:[#allocation22 + $0x34] sm:$0xf] %v5900
    %5933 = vst [vmem:[#allocation22 + $0x38] sm:$0xf] %v5901
    %5934 = vst [vmem:[#allocation22 + $0x3c] sm:$0xf] %v5902
    %v5935 = vpack.c.bf16 %v5744, %v5743
    %v5936 = vpack.c.bf16 %v5746, %v5745
    %v5937 = vpack.c.bf16 %v5748, %v5747
    %v5938 = vpack.c.bf16 %v5750, %v5749
    %v5939 = vpack.c.bf16 %v5752, %v5751
    %v5940 = vpack.c.bf16 %v5754, %v5753
    %v5941 = vpack.c.bf16 %v5756, %v5755
    %v5942 = vpack.c.bf16 %v5758, %v5757
    %v5951 = vunpack.c.l.b16 %v5935
    %v5952 = vunpack.c.h.b16 %v5935
    %v5953 = vunpack.c.l.b16 %v5936
    %v5954 = vunpack.c.h.b16 %v5936
    %v5955 = vunpack.c.l.b16 %v5937
    %v5956 = vunpack.c.h.b16 %v5937
    %v5957 = vunpack.c.l.b16 %v5938
    %v5958 = vunpack.c.h.b16 %v5938
    %v5959 = vunpack.c.l.b16 %v5939
    %v5960 = vunpack.c.h.b16 %v5939
    %v5961 = vunpack.c.l.b16 %v5940
    %v5962 = vunpack.c.h.b16 %v5940
    %v5963 = vunpack.c.l.b16 %v5941
    %v5964 = vunpack.c.h.b16 %v5941
    %v5965 = vunpack.c.l.b16 %v5942
    %v5966 = vunpack.c.h.b16 %v5942
    %v5967 = vpack.c.b16 %v5951, %v5951
    %v5968 = vpack.c.b16 %v5952, %v5952
    %v5969 = vpack.c.b16 %v5953, %v5953
    %v5970 = vpack.c.b16 %v5954, %v5954
    %v5971 = vpack.c.b16 %v5955, %v5955
    %v5972 = vpack.c.b16 %v5956, %v5956
    %v5973 = vpack.c.b16 %v5957, %v5957
    %v5974 = vpack.c.b16 %v5958, %v5958
    %v5975 = vpack.c.b16 %v5959, %v5959
    %v5976 = vpack.c.b16 %v5960, %v5960
    %v5977 = vpack.c.b16 %v5961, %v5961
    %v5978 = vpack.c.b16 %v5962, %v5962
    %v5979 = vpack.c.b16 %v5963, %v5963
    %v5980 = vpack.c.b16 %v5964, %v5964
    %v5981 = vpack.c.b16 %v5965, %v5965
    %v5982 = vpack.c.b16 %v5966, %v5966
    %5999 = vst [vmem:[#allocation16] sm:$0xf] %v5967
    %6000 = vst [vmem:[#allocation16 + $0x4] sm:$0xf] %v5968
    %6001 = vst [vmem:[#allocation16 + $0x8] sm:$0xf] %v5969
    %6002 = vst [vmem:[#allocation16 + $0xc] sm:$0xf] %v5970
    %6003 = vst [vmem:[#allocation16 + $0x10] sm:$0xf] %v5971
    %6004 = vst [vmem:[#allocation16 + $0x14] sm:$0xf] %v5972
    %6005 = vst [vmem:[#allocation16 + $0x18] sm:$0xf] %v5973
    %6006 = vst [vmem:[#allocation16 + $0x1c] sm:$0xf] %v5974
    %6007 = vst [vmem:[#allocation16 + $0x20] sm:$0xf] %v5975
    %6008 = vst [vmem:[#allocation16 + $0x24] sm:$0xf] %v5976
    %6009 = vst [vmem:[#allocation16 + $0x28] sm:$0xf] %v5977
    %6010 = vst [vmem:[#allocation16 + $0x2c] sm:$0xf] %v5978
    %6011 = vst [vmem:[#allocation16 + $0x30] sm:$0xf] %v5979
    %6012 = vst [vmem:[#allocation16 + $0x34] sm:$0xf] %v5980
    %6013 = vst [vmem:[#allocation16 + $0x38] sm:$0xf] %v5981
    %6014 = vst [vmem:[#allocation16 + $0x3c] sm:$0xf] %v5982
    // Predicated region
    $region70: #{tpu_custom_call.1} parent=1 // pred_check
      _
    $region71: #{tpu_custom_call.1} parent=1 // pred_check_branch
      %6016 = sbr.rel (0) target = $region73
    $region72: #{tpu_custom_call.1} parent=1 // pred_region
      %s6018 = ssub.s32 1024, 1024
      %6019 = vsyncadd [#allocation5], %s6018
      %s6020 = sshll.u32 [#allocation16], 4
      %s6021 = int_to_ptr.vmem [resolvable:$true] %s6020
      %6026 = dma.vmem_to_hbm [thread:$0]  %s6021, 1024, %s10, [#allocation5], 64, 64, 4
    $region73: #{tpu_custom_call.1} parent=1 // pred_fallthru
      _
    // Predicated region
    $region74: #{tpu_custom_call.1} parent=1 // pred_check
      _
    $region75: #{tpu_custom_call.1} parent=1 // pred_check_branch
      %6028 = sbr.rel (0) target = $region77
    $region76: #{tpu_custom_call.1} parent=1 // pred_region
      %s6030 = ssub.s32 2048, 2048
      %6031 = vsyncadd [#allocation18], %s6030
      %s6032 = sshll.u32 [#allocation17], 4
      %s6033 = int_to_ptr.vmem [resolvable:$true] %s6032
      %6038 = dma.vmem_to_hbm [thread:$0]  %s6033, 2048, %s11, [#allocation18], 128, 128, 8
    $region77: #{tpu_custom_call.1} parent=1 // pred_fallthru
      _
    // Predicated region
    $region78: #{tpu_custom_call.1} parent=1 // pred_check
      _
    $region79: #{tpu_custom_call.1} parent=1 // pred_check_branch
      %6040 = sbr.rel (0) target = $region81
    $region80: #{tpu_custom_call.1} parent=1 // pred_region
      %s6042 = ssub.s32 1024, 1024
      %6043 = vsyncadd [#allocation18], %s6042
      %s6044 = sshll.u32 [#allocation19], 4
      %s6045 = int_to_ptr.vmem [resolvable:$true] %s6044
      %6050 = dma.vmem_to_hbm [thread:$0]  %s6045, 1024, %s12, [#allocation18], 64, 64, 4
    $region81: #{tpu_custom_call.1} parent=1 // pred_fallthru
      _
    // Predicated region
    $region82: #{tpu_custom_call.1} parent=1 // pred_check
      _
    $region83: #{tpu_custom_call.1} parent=1 // pred_check_branch
      %6052 = sbr.rel (0) target = $region85
    $region84: #{tpu_custom_call.1} parent=1 // pred_region
      %s6054 = ssub.s32 2048, 2048
      %6055 = vsyncadd [#allocation21], %s6054
      %s6056 = sshll.u32 [#allocation20], 4
      %s6057 = int_to_ptr.vmem [resolvable:$true] %s6056
      %6062 = dma.vmem_to_hbm [thread:$0]  %s6057, 2048, %s13, [#allocation21], 128, 128, 8
    $region85: #{tpu_custom_call.1} parent=1 // pred_fallthru
      _
    // Predicated region
    $region86: #{tpu_custom_call.1} parent=1 // pred_check
      _
    $region87: #{tpu_custom_call.1} parent=1 // pred_check_branch
      %6064 = sbr.rel (0) target = $region89
    $region88: #{tpu_custom_call.1} parent=1 // pred_region
      %s6066 = ssub.s32 1024, 1024
      %6067 = vsyncadd [#allocation21], %s6066
      %s6068 = sshll.u32 [#allocation22], 4
      %s6069 = int_to_ptr.vmem [resolvable:$true] %s6068
      %6074 = dma.vmem_to_hbm [thread:$0]  %s6069, 1024, %s14, [#allocation21], 64, 64, 4
    $region89: #{tpu_custom_call.1} parent=1 // pred_fallthru
      _
    // Predicated region
    $region90: #{tpu_custom_call.1} parent=1 // pred_check
      _
    $region91: #{tpu_custom_call.1} parent=1 // pred_check_branch
      %6076 = sbr.rel (0) target = $region93
    $region92: #{tpu_custom_call.1} parent=1 // pred_region
      %6077 = dma.done [#allocation5], 1024
    $region93: #{tpu_custom_call.1} parent=1 // pred_fallthru
      _
    // Predicated region
    $region94: #{tpu_custom_call.1} parent=1 // pred_check
      _
    $region95: #{tpu_custom_call.1} parent=1 // pred_check_branch
      %6079 = sbr.rel (0) target = $region97
    $region96: #{tpu_custom_call.1} parent=1 // pred_region
      %6080 = dma.done [#allocation18], 2048
    $region97: #{tpu_custom_call.1} parent=1 // pred_fallthru
      _
    // Predicated region
    $region98: #{tpu_custom_call.1} parent=1 // pred_check
      _
    $region99: #{tpu_custom_call.1} parent=1 // pred_check_branch
      %6082 = sbr.rel (0) target = $region101
    $region100: #{tpu_custom_call.1} parent=1 // pred_region
      %6083 = dma.done [#allocation18], 1024
    $region101: #{tpu_custom_call.1} parent=1 // pred_fallthru
      _
    // Predicated region
    $region102: #{tpu_custom_call.1} parent=1 // pred_check
      _
    $region103: #{tpu_custom_call.1} parent=1 // pred_check_branch
      %6085 = sbr.rel (0) target = $region105
    $region104: #{tpu_custom_call.1} parent=1 // pred_region
      %6086 = dma.done [#allocation21], 2048
    $region105: #{tpu_custom_call.1} parent=1 // pred_fallthru
      _
    // Predicated region
    $region106: #{tpu_custom_call.1} parent=1 // pred_check
      _
    $region107: #{tpu_custom_call.1} parent=1 // pred_check_branch
      %6088 = sbr.rel (0) target = $region109
    $region108: #{tpu_custom_call.1} parent=1 // pred_region
      %6089 = dma.done [#allocation21], 1024
    $region109: #{tpu_custom_call.1} parent=1 // pred_fallthru
      _
    %6090 = vsyncpa [#allocation4], 1
    %6091 = vsyncpa [#allocation9], 1
    %6092 = vsyncpa [#allocation12], 1
    %6093 = vsyncpa [#allocation15], 1
    %6094 = vsyncpa [#allocation5], 1
    %6095 = vsyncpa [#allocation18], 1
    %6096 = vsyncpa [#allocation21], 1
    %6097 = vsyncpa [#allocation6], 1

</llo_original>
